<compile_context>
chip_gen: v7x
topology: tpu7x:2x2x1
jax: 0.10.0
libtpu: 0.0.40
codegen_flags: <defaults>
</compile_context>

<pallas_src>
import functools
import numpy as np
import jax
import jax.numpy as jnp
from jax.experimental import pallas as pl
from jax.experimental.pallas import tpu as pltpu  # noqa: F401  (TPU backend assumed)

_OUT_LANES = 128  # lane-dense width of the out_conv block / kernel output


# ----------------------------- in-kernel helpers -----------------------------

def _inorm_per_batch(x, B, L, eps=1e-5):
    """InstanceNorm1d(affine=False) over time, per batch, on folded (B*L, C) rows."""
    parts = []
    for b in range(B):
        xb = x[b * L:(b + 1) * L, :]
        m = jnp.mean(xb, axis=0, keepdims=True)
        d = xb - m
        v = jnp.mean(d * d, axis=0, keepdims=True)
        parts.append(d * jax.lax.rsqrt(v + eps))
    return jnp.concatenate(parts, axis=0) if B > 1 else parts[0]


def _inorm_relu(x, B, L):
    return jnp.maximum(_inorm_per_batch(x, B, L), 0.0)


def _norm_film_relu(y, y_pd, cond, B, L):
    """relu((InstanceNorm(y) + y_pd) * std + mean); cond rows = [mean | std] per batch."""
    C = y.shape[1]
    yn = _inorm_per_batch(y, B, L)
    parts = []
    for b in range(B):
        mean = cond[b:b + 1, 0:C]
        std = cond[b:b + 1, C:2 * C]
        parts.append(jnp.maximum(
            (yn[b * L:(b + 1) * L, :] + y_pd[b * L:(b + 1) * L, :]) * std + mean, 0.0))
    return jnp.concatenate(parts, axis=0) if B > 1 else parts[0]


def _conv3(x, w_ref, col0, ncol, b, B, L):
    """'same' kernel-3 Conv1d with reflect padding on folded (B*L, Cin) rows.

    Columns [col0, col0+ncol) of w_ref hold the 3 taps stacked row-major:
    rows [t*Cin, (t+1)*Cin) are tap t (t=0 -> time l-1).  No im2col buffer is
    materialized; the conv is 3 shifted MXU matmuls.
    """
    R, C = x.shape
    f32 = jnp.float32
    # shift-by-one neighbours; batch-boundary rows are wrong here, fixed below.
    x_m = jnp.concatenate([x[0:1, :], x[0:R - 1, :]], axis=0)   # row r -> x[r-1]
    x_p = jnp.concatenate([x[1:R, :], x[R - 1:R, :]], axis=0)   # row r -> x[r+1]
    # per-batch local time index (no integer div/mod in the kernel).
    tloc = jax.lax.broadcasted_iota(jnp.int32, (L, C), 0)
    tloc = jnp.concatenate([tloc] * B, axis=0)
    x_prev = jnp.where(tloc == 0, x_p, x_m)       # reflect: t = -1 -> t = 1
    x_next = jnp.where(tloc == L - 1, x_m, x_p)   # reflect: t = L  -> t = L-2
    acc = jnp.dot(x_prev, w_ref[0:C, col0:col0 + ncol], preferred_element_type=f32)
    acc = acc + jnp.dot(x, w_ref[C:2 * C, col0:col0 + ncol], preferred_element_type=f32)
    acc = acc + jnp.dot(x_next, w_ref[2 * C:3 * C, col0:col0 + ncol],
                        preferred_element_type=f32)
    return acc + b


# ------------------------------- fused kernel --------------------------------

def _decoder_kernel(x_ref, conds_ref, w_ref, b_ref, o_ref, *, B, T, c_h):
    """Whole Decoder forward on folded (batch*time, channel) slabs in VMEM."""
    f32 = jnp.float32
    C2 = 2 * c_h          # concatenated [main | pd] channel width
    T2 = 2 * T            # per-batch length after the x2 pixel shuffle

    # ---- input 1x1 convs (block-diagonal main/pd), InstanceNorm + relu ----
    x_in = x_ref[...]                                            # (B*T, 3*C2)
    t = jnp.dot(x_in, w_ref[:, 0:C2], preferred_element_type=f32) + b_ref[0:1, 0:C2]
    out = jnp.concatenate(
        [_inorm_relu(t[:, 0:c_h], B, T), jnp.maximum(t[:, c_h:C2], 0.0)], axis=1)

    # ---- block 0 (upsample x2) ----
    t = _conv3(out, w_ref, 1 * C2, C2, b_ref[1:2, 0:C2], B, T)           # first convs
    y_pd = t[:, c_h:C2]
    y = _norm_film_relu(t[:, 0:c_h], y_pd, conds_ref[0], B, T)
    t = _conv3(jnp.concatenate([y, y_pd], axis=1), w_ref, 2 * C2, 2 * C2,
               b_ref[2:3, 0:2 * C2], B, T)                               # second convs
    # columns of t: [main_ph0 | pd_ph0 | main_ph1 | pd_ph1]  (phase-major packing)

    # pixel shuffle (x2) and nearest-upsample residual via 0/1 selection matmuls
    rl = jax.lax.broadcasted_iota(jnp.int32, (T2, T), 0)
    cl = jax.lax.broadcasted_iota(jnp.int32, (T2, T), 1)
    ue = jnp.where(rl == 2 * cl, 1.0, 0.0).astype(f32)        # picks phase-0 rows
    uo = jnp.where(rl == 2 * cl + 1, 1.0, 0.0).astype(f32)    # picks phase-1 rows

    def _blockdiag(u):                                        # (T2, T) -> (B*T2, B*T)
        zero = jnp.zeros_like(u)
        return jnp.concatenate(
            [jnp.concatenate([u if j == i else zero for j in range(B)], axis=1)
             for i in range(B)], axis=0)

    u_even = _blockdiag(ue)
    u_odd = _blockdiag(uo)
    u_up = u_even + u_odd                                     # nearest upsample x2

    shuf = (jnp.dot(u_even, t[:, 0:C2], preferred_element_type=f32)
            + jnp.dot(u_odd, t[:, C2:2 * C2], preferred_element_type=f32))  # (B*T2, C2)
    res = jnp.dot(u_up, out, preferred_element_type=f32)                     # (B*T2, C2)

    y = _norm_film_relu(shuf[:, 0:c_h], shuf[:, c_h:C2], conds_ref[1], B, T2)
    out = jnp.concatenate([y + res[:, 0:c_h], res[:, c_h:C2]], axis=1)

    # ---- block 1 (no upsample) ----
    t = _conv3(out, w_ref, 4 * C2, C2, b_ref[3:4, 0:C2], B, T2)
    y_pd = t[:, c_h:C2]
    y = _norm_film_relu(t[:, 0:c_h], y_pd, conds_ref[2], B, T2)
    t = _conv3(jnp.concatenate([y, y_pd], axis=1), w_ref, 5 * C2, C2,
               b_ref[4:5, 0:C2], B, T2)
    y = _norm_film_relu(t[:, 0:c_h], t[:, c_h:C2], conds_ref[3], B, T2)
    out_main = y + out[:, 0:c_h]

    # ---- out_conv (1x1), lane-dense zero-padded output slab ----
    o_w = o_ref.shape[1]
    o_ref[...] = (jnp.dot(out_main, w_ref[0:c_h, 6 * C2:6 * C2 + o_w],
                          preferred_element_type=f32) + b_ref[5:6, 0:o_w])


# ------------------------------- param packing --------------------------------

def pack_params(p, cfg):
    """One-time packing of all Decoder weights into a few dense arrays."""
    c_in, c_h, c_out, K = cfg['c_in'], cfg['c_h'], cfg['c_out'], cfg['kernel_size']
    up0 = int(cfg['upsample'][0])
    C2 = 2 * c_h
    rows = K * C2

    def npa(x):
        return np.asarray(x, dtype=np.float32)

    widths = [C2, C2, up0 * C2, C2, C2, _OUT_LANES]
    offs = np.cumsum([0] + widths)
    W = np.zeros((rows, int(offs[-1])), np.float32)
    Bpk = np.zeros((8, max(up0 * C2, _OUT_LANES)), np.float32)

    # input 1x1 convs: x_in rows = [z (c_in) | pd (4) | zero-pad]
    (w_in, b_in), (w_ipd, b_ipd) = p['in_conv'], p['in_conv_pd']
    W[0:c_in, 0:c_h] = npa(w_in)
    W[c_in:c_in + 4, c_h:C2] = npa(w_ipd)
    Bpk[0, 0:c_h] = npa(b_in)[0]
    Bpk[0, c_h:C2] = npa(b_ipd)[0]

    def put_pair(block, wm, bm, wp, bp, bias_row, up):
        """Block-diagonal [main|pd] conv pair; output columns phase-major for up>1."""
        col0 = int(offs[block])
        j = np.arange(npa(wm).shape[1])                     # main/pd out channels
        main_cols = col0 + (j % up) * C2 + (j // up)
        pd_cols = main_cols + c_h
        wm_, wp_ = npa(wm), npa(wp)
        for t in range(K):
            W[t * C2:t * C2 + c_h, main_cols] = wm_[t * c_h:(t + 1) * c_h, :]
            W[t * C2 + c_h:(t + 1) * C2, pd_cols] = wp_[t * c_h:(t + 1) * c_h, :]
        Bpk[bias_row, main_cols - col0] = npa(bm)[0]
        Bpk[bias_row, pd_cols - col0] = npa(bp)[0]

    put_pair(1, *p['first'][0], *p['first_pd'][0], bias_row=1, up=1)
    put_pair(2, *p['second'][0], *p['second_pd'][0], bias_row=2, up=up0)
    put_pair(3, *p['first'][1], *p['first_pd'][1], bias_row=3, up=1)
    put_pair(4, *p['second'][1], *p['second_pd'][1], bias_row=4, up=1)

    # out_conv (1x1), zero-padded to a lane-dense block
    w_out, b_out = p['out_conv']
    W[0:c_h, int(offs[5]):int(offs[5]) + c_out] = npa(w_out)
    Bpk[5, 0:c_out] = npa(b_out)[0]

    # FiLM affine layers packed into one Linear
    W_aff = np.concatenate([npa(w) for (w, _) in p['affine_sp']], axis=1)
    b_aff = np.concatenate([npa(b) for (_, b) in p['affine_sp']], axis=1)

    return dict(w=jnp.asarray(W), b=jnp.asarray(Bpk),
                w_aff=jnp.asarray(W_aff), b_aff=jnp.asarray(b_aff))


# --------------------------------- forward -----------------------------------

def decoder_forward(z_ncl, pd_ncl, sp_cond, packed, cfg):
    K = cfg['kernel_size']
    c_h, c_out = cfg['c_h'], cfg['c_out']
    nb, ups = cfg['n_conv_blocks'], tuple(cfg['upsample'])
    assert (K, nb, ups) == (3, 2, (2, 1)), "fused kernel specialized to this config"

    B, c_in, T = z_ncl.shape
    assert T >= 2
    up0 = ups[0]
    f32 = jnp.float32

    # NCL -> NLC, fold batch into rows, zero-pad channels up to the packed conv rows.
    z_f = jnp.transpose(z_ncl, (0, 2, 1)).reshape(B * T, c_in)
    pd_f = jnp.transpose(pd_ncl, (0, 2, 1)).reshape(B * T, pd_ncl.shape[1])
    k_rows = packed['w'].shape[0]
    pad = k_rows - z_f.shape[1] - pd_f.shape[1]
    assert pad >= 0
    x_in = jnp.concatenate([z_f, pd_f, jnp.zeros((B * T, pad), f32)], axis=1)

    # FiLM conditioners (tiny Linears) as one XLA matmul -> (n_layers, B, 2*c_h)
    cond = jnp.dot(sp_cond, packed['w_aff'],
                   precision=jax.lax.Precision.HIGHEST) + packed['b_aff']
    conds = cond.reshape(B, 2 * nb, 2 * c_h).transpose(1, 0, 2)

    out = pl.pallas_call(
        functools.partial(_decoder_kernel, B=B, T=T, c_h=c_h),
        out_shape=jax.ShapeDtypeStruct((B * T * up0, _OUT_LANES), f32),
    )(x_in, conds, packed['w'], packed['b'])

    dec = out[:, :c_out].reshape(B, T * up0, c_out)
    return jnp.transpose(dec, (0, 2, 1))                    # NLC -> NCL


# ----------------------------- pure-JAX reference -----------------------------

def pixel_shuffle_nlc(x, s):
    B, L, C2 = x.shape
    C = C2 // s
    return x.reshape(B, L, C, s).transpose(0, 1, 3, 2).reshape(B, L * s, C)


def decoder_reference(z_ncl, pd_ncl, sp_cond, p, cfg):
    K = cfg['kernel_size']; c_h = cfg['c_h']
    nb = cfg['n_conv_blocks']; ups = tuple(cfg['upsample'])
    hp = jax.lax.Precision.HIGHEST
    x = jnp.transpose(z_ncl, (0, 2, 1))
    pdc = jnp.transpose(pd_ncl, (0, 2, 1))

    def conv(x, wb, k):
        w, b = wb
        if k > 1:
            padl = k // 2
            padr = k // 2 if (k % 2 == 1) else k // 2 - 1
            xp = jnp.pad(x, ((0, 0), (padl, padr), (0, 0)), mode='reflect')
            L = x.shape[1]
            x = jnp.concatenate([xp[:, t:t + L, :] for t in range(k)], axis=2)
        return jnp.einsum('blk,ko->blo', x, w, precision=hp) + b

    def inorm(x):
        m = jnp.mean(x, axis=1, keepdims=True)
        v = jnp.mean(jnp.square(x - m), axis=1, keepdims=True)
        return (x - m) * jax.lax.rsqrt(v + 1e-5)

    def film(y, y_pd, wb):
        w, b = wb
        c = jnp.dot(sp_cond, w, precision=hp) + b
        mean, std = c[:, :c_h], c[:, c_h:]
        return jnp.maximum((y + y_pd) * std[:, None, :] + mean[:, None, :], 0.0)

    out = jnp.maximum(inorm(conv(x, p['in_conv'], 1)), 0.0)
    out_pd = jnp.maximum(conv(pdc, p['in_conv_pd'], 1), 0.0)
    for l in range(nb):
        up = ups[l]
        y = inorm(conv(out, p['first'][l], K))
        y_pd = conv(out_pd, p['first_pd'][l], K)
        y = film(y, y_pd, p['affine_sp'][2 * l])
        y = conv(y, p['second'][l], K)
        y_pd = conv(y_pd, p['second_pd'][l], K)
        if up > 1:
            y = pixel_shuffle_nlc(y, up)
            y_pd = pixel_shuffle_nlc(y_pd, up)
        y = inorm(y)
        y = film(y, y_pd, p['affine_sp'][2 * l + 1])
        if up > 1:
            out_pd = jnp.repeat(out_pd, up, axis=1)
            out = y + jnp.repeat(out, up, axis=1)
        else:
            out = y + out
    out = conv(out, p['out_conv'], 1)
    return jnp.transpose(out, (0, 2, 1))


# ---------------------------------- params ------------------------------------

def init_params(key, cfg):
    c_in, c_cond = cfg['c_in'], cfg['c_cond']
    c_h, c_out = cfg['c_h'], cfg['c_out']
    K = cfg['kernel_size']; nb = cfg['n_conv_blocks']; ups = cfg['upsample']
    keys = iter(jax.random.split(key, 64))

    def lin(cin, cout, k=1, scale=0.1):
        kw, kb = jax.random.split(next(keys))
        # tap-major flattened conv weight: (K*Cin, Cout)
        w = scale * jax.random.normal(kw, (k * cin, cout), jnp.float32)
        b = scale * jax.random.normal(kb, (1, cout), jnp.float32)
        return w, b

    p = {}
    p['in_conv'] = lin(c_in, c_h, 1)
    p['in_conv_pd'] = lin(4, c_h, 1)
    p['first'] = [lin(c_h, c_h, K) for _ in range(nb)]
    p['second'] = [lin(c_h, c_h * up, K) for up in ups]
    p['first_pd'] = [lin(c_h, c_h, K) for _ in range(nb)]
    p['second_pd'] = [lin(c_h, c_h * up, K) for up in ups]
    p['affine_sp'] = [lin(c_cond, c_h * 2, 1) for _ in range(nb * 2)]
    p['out_conv'] = lin(c_h, c_out, 1)
    return p


# ----------------------------------- main --------------------------------------

if __name__ == "__main__":
    cfg = dict(c_in=128, c_cond=32, c_h=32, c_out=8, kernel_size=3,
               n_conv_blocks=2, upsample=(2, 1), act='relu', sn=False,
               dropout_rate=0.0)
    B, T = 2, 16

    key = jax.random.PRNGKey(0)
    kz, kpd, ksp, kp = jax.random.split(key, 4)
    z = jax.random.normal(kz, (B, cfg['c_in'], T), jnp.float32)        # (2, 128, 16)
    pd_cond = jax.random.normal(kpd, (B, 4, T), jnp.float32)           # (2, 4, 16)
    sp_cond = jax.random.normal(ksp, (B, cfg['c_cond']), jnp.float32)  # (2, 32)
    params = init_params(kp, cfg)
    packed = pack_params(params, cfg)                                  # one-time pack

    fwd = jax.jit(functools.partial(decoder_forward, cfg=cfg))
    out = fwd(z, pd_cond, sp_cond, packed)
    jax.block_until_ready(out)

    T_out = T * int(np.prod(cfg['upsample']))
    assert out.shape == (B, cfg['c_out'], T_out), out.shape
    assert bool(jnp.all(jnp.isfinite(out)))

    ref = decoder_reference(z, pd_cond, sp_cond, params, cfg)
    err = float(jnp.max(jnp.abs(out - ref)))
    assert err < 1e-3, f"kernel/reference mismatch, max|diff|={err:.3e}"

    print("KERNEL_OK")
</pallas_src>

<mosaic_0001>
module attributes {stable_mosaic.version = 11 : i64} {
  func.func @_decoder_kernel(%arg0: memref<32x192xf32, #tpu.memory_space<vmem>>, %arg1: memref<4x2x64xf32, #tpu.memory_space<vmem>>, %arg2: memref<192x512xf32, #tpu.memory_space<vmem>>, %arg3: memref<8x128xf32, #tpu.memory_space<vmem>>, %arg4: memref<64x128xf32, #tpu.memory_space<vmem>>) attributes {dimension_semantics = [], scalar_prefetch = 0 : i64, scratch_operands = 0 : i64, tpu.core_type = #tpu.core_type<tc>} {
    %c0 = arith.constant 0 : index
    %c0_0 = arith.constant 0 : index
    %0 = vector.load %arg0[%c0, %c0_0] : memref<32x192xf32, #tpu.memory_space<vmem>>, vector<32x192xf32>
    %c0_1 = arith.constant 0 : index
    %c0_2 = arith.constant 0 : index
    %1 = vector.load %arg2[%c0_1, %c0_2] : memref<192x512xf32, #tpu.memory_space<vmem>>, vector<192x64xf32>
    %cst = arith.constant dense<0.000000e+00> : vector<32x64xf32>
    %2 = tpu.matmul %0, %1, %cst {dimension_numbers = #tpu.dot_dimension_numbers<[1], [0], [0], [1], [0, 0, 1, 1], [], []>} : vector<32x192xf32>, vector<192x64xf32>, vector<32x64xf32> -> vector<32x64xf32>
    %c0_3 = arith.constant 0 : index
    %c0_4 = arith.constant 0 : index
    %3 = vector.load %arg3[%c0_3, %c0_4] : memref<8x128xf32, #tpu.memory_space<vmem>>, vector<1x64xf32>
    %4 = vector.broadcast %3 : vector<1x64xf32> to vector<32x64xf32>
    %5 = arith.addf %2, %4 : vector<32x64xf32>
    %6 = vector.extract_strided_slice %5 {offsets = [0, 0], sizes = [32, 32], strides = [1, 1]} : vector<32x64xf32> to vector<32x32xf32>
    %7 = vector.extract_strided_slice %6 {offsets = [0, 0], sizes = [16, 32], strides = [1, 1]} : vector<32x32xf32> to vector<16x32xf32>
    %cst_5 = arith.constant dense<0.000000e+00> : vector<32xf32>
    %8 = vector.multi_reduction <add>, %7, %cst_5 [0] : vector<16x32xf32> to vector<32xf32>
    %9 = vector.shape_cast %8 : vector<32xf32> to vector<1x32xf32>
    %cst_6 = arith.constant 1.600000e+01 : f32
    %10 = vector.broadcast %cst_6 : f32 to vector<1x32xf32>
    %11 = arith.divf %9, %10 : vector<1x32xf32>
    %12 = vector.broadcast %11 : vector<1x32xf32> to vector<16x32xf32>
    %13 = arith.subf %7, %12 : vector<16x32xf32>
    %14 = arith.mulf %13, %13 : vector<16x32xf32>
    %cst_7 = arith.constant dense<0.000000e+00> : vector<32xf32>
    %15 = vector.multi_reduction <add>, %14, %cst_7 [0] : vector<16x32xf32> to vector<32xf32>
    %16 = vector.shape_cast %15 : vector<32xf32> to vector<1x32xf32>
    %cst_8 = arith.constant 1.600000e+01 : f32
    %17 = vector.broadcast %cst_8 : f32 to vector<1x32xf32>
    %18 = arith.divf %16, %17 : vector<1x32xf32>
    %cst_9 = arith.constant 9.99999974E-6 : f32
    %19 = vector.broadcast %cst_9 : f32 to vector<1x32xf32>
    %20 = arith.addf %18, %19 : vector<1x32xf32>
    %21 = math.rsqrt %20 : vector<1x32xf32>
    %22 = vector.broadcast %21 : vector<1x32xf32> to vector<16x32xf32>
    %23 = arith.mulf %13, %22 : vector<16x32xf32>
    %24 = vector.extract_strided_slice %6 {offsets = [16, 0], sizes = [16, 32], strides = [1, 1]} : vector<32x32xf32> to vector<16x32xf32>
    %cst_10 = arith.constant dense<0.000000e+00> : vector<32xf32>
    %25 = vector.multi_reduction <add>, %24, %cst_10 [0] : vector<16x32xf32> to vector<32xf32>
    %26 = vector.shape_cast %25 : vector<32xf32> to vector<1x32xf32>
    %cst_11 = arith.constant 1.600000e+01 : f32
    %27 = vector.broadcast %cst_11 : f32 to vector<1x32xf32>
    %28 = arith.divf %26, %27 : vector<1x32xf32>
    %29 = vector.broadcast %28 : vector<1x32xf32> to vector<16x32xf32>
    %30 = arith.subf %24, %29 : vector<16x32xf32>
    %31 = arith.mulf %30, %30 : vector<16x32xf32>
    %cst_12 = arith.constant dense<0.000000e+00> : vector<32xf32>
    %32 = vector.multi_reduction <add>, %31, %cst_12 [0] : vector<16x32xf32> to vector<32xf32>
    %33 = vector.shape_cast %32 : vector<32xf32> to vector<1x32xf32>
    %cst_13 = arith.constant 1.600000e+01 : f32
    %34 = vector.broadcast %cst_13 : f32 to vector<1x32xf32>
    %35 = arith.divf %33, %34 : vector<1x32xf32>
    %cst_14 = arith.constant 9.99999974E-6 : f32
    %36 = vector.broadcast %cst_14 : f32 to vector<1x32xf32>
    %37 = arith.addf %35, %36 : vector<1x32xf32>
    %38 = math.rsqrt %37 : vector<1x32xf32>
    %39 = vector.broadcast %38 : vector<1x32xf32> to vector<16x32xf32>
    %40 = arith.mulf %30, %39 : vector<16x32xf32>
    %41 = tpu.concatenate %23, %40 in 0 : vector<16x32xf32>, vector<16x32xf32> -> vector<32x32xf32>
    %cst_15 = arith.constant 0.000000e+00 : f32
    %42 = vector.broadcast %cst_15 : f32 to vector<32x32xf32>
    %43 = arith.maximumf %41, %42 : vector<32x32xf32>
    %44 = vector.extract_strided_slice %5 {offsets = [0, 32], sizes = [32, 32], strides = [1, 1]} : vector<32x64xf32> to vector<32x32xf32>
    %cst_16 = arith.constant 0.000000e+00 : f32
    %45 = vector.broadcast %cst_16 : f32 to vector<32x32xf32>
    %46 = arith.maximumf %44, %45 : vector<32x32xf32>
    %47 = tpu.concatenate %43, %46 in 1 : vector<32x32xf32>, vector<32x32xf32> -> vector<32x64xf32>
    %c1 = arith.constant 1 : index
    %c0_17 = arith.constant 0 : index
    %48 = vector.load %arg3[%c1, %c0_17] : memref<8x128xf32, #tpu.memory_space<vmem>>, vector<1x64xf32>
    %49 = vector.extract_strided_slice %47 {offsets = [0, 0], sizes = [1, 64], strides = [1, 1]} : vector<32x64xf32> to vector<1x64xf32>
    %50 = vector.extract_strided_slice %47 {offsets = [0, 0], sizes = [31, 64], strides = [1, 1]} : vector<32x64xf32> to vector<31x64xf32>
    %51 = tpu.concatenate %49, %50 in 0 : vector<1x64xf32>, vector<31x64xf32> -> vector<32x64xf32>
    %52 = vector.extract_strided_slice %47 {offsets = [1, 0], sizes = [31, 64], strides = [1, 1]} : vector<32x64xf32> to vector<31x64xf32>
    %53 = vector.extract_strided_slice %47 {offsets = [31, 0], sizes = [1, 64], strides = [1, 1]} : vector<32x64xf32> to vector<1x64xf32>
    %54 = tpu.concatenate %52, %53 in 0 : vector<31x64xf32>, vector<1x64xf32> -> vector<32x64xf32>
    %55 = tpu.iota {dimensions = array<i32: 0>} : vector<16x64xi32>
    %56 = tpu.concatenate %55, %55 in 0 : vector<16x64xi32>, vector<16x64xi32> -> vector<32x64xi32>
    %c0_i32 = arith.constant 0 : i32
    %57 = vector.broadcast %c0_i32 : i32 to vector<32x64xi32>
    %58 = arith.cmpi eq, %56, %57 : vector<32x64xi32>
    %59 = arith.select %58, %54, %51 : vector<32x64xi1>, vector<32x64xf32>
    %c15_i32 = arith.constant 15 : i32
    %60 = vector.broadcast %c15_i32 : i32 to vector<32x64xi32>
    %61 = arith.cmpi eq, %56, %60 : vector<32x64xi32>
    %62 = arith.select %61, %51, %54 : vector<32x64xi1>, vector<32x64xf32>
    %c0_18 = arith.constant 0 : index
    %c64 = arith.constant 64 : index
    %63 = vector.load %arg2[%c0_18, %c64] : memref<192x512xf32, #tpu.memory_space<vmem>>, vector<64x64xf32>
    %cst_19 = arith.constant dense<0.000000e+00> : vector<32x64xf32>
    %64 = tpu.matmul %59, %63, %cst_19 {dimension_numbers = #tpu.dot_dimension_numbers<[1], [0], [0], [1], [0, 0, 1, 1], [], []>} : vector<32x64xf32>, vector<64x64xf32>, vector<32x64xf32> -> vector<32x64xf32>
    %c64_20 = arith.constant 64 : index
    %c64_21 = arith.constant 64 : index
    %65 = vector.load %arg2[%c64_20, %c64_21] : memref<192x512xf32, #tpu.memory_space<vmem>>, vector<64x64xf32>
    %cst_22 = arith.constant dense<0.000000e+00> : vector<32x64xf32>
    %66 = tpu.matmul %47, %65, %cst_22 {dimension_numbers = #tpu.dot_dimension_numbers<[1], [0], [0], [1], [0, 0, 1, 1], [], []>} : vector<32x64xf32>, vector<64x64xf32>, vector<32x64xf32> -> vector<32x64xf32>
    %67 = arith.addf %64, %66 : vector<32x64xf32>
    %c128 = arith.constant 128 : index
    %c64_23 = arith.constant 64 : index
    %68 = vector.load %arg2[%c128, %c64_23] : memref<192x512xf32, #tpu.memory_space<vmem>>, vector<64x64xf32>
    %cst_24 = arith.constant dense<0.000000e+00> : vector<32x64xf32>
    %69 = tpu.matmul %62, %68, %cst_24 {dimension_numbers = #tpu.dot_dimension_numbers<[1], [0], [0], [1], [0, 0, 1, 1], [], []>} : vector<32x64xf32>, vector<64x64xf32>, vector<32x64xf32> -> vector<32x64xf32>
    %70 = arith.addf %67, %69 : vector<32x64xf32>
    %71 = vector.broadcast %48 : vector<1x64xf32> to vector<32x64xf32>
    %72 = arith.addf %70, %71 : vector<32x64xf32>
    %73 = vector.extract_strided_slice %72 {offsets = [0, 32], sizes = [32, 32], strides = [1, 1]} : vector<32x64xf32> to vector<32x32xf32>
    %74 = vector.extract_strided_slice %72 {offsets = [0, 0], sizes = [32, 32], strides = [1, 1]} : vector<32x64xf32> to vector<32x32xf32>
    %c0_25 = arith.constant 0 : index
    %c0_26 = arith.constant 0 : index
    %c0_27 = arith.constant 0 : index
    %75 = vector.load %arg1[%c0_25, %c0_26, %c0_27] : memref<4x2x64xf32, #tpu.memory_space<vmem>>, vector<1x2x64xf32>
    %76 = vector.shape_cast %75 : vector<1x2x64xf32> to vector<2x64xf32>
    %77 = vector.extract_strided_slice %74 {offsets = [0, 0], sizes = [16, 32], strides = [1, 1]} : vector<32x32xf32> to vector<16x32xf32>
    %cst_28 = arith.constant dense<0.000000e+00> : vector<32xf32>
    %78 = vector.multi_reduction <add>, %77, %cst_28 [0] : vector<16x32xf32> to vector<32xf32>
    %79 = vector.shape_cast %78 : vector<32xf32> to vector<1x32xf32>
    %cst_29 = arith.constant 1.600000e+01 : f32
    %80 = vector.broadcast %cst_29 : f32 to vector<1x32xf32>
    %81 = arith.divf %79, %80 : vector<1x32xf32>
    %82 = vector.broadcast %81 : vector<1x32xf32> to vector<16x32xf32>
    %83 = arith.subf %77, %82 : vector<16x32xf32>
    %84 = arith.mulf %83, %83 : vector<16x32xf32>
    %cst_30 = arith.constant dense<0.000000e+00> : vector<32xf32>
    %85 = vector.multi_reduction <add>, %84, %cst_30 [0] : vector<16x32xf32> to vector<32xf32>
    %86 = vector.shape_cast %85 : vector<32xf32> to vector<1x32xf32>
    %cst_31 = arith.constant 1.600000e+01 : f32
    %87 = vector.broadcast %cst_31 : f32 to vector<1x32xf32>
    %88 = arith.divf %86, %87 : vector<1x32xf32>
    %cst_32 = arith.constant 9.99999974E-6 : f32
    %89 = vector.broadcast %cst_32 : f32 to vector<1x32xf32>
    %90 = arith.addf %88, %89 : vector<1x32xf32>
    %91 = math.rsqrt %90 : vector<1x32xf32>
    %92 = vector.broadcast %91 : vector<1x32xf32> to vector<16x32xf32>
    %93 = arith.mulf %83, %92 : vector<16x32xf32>
    %94 = vector.extract_strided_slice %74 {offsets = [16, 0], sizes = [16, 32], strides = [1, 1]} : vector<32x32xf32> to vector<16x32xf32>
    %cst_33 = arith.constant dense<0.000000e+00> : vector<32xf32>
    %95 = vector.multi_reduction <add>, %94, %cst_33 [0] : vector<16x32xf32> to vector<32xf32>
    %96 = vector.shape_cast %95 : vector<32xf32> to vector<1x32xf32>
    %cst_34 = arith.constant 1.600000e+01 : f32
    %97 = vector.broadcast %cst_34 : f32 to vector<1x32xf32>
    %98 = arith.divf %96, %97 : vector<1x32xf32>
    %99 = vector.broadcast %98 : vector<1x32xf32> to vector<16x32xf32>
    %100 = arith.subf %94, %99 : vector<16x32xf32>
    %101 = arith.mulf %100, %100 : vector<16x32xf32>
    %cst_35 = arith.constant dense<0.000000e+00> : vector<32xf32>
    %102 = vector.multi_reduction <add>, %101, %cst_35 [0] : vector<16x32xf32> to vector<32xf32>
    %103 = vector.shape_cast %102 : vector<32xf32> to vector<1x32xf32>
    %cst_36 = arith.constant 1.600000e+01 : f32
    %104 = vector.broadcast %cst_36 : f32 to vector<1x32xf32>
    %105 = arith.divf %103, %104 : vector<1x32xf32>
    %cst_37 = arith.constant 9.99999974E-6 : f32
    %106 = vector.broadcast %cst_37 : f32 to vector<1x32xf32>
    %107 = arith.addf %105, %106 : vector<1x32xf32>
    %108 = math.rsqrt %107 : vector<1x32xf32>
    %109 = vector.broadcast %108 : vector<1x32xf32> to vector<16x32xf32>
    %110 = arith.mulf %100, %109 : vector<16x32xf32>
    %111 = tpu.concatenate %93, %110 in 0 : vector<16x32xf32>, vector<16x32xf32> -> vector<32x32xf32>
    %112 = vector.extract_strided_slice %76 {offsets = [0, 0], sizes = [1, 32], strides = [1, 1]} : vector<2x64xf32> to vector<1x32xf32>
    %113 = vector.extract_strided_slice %76 {offsets = [0, 32], sizes = [1, 32], strides = [1, 1]} : vector<2x64xf32> to vector<1x32xf32>
    %114 = vector.extract_strided_slice %111 {offsets = [0, 0], sizes = [16, 32], strides = [1, 1]} : vector<32x32xf32> to vector<16x32xf32>
    %115 = vector.extract_strided_slice %73 {offsets = [0, 0], sizes = [16, 32], strides = [1, 1]} : vector<32x32xf32> to vector<16x32xf32>
    %116 = arith.addf %114, %115 : vector<16x32xf32>
    %117 = vector.broadcast %113 : vector<1x32xf32> to vector<16x32xf32>
    %118 = arith.mulf %116, %117 : vector<16x32xf32>
    %119 = vector.broadcast %112 : vector<1x32xf32> to vector<16x32xf32>
    %120 = arith.addf %118, %119 : vector<16x32xf32>
    %cst_38 = arith.constant 0.000000e+00 : f32
    %121 = vector.broadcast %cst_38 : f32 to vector<16x32xf32>
    %122 = arith.maximumf %120, %121 : vector<16x32xf32>
    %123 = vector.extract_strided_slice %76 {offsets = [1, 0], sizes = [1, 32], strides = [1, 1]} : vector<2x64xf32> to vector<1x32xf32>
    %124 = vector.extract_strided_slice %76 {offsets = [1, 32], sizes = [1, 32], strides = [1, 1]} : vector<2x64xf32> to vector<1x32xf32>
    %125 = vector.extract_strided_slice %111 {offsets = [16, 0], sizes = [16, 32], strides = [1, 1]} : vector<32x32xf32> to vector<16x32xf32>
    %126 = vector.extract_strided_slice %73 {offsets = [16, 0], sizes = [16, 32], strides = [1, 1]} : vector<32x32xf32> to vector<16x32xf32>
    %127 = arith.addf %125, %126 : vector<16x32xf32>
    %128 = vector.broadcast %124 : vector<1x32xf32> to vector<16x32xf32>
    %129 = arith.mulf %127, %128 : vector<16x32xf32>
    %130 = vector.broadcast %123 : vector<1x32xf32> to vector<16x32xf32>
    %131 = arith.addf %129, %130 : vector<16x32xf32>
    %cst_39 = arith.constant 0.000000e+00 : f32
    %132 = vector.broadcast %cst_39 : f32 to vector<16x32xf32>
    %133 = arith.maximumf %131, %132 : vector<16x32xf32>
    %134 = tpu.concatenate %122, %133 in 0 : vector<16x32xf32>, vector<16x32xf32> -> vector<32x32xf32>
    %135 = tpu.concatenate %134, %73 in 1 : vector<32x32xf32>, vector<32x32xf32> -> vector<32x64xf32>
    %c2 = arith.constant 2 : index
    %c0_40 = arith.constant 0 : index
    %136 = vector.load %arg3[%c2, %c0_40] : memref<8x128xf32, #tpu.memory_space<vmem>>, vector<1x128xf32>
    %137 = vector.extract_strided_slice %135 {offsets = [0, 0], sizes = [1, 64], strides = [1, 1]} : vector<32x64xf32> to vector<1x64xf32>
    %138 = vector.extract_strided_slice %135 {offsets = [0, 0], sizes = [31, 64], strides = [1, 1]} : vector<32x64xf32> to vector<31x64xf32>
    %139 = tpu.concatenate %137, %138 in 0 : vector<1x64xf32>, vector<31x64xf32> -> vector<32x64xf32>
    %140 = vector.extract_strided_slice %135 {offsets = [1, 0], sizes = [31, 64], strides = [1, 1]} : vector<32x64xf32> to vector<31x64xf32>
    %141 = vector.extract_strided_slice %135 {offsets = [31, 0], sizes = [1, 64], strides = [1, 1]} : vector<32x64xf32> to vector<1x64xf32>
    %142 = tpu.concatenate %140, %141 in 0 : vector<31x64xf32>, vector<1x64xf32> -> vector<32x64xf32>
    %143 = tpu.iota {dimensions = array<i32: 0>} : vector<16x64xi32>
    %144 = tpu.concatenate %143, %143 in 0 : vector<16x64xi32>, vector<16x64xi32> -> vector<32x64xi32>
    %c0_i32_41 = arith.constant 0 : i32
    %145 = vector.broadcast %c0_i32_41 : i32 to vector<32x64xi32>
    %146 = arith.cmpi eq, %144, %145 : vector<32x64xi32>
    %147 = arith.select %146, %142, %139 : vector<32x64xi1>, vector<32x64xf32>
    %c15_i32_42 = arith.constant 15 : i32
    %148 = vector.broadcast %c15_i32_42 : i32 to vector<32x64xi32>
    %149 = arith.cmpi eq, %144, %148 : vector<32x64xi32>
    %150 = arith.select %149, %139, %142 : vector<32x64xi1>, vector<32x64xf32>
    %c0_43 = arith.constant 0 : index
    %c128_44 = arith.constant 128 : index
    %151 = vector.load %arg2[%c0_43, %c128_44] : memref<192x512xf32, #tpu.memory_space<vmem>>, vector<64x128xf32>
    %cst_45 = arith.constant dense<0.000000e+00> : vector<32x128xf32>
    %152 = tpu.matmul %147, %151, %cst_45 {dimension_numbers = #tpu.dot_dimension_numbers<[1], [0], [0], [1], [0, 0, 1, 1], [], []>} : vector<32x64xf32>, vector<64x128xf32>, vector<32x128xf32> -> vector<32x128xf32>
    %c64_46 = arith.constant 64 : index
    %c128_47 = arith.constant 128 : index
    %153 = vector.load %arg2[%c64_46, %c128_47] : memref<192x512xf32, #tpu.memory_space<vmem>>, vector<64x128xf32>
    %cst_48 = arith.constant dense<0.000000e+00> : vector<32x128xf32>
    %154 = tpu.matmul %135, %153, %cst_48 {dimension_numbers = #tpu.dot_dimension_numbers<[1], [0], [0], [1], [0, 0, 1, 1], [], []>} : vector<32x64xf32>, vector<64x128xf32>, vector<32x128xf32> -> vector<32x128xf32>
    %155 = arith.addf %152, %154 : vector<32x128xf32>
    %c128_49 = arith.constant 128 : index
    %c128_50 = arith.constant 128 : index
    %156 = vector.load %arg2[%c128_49, %c128_50] : memref<192x512xf32, #tpu.memory_space<vmem>>, vector<64x128xf32>
    %cst_51 = arith.constant dense<0.000000e+00> : vector<32x128xf32>
    %157 = tpu.matmul %150, %156, %cst_51 {dimension_numbers = #tpu.dot_dimension_numbers<[1], [0], [0], [1], [0, 0, 1, 1], [], []>} : vector<32x64xf32>, vector<64x128xf32>, vector<32x128xf32> -> vector<32x128xf32>
    %158 = arith.addf %155, %157 : vector<32x128xf32>
    %159 = vector.broadcast %136 : vector<1x128xf32> to vector<32x128xf32>
    %160 = arith.addf %158, %159 : vector<32x128xf32>
    %161 = tpu.iota {dimensions = array<i32: 0>} : vector<32x16xi32>
    %162 = tpu.iota {dimensions = array<i32: 1>} : vector<32x16xi32>
    %c2_i32 = arith.constant 2 : i32
    %163 = vector.broadcast %c2_i32 : i32 to vector<32x16xi32>
    %164 = arith.muli %163, %162 : vector<32x16xi32>
    %165 = arith.cmpi eq, %161, %164 : vector<32x16xi32>
    %cst_52 = arith.constant 1.000000e+00 : f32
    %cst_53 = arith.constant 0.000000e+00 : f32
    %166 = vector.broadcast %cst_52 : f32 to vector<32x16xf32>
    %167 = vector.broadcast %cst_53 : f32 to vector<32x16xf32>
    %168 = arith.select %165, %166, %167 : vector<32x16xi1>, vector<32x16xf32>
    %c2_i32_54 = arith.constant 2 : i32
    %169 = vector.broadcast %c2_i32_54 : i32 to vector<32x16xi32>
    %170 = arith.muli %169, %162 : vector<32x16xi32>
    %c1_i32 = arith.constant 1 : i32
    %171 = vector.broadcast %c1_i32 : i32 to vector<32x16xi32>
    %172 = arith.addi %170, %171 : vector<32x16xi32>
    %173 = arith.cmpi eq, %161, %172 : vector<32x16xi32>
    %cst_55 = arith.constant 1.000000e+00 : f32
    %cst_56 = arith.constant 0.000000e+00 : f32
    %174 = vector.broadcast %cst_55 : f32 to vector<32x16xf32>
    %175 = vector.broadcast %cst_56 : f32 to vector<32x16xf32>
    %176 = arith.select %173, %174, %175 : vector<32x16xi1>, vector<32x16xf32>
    %cst_57 = arith.constant 0.000000e+00 : f32
    %177 = vector.broadcast %cst_57 : f32 to vector<32x16xf32>
    %178 = tpu.concatenate %168, %177 in 1 : vector<32x16xf32>, vector<32x16xf32> -> vector<32x32xf32>
    %179 = tpu.concatenate %177, %168 in 1 : vector<32x16xf32>, vector<32x16xf32> -> vector<32x32xf32>
    %180 = tpu.concatenate %178, %179 in 0 : vector<32x32xf32>, vector<32x32xf32> -> vector<64x32xf32>
    %cst_58 = arith.constant 0.000000e+00 : f32
    %181 = vector.broadcast %cst_58 : f32 to vector<32x16xf32>
    %182 = tpu.concatenate %176, %181 in 1 : vector<32x16xf32>, vector<32x16xf32> -> vector<32x32xf32>
    %183 = tpu.concatenate %181, %176 in 1 : vector<32x16xf32>, vector<32x16xf32> -> vector<32x32xf32>
    %184 = tpu.concatenate %182, %183 in 0 : vector<32x32xf32>, vector<32x32xf32> -> vector<64x32xf32>
    %185 = arith.addf %180, %184 : vector<64x32xf32>
    %186 = vector.extract_strided_slice %160 {offsets = [0, 0], sizes = [32, 64], strides = [1, 1]} : vector<32x128xf32> to vector<32x64xf32>
    %cst_59 = arith.constant dense<0.000000e+00> : vector<64x64xf32>
    %187 = tpu.matmul %180, %186, %cst_59 {dimension_numbers = #tpu.dot_dimension_numbers<[1], [0], [0], [1], [0, 0, 1, 1], [], []>} : vector<64x32xf32>, vector<32x64xf32>, vector<64x64xf32> -> vector<64x64xf32>
    %188 = vector.extract_strided_slice %160 {offsets = [0, 64], sizes = [32, 64], strides = [1, 1]} : vector<32x128xf32> to vector<32x64xf32>
    %cst_60 = arith.constant dense<0.000000e+00> : vector<64x64xf32>
    %189 = tpu.matmul %184, %188, %cst_60 {dimension_numbers = #tpu.dot_dimension_numbers<[1], [0], [0], [1], [0, 0, 1, 1], [], []>} : vector<64x32xf32>, vector<32x64xf32>, vector<64x64xf32> -> vector<64x64xf32>
    %190 = arith.addf %187, %189 : vector<64x64xf32>
    %cst_61 = arith.constant dense<0.000000e+00> : vector<64x64xf32>
    %191 = tpu.matmul %185, %47, %cst_61 {dimension_numbers = #tpu.dot_dimension_numbers<[1], [0], [0], [1], [0, 0, 1, 1], [], []>} : vector<64x32xf32>, vector<32x64xf32>, vector<64x64xf32> -> vector<64x64xf32>
    %192 = vector.extract_strided_slice %190 {offsets = [0, 0], sizes = [64, 32], strides = [1, 1]} : vector<64x64xf32> to vector<64x32xf32>
    %193 = vector.extract_strided_slice %190 {offsets = [0, 32], sizes = [64, 32], strides = [1, 1]} : vector<64x64xf32> to vector<64x32xf32>
    %c1_62 = arith.constant 1 : index
    %c0_63 = arith.constant 0 : index
    %c0_64 = arith.constant 0 : index
    %194 = vector.load %arg1[%c1_62, %c0_63, %c0_64] : memref<4x2x64xf32, #tpu.memory_space<vmem>>, vector<1x2x64xf32>
    %195 = vector.shape_cast %194 : vector<1x2x64xf32> to vector<2x64xf32>
    %196 = vector.extract_strided_slice %192 {offsets = [0, 0], sizes = [32, 32], strides = [1, 1]} : vector<64x32xf32> to vector<32x32xf32>
    %cst_65 = arith.constant dense<0.000000e+00> : vector<32xf32>
    %197 = vector.multi_reduction <add>, %196, %cst_65 [0] : vector<32x32xf32> to vector<32xf32>
    %198 = vector.shape_cast %197 : vector<32xf32> to vector<1x32xf32>
    %cst_66 = arith.constant 3.200000e+01 : f32
    %199 = vector.broadcast %cst_66 : f32 to vector<1x32xf32>
    %200 = arith.divf %198, %199 : vector<1x32xf32>
    %201 = vector.broadcast %200 : vector<1x32xf32> to vector<32x32xf32>
    %202 = arith.subf %196, %201 : vector<32x32xf32>
    %203 = arith.mulf %202, %202 : vector<32x32xf32>
    %cst_67 = arith.constant dense<0.000000e+00> : vector<32xf32>
    %204 = vector.multi_reduction <add>, %203, %cst_67 [0] : vector<32x32xf32> to vector<32xf32>
    %205 = vector.shape_cast %204 : vector<32xf32> to vector<1x32xf32>
    %cst_68 = arith.constant 3.200000e+01 : f32
    %206 = vector.broadcast %cst_68 : f32 to vector<1x32xf32>
    %207 = arith.divf %205, %206 : vector<1x32xf32>
    %cst_69 = arith.constant 9.99999974E-6 : f32
    %208 = vector.broadcast %cst_69 : f32 to vector<1x32xf32>
    %209 = arith.addf %207, %208 : vector<1x32xf32>
    %210 = math.rsqrt %209 : vector<1x32xf32>
    %211 = vector.broadcast %210 : vector<1x32xf32> to vector<32x32xf32>
    %212 = arith.mulf %202, %211 : vector<32x32xf32>
    %213 = vector.extract_strided_slice %192 {offsets = [32, 0], sizes = [32, 32], strides = [1, 1]} : vector<64x32xf32> to vector<32x32xf32>
    %cst_70 = arith.constant dense<0.000000e+00> : vector<32xf32>
    %214 = vector.multi_reduction <add>, %213, %cst_70 [0] : vector<32x32xf32> to vector<32xf32>
    %215 = vector.shape_cast %214 : vector<32xf32> to vector<1x32xf32>
    %cst_71 = arith.constant 3.200000e+01 : f32
    %216 = vector.broadcast %cst_71 : f32 to vector<1x32xf32>
    %217 = arith.divf %215, %216 : vector<1x32xf32>
    %218 = vector.broadcast %217 : vector<1x32xf32> to vector<32x32xf32>
    %219 = arith.subf %213, %218 : vector<32x32xf32>
    %220 = arith.mulf %219, %219 : vector<32x32xf32>
    %cst_72 = arith.constant dense<0.000000e+00> : vector<32xf32>
    %221 = vector.multi_reduction <add>, %220, %cst_72 [0] : vector<32x32xf32> to vector<32xf32>
    %222 = vector.shape_cast %221 : vector<32xf32> to vector<1x32xf32>
    %cst_73 = arith.constant 3.200000e+01 : f32
    %223 = vector.broadcast %cst_73 : f32 to vector<1x32xf32>
    %224 = arith.divf %222, %223 : vector<1x32xf32>
    %cst_74 = arith.constant 9.99999974E-6 : f32
    %225 = vector.broadcast %cst_74 : f32 to vector<1x32xf32>
    %226 = arith.addf %224, %225 : vector<1x32xf32>
    %227 = math.rsqrt %226 : vector<1x32xf32>
    %228 = vector.broadcast %227 : vector<1x32xf32> to vector<32x32xf32>
    %229 = arith.mulf %219, %228 : vector<32x32xf32>
    %230 = tpu.concatenate %212, %229 in 0 : vector<32x32xf32>, vector<32x32xf32> -> vector<64x32xf32>
    %231 = vector.extract_strided_slice %195 {offsets = [0, 0], sizes = [1, 32], strides = [1, 1]} : vector<2x64xf32> to vector<1x32xf32>
    %232 = vector.extract_strided_slice %195 {offsets = [0, 32], sizes = [1, 32], strides = [1, 1]} : vector<2x64xf32> to vector<1x32xf32>
    %233 = vector.extract_strided_slice %230 {offsets = [0, 0], sizes = [32, 32], strides = [1, 1]} : vector<64x32xf32> to vector<32x32xf32>
    %234 = vector.extract_strided_slice %193 {offsets = [0, 0], sizes = [32, 32], strides = [1, 1]} : vector<64x32xf32> to vector<32x32xf32>
    %235 = arith.addf %233, %234 : vector<32x32xf32>
    %236 = vector.broadcast %232 : vector<1x32xf32> to vector<32x32xf32>
    %237 = arith.mulf %235, %236 : vector<32x32xf32>
    %238 = vector.broadcast %231 : vector<1x32xf32> to vector<32x32xf32>
    %239 = arith.addf %237, %238 : vector<32x32xf32>
    %cst_75 = arith.constant 0.000000e+00 : f32
    %240 = vector.broadcast %cst_75 : f32 to vector<32x32xf32>
    %241 = arith.maximumf %239, %240 : vector<32x32xf32>
    %242 = vector.extract_strided_slice %195 {offsets = [1, 0], sizes = [1, 32], strides = [1, 1]} : vector<2x64xf32> to vector<1x32xf32>
    %243 = vector.extract_strided_slice %195 {offsets = [1, 32], sizes = [1, 32], strides = [1, 1]} : vector<2x64xf32> to vector<1x32xf32>
    %244 = vector.extract_strided_slice %230 {offsets = [32, 0], sizes = [32, 32], strides = [1, 1]} : vector<64x32xf32> to vector<32x32xf32>
    %245 = vector.extract_strided_slice %193 {offsets = [32, 0], sizes = [32, 32], strides = [1, 1]} : vector<64x32xf32> to vector<32x32xf32>
    %246 = arith.addf %244, %245 : vector<32x32xf32>
    %247 = vector.broadcast %243 : vector<1x32xf32> to vector<32x32xf32>
    %248 = arith.mulf %246, %247 : vector<32x32xf32>
    %249 = vector.broadcast %242 : vector<1x32xf32> to vector<32x32xf32>
    %250 = arith.addf %248, %249 : vector<32x32xf32>
    %cst_76 = arith.constant 0.000000e+00 : f32
    %251 = vector.broadcast %cst_76 : f32 to vector<32x32xf32>
    %252 = arith.maximumf %250, %251 : vector<32x32xf32>
    %253 = tpu.concatenate %241, %252 in 0 : vector<32x32xf32>, vector<32x32xf32> -> vector<64x32xf32>
    %254 = vector.extract_strided_slice %191 {offsets = [0, 0], sizes = [64, 32], strides = [1, 1]} : vector<64x64xf32> to vector<64x32xf32>
    %255 = arith.addf %253, %254 : vector<64x32xf32>
    %256 = vector.extract_strided_slice %191 {offsets = [0, 32], sizes = [64, 32], strides = [1, 1]} : vector<64x64xf32> to vector<64x32xf32>
    %257 = tpu.concatenate %255, %256 in 1 : vector<64x32xf32>, vector<64x32xf32> -> vector<64x64xf32>
    %c3 = arith.constant 3 : index
    %c0_77 = arith.constant 0 : index
    %258 = vector.load %arg3[%c3, %c0_77] : memref<8x128xf32, #tpu.memory_space<vmem>>, vector<1x64xf32>
    %259 = vector.extract_strided_slice %257 {offsets = [0, 0], sizes = [1, 64], strides = [1, 1]} : vector<64x64xf32> to vector<1x64xf32>
    %260 = vector.extract_strided_slice %257 {offsets = [0, 0], sizes = [63, 64], strides = [1, 1]} : vector<64x64xf32> to vector<63x64xf32>
    %261 = tpu.concatenate %259, %260 in 0 : vector<1x64xf32>, vector<63x64xf32> -> vector<64x64xf32>
    %262 = vector.extract_strided_slice %257 {offsets = [1, 0], sizes = [63, 64], strides = [1, 1]} : vector<64x64xf32> to vector<63x64xf32>
    %263 = vector.extract_strided_slice %257 {offsets = [63, 0], sizes = [1, 64], strides = [1, 1]} : vector<64x64xf32> to vector<1x64xf32>
    %264 = tpu.concatenate %262, %263 in 0 : vector<63x64xf32>, vector<1x64xf32> -> vector<64x64xf32>
    %265 = tpu.iota {dimensions = array<i32: 0>} : vector<32x64xi32>
    %266 = tpu.concatenate %265, %265 in 0 : vector<32x64xi32>, vector<32x64xi32> -> vector<64x64xi32>
    %c0_i32_78 = arith.constant 0 : i32
    %267 = vector.broadcast %c0_i32_78 : i32 to vector<64x64xi32>
    %268 = arith.cmpi eq, %266, %267 : vector<64x64xi32>
    %269 = arith.select %268, %264, %261 : vector<64x64xi1>, vector<64x64xf32>
    %c31_i32 = arith.constant 31 : i32
    %270 = vector.broadcast %c31_i32 : i32 to vector<64x64xi32>
    %271 = arith.cmpi eq, %266, %270 : vector<64x64xi32>
    %272 = arith.select %271, %261, %264 : vector<64x64xi1>, vector<64x64xf32>
    %c0_79 = arith.constant 0 : index
    %c256 = arith.constant 256 : index
    %273 = vector.load %arg2[%c0_79, %c256] : memref<192x512xf32, #tpu.memory_space<vmem>>, vector<64x64xf32>
    %cst_80 = arith.constant dense<0.000000e+00> : vector<64x64xf32>
    %274 = tpu.matmul %269, %273, %cst_80 {dimension_numbers = #tpu.dot_dimension_numbers<[1], [0], [0], [1], [0, 0, 1, 1], [], []>} : vector<64x64xf32>, vector<64x64xf32>, vector<64x64xf32> -> vector<64x64xf32>
    %c64_81 = arith.constant 64 : index
    %c256_82 = arith.constant 256 : index
    %275 = vector.load %arg2[%c64_81, %c256_82] : memref<192x512xf32, #tpu.memory_space<vmem>>, vector<64x64xf32>
    %cst_83 = arith.constant dense<0.000000e+00> : vector<64x64xf32>
    %276 = tpu.matmul %257, %275, %cst_83 {dimension_numbers = #tpu.dot_dimension_numbers<[1], [0], [0], [1], [0, 0, 1, 1], [], []>} : vector<64x64xf32>, vector<64x64xf32>, vector<64x64xf32> -> vector<64x64xf32>
    %277 = arith.addf %274, %276 : vector<64x64xf32>
    %c128_84 = arith.constant 128 : index
    %c256_85 = arith.constant 256 : index
    %278 = vector.load %arg2[%c128_84, %c256_85] : memref<192x512xf32, #tpu.memory_space<vmem>>, vector<64x64xf32>
    %cst_86 = arith.constant dense<0.000000e+00> : vector<64x64xf32>
    %279 = tpu.matmul %272, %278, %cst_86 {dimension_numbers = #tpu.dot_dimension_numbers<[1], [0], [0], [1], [0, 0, 1, 1], [], []>} : vector<64x64xf32>, vector<64x64xf32>, vector<64x64xf32> -> vector<64x64xf32>
    %280 = arith.addf %277, %279 : vector<64x64xf32>
    %281 = vector.broadcast %258 : vector<1x64xf32> to vector<64x64xf32>
    %282 = arith.addf %280, %281 : vector<64x64xf32>
    %283 = vector.extract_strided_slice %282 {offsets = [0, 32], sizes = [64, 32], strides = [1, 1]} : vector<64x64xf32> to vector<64x32xf32>
    %284 = vector.extract_strided_slice %282 {offsets = [0, 0], sizes = [64, 32], strides = [1, 1]} : vector<64x64xf32> to vector<64x32xf32>
    %c2_87 = arith.constant 2 : index
    %c0_88 = arith.constant 0 : index
    %c0_89 = arith.constant 0 : index
    %285 = vector.load %arg1[%c2_87, %c0_88, %c0_89] : memref<4x2x64xf32, #tpu.memory_space<vmem>>, vector<1x2x64xf32>
    %286 = vector.shape_cast %285 : vector<1x2x64xf32> to vector<2x64xf32>
    %287 = vector.extract_strided_slice %284 {offsets = [0, 0], sizes = [32, 32], strides = [1, 1]} : vector<64x32xf32> to vector<32x32xf32>
    %cst_90 = arith.constant dense<0.000000e+00> : vector<32xf32>
    %288 = vector.multi_reduction <add>, %287, %cst_90 [0] : vector<32x32xf32> to vector<32xf32>
    %289 = vector.shape_cast %288 : vector<32xf32> to vector<1x32xf32>
    %cst_91 = arith.constant 3.200000e+01 : f32
    %290 = vector.broadcast %cst_91 : f32 to vector<1x32xf32>
    %291 = arith.divf %289, %290 : vector<1x32xf32>
    %292 = vector.broadcast %291 : vector<1x32xf32> to vector<32x32xf32>
    %293 = arith.subf %287, %292 : vector<32x32xf32>
    %294 = arith.mulf %293, %293 : vector<32x32xf32>
    %cst_92 = arith.constant dense<0.000000e+00> : vector<32xf32>
    %295 = vector.multi_reduction <add>, %294, %cst_92 [0] : vector<32x32xf32> to vector<32xf32>
    %296 = vector.shape_cast %295 : vector<32xf32> to vector<1x32xf32>
    %cst_93 = arith.constant 3.200000e+01 : f32
    %297 = vector.broadcast %cst_93 : f32 to vector<1x32xf32>
    %298 = arith.divf %296, %297 : vector<1x32xf32>
    %cst_94 = arith.constant 9.99999974E-6 : f32
    %299 = vector.broadcast %cst_94 : f32 to vector<1x32xf32>
    %300 = arith.addf %298, %299 : vector<1x32xf32>
    %301 = math.rsqrt %300 : vector<1x32xf32>
    %302 = vector.broadcast %301 : vector<1x32xf32> to vector<32x32xf32>
    %303 = arith.mulf %293, %302 : vector<32x32xf32>
    %304 = vector.extract_strided_slice %284 {offsets = [32, 0], sizes = [32, 32], strides = [1, 1]} : vector<64x32xf32> to vector<32x32xf32>
    %cst_95 = arith.constant dense<0.000000e+00> : vector<32xf32>
    %305 = vector.multi_reduction <add>, %304, %cst_95 [0] : vector<32x32xf32> to vector<32xf32>
    %306 = vector.shape_cast %305 : vector<32xf32> to vector<1x32xf32>
    %cst_96 = arith.constant 3.200000e+01 : f32
    %307 = vector.broadcast %cst_96 : f32 to vector<1x32xf32>
    %308 = arith.divf %306, %307 : vector<1x32xf32>
    %309 = vector.broadcast %308 : vector<1x32xf32> to vector<32x32xf32>
    %310 = arith.subf %304, %309 : vector<32x32xf32>
    %311 = arith.mulf %310, %310 : vector<32x32xf32>
    %cst_97 = arith.constant dense<0.000000e+00> : vector<32xf32>
    %312 = vector.multi_reduction <add>, %311, %cst_97 [0] : vector<32x32xf32> to vector<32xf32>
    %313 = vector.shape_cast %312 : vector<32xf32> to vector<1x32xf32>
    %cst_98 = arith.constant 3.200000e+01 : f32
    %314 = vector.broadcast %cst_98 : f32 to vector<1x32xf32>
    %315 = arith.divf %313, %314 : vector<1x32xf32>
    %cst_99 = arith.constant 9.99999974E-6 : f32
    %316 = vector.broadcast %cst_99 : f32 to vector<1x32xf32>
    %317 = arith.addf %315, %316 : vector<1x32xf32>
    %318 = math.rsqrt %317 : vector<1x32xf32>
    %319 = vector.broadcast %318 : vector<1x32xf32> to vector<32x32xf32>
    %320 = arith.mulf %310, %319 : vector<32x32xf32>
    %321 = tpu.concatenate %303, %320 in 0 : vector<32x32xf32>, vector<32x32xf32> -> vector<64x32xf32>
    %322 = vector.extract_strided_slice %286 {offsets = [0, 0], sizes = [1, 32], strides = [1, 1]} : vector<2x64xf32> to vector<1x32xf32>
    %323 = vector.extract_strided_slice %286 {offsets = [0, 32], sizes = [1, 32], strides = [1, 1]} : vector<2x64xf32> to vector<1x32xf32>
    %324 = vector.extract_strided_slice %321 {offsets = [0, 0], sizes = [32, 32], strides = [1, 1]} : vector<64x32xf32> to vector<32x32xf32>
    %325 = vector.extract_strided_slice %283 {offsets = [0, 0], sizes = [32, 32], strides = [1, 1]} : vector<64x32xf32> to vector<32x32xf32>
    %326 = arith.addf %324, %325 : vector<32x32xf32>
    %327 = vector.broadcast %323 : vector<1x32xf32> to vector<32x32xf32>
    %328 = arith.mulf %326, %327 : vector<32x32xf32>
    %329 = vector.broadcast %322 : vector<1x32xf32> to vector<32x32xf32>
    %330 = arith.addf %328, %329 : vector<32x32xf32>
    %cst_100 = arith.constant 0.000000e+00 : f32
    %331 = vector.broadcast %cst_100 : f32 to vector<32x32xf32>
    %332 = arith.maximumf %330, %331 : vector<32x32xf32>
    %333 = vector.extract_strided_slice %286 {offsets = [1, 0], sizes = [1, 32], strides = [1, 1]} : vector<2x64xf32> to vector<1x32xf32>
    %334 = vector.extract_strided_slice %286 {offsets = [1, 32], sizes = [1, 32], strides = [1, 1]} : vector<2x64xf32> to vector<1x32xf32>
    %335 = vector.extract_strided_slice %321 {offsets = [32, 0], sizes = [32, 32], strides = [1, 1]} : vector<64x32xf32> to vector<32x32xf32>
    %336 = vector.extract_strided_slice %283 {offsets = [32, 0], sizes = [32, 32], strides = [1, 1]} : vector<64x32xf32> to vector<32x32xf32>
    %337 = arith.addf %335, %336 : vector<32x32xf32>
    %338 = vector.broadcast %334 : vector<1x32xf32> to vector<32x32xf32>
    %339 = arith.mulf %337, %338 : vector<32x32xf32>
    %340 = vector.broadcast %333 : vector<1x32xf32> to vector<32x32xf32>
    %341 = arith.addf %339, %340 : vector<32x32xf32>
    %cst_101 = arith.constant 0.000000e+00 : f32
    %342 = vector.broadcast %cst_101 : f32 to vector<32x32xf32>
    %343 = arith.maximumf %341, %342 : vector<32x32xf32>
    %344 = tpu.concatenate %332, %343 in 0 : vector<32x32xf32>, vector<32x32xf32> -> vector<64x32xf32>
    %345 = tpu.concatenate %344, %283 in 1 : vector<64x32xf32>, vector<64x32xf32> -> vector<64x64xf32>
    %c4 = arith.constant 4 : index
    %c0_102 = arith.constant 0 : index
    %346 = vector.load %arg3[%c4, %c0_102] : memref<8x128xf32, #tpu.memory_space<vmem>>, vector<1x64xf32>
    %347 = vector.extract_strided_slice %345 {offsets = [0, 0], sizes = [1, 64], strides = [1, 1]} : vector<64x64xf32> to vector<1x64xf32>
    %348 = vector.extract_strided_slice %345 {offsets = [0, 0], sizes = [63, 64], strides = [1, 1]} : vector<64x64xf32> to vector<63x64xf32>
    %349 = tpu.concatenate %347, %348 in 0 : vector<1x64xf32>, vector<63x64xf32> -> vector<64x64xf32>
    %350 = vector.extract_strided_slice %345 {offsets = [1, 0], sizes = [63, 64], strides = [1, 1]} : vector<64x64xf32> to vector<63x64xf32>
    %351 = vector.extract_strided_slice %345 {offsets = [63, 0], sizes = [1, 64], strides = [1, 1]} : vector<64x64xf32> to vector<1x64xf32>
    %352 = tpu.concatenate %350, %351 in 0 : vector<63x64xf32>, vector<1x64xf32> -> vector<64x64xf32>
    %353 = tpu.iota {dimensions = array<i32: 0>} : vector<32x64xi32>
    %354 = tpu.concatenate %353, %353 in 0 : vector<32x64xi32>, vector<32x64xi32> -> vector<64x64xi32>
    %c0_i32_103 = arith.constant 0 : i32
    %355 = vector.broadcast %c0_i32_103 : i32 to vector<64x64xi32>
    %356 = arith.cmpi eq, %354, %355 : vector<64x64xi32>
    %357 = arith.select %356, %352, %349 : vector<64x64xi1>, vector<64x64xf32>
    %c31_i32_104 = arith.constant 31 : i32
    %358 = vector.broadcast %c31_i32_104 : i32 to vector<64x64xi32>
    %359 = arith.cmpi eq, %354, %358 : vector<64x64xi32>
    %360 = arith.select %359, %349, %352 : vector<64x64xi1>, vector<64x64xf32>
    %c0_105 = arith.constant 0 : index
    %c320 = arith.constant 320 : index
    %361 = vector.load %arg2[%c0_105, %c320] : memref<192x512xf32, #tpu.memory_space<vmem>>, vector<64x64xf32>
    %cst_106 = arith.constant dense<0.000000e+00> : vector<64x64xf32>
    %362 = tpu.matmul %357, %361, %cst_106 {dimension_numbers = #tpu.dot_dimension_numbers<[1], [0], [0], [1], [0, 0, 1, 1], [], []>} : vector<64x64xf32>, vector<64x64xf32>, vector<64x64xf32> -> vector<64x64xf32>
    %c64_107 = arith.constant 64 : index
    %c320_108 = arith.constant 320 : index
    %363 = vector.load %arg2[%c64_107, %c320_108] : memref<192x512xf32, #tpu.memory_space<vmem>>, vector<64x64xf32>
    %cst_109 = arith.constant dense<0.000000e+00> : vector<64x64xf32>
    %364 = tpu.matmul %345, %363, %cst_109 {dimension_numbers = #tpu.dot_dimension_numbers<[1], [0], [0], [1], [0, 0, 1, 1], [], []>} : vector<64x64xf32>, vector<64x64xf32>, vector<64x64xf32> -> vector<64x64xf32>
    %365 = arith.addf %362, %364 : vector<64x64xf32>
    %c128_110 = arith.constant 128 : index
    %c320_111 = arith.constant 320 : index
    %366 = vector.load %arg2[%c128_110, %c320_111] : memref<192x512xf32, #tpu.memory_space<vmem>>, vector<64x64xf32>
    %cst_112 = arith.constant dense<0.000000e+00> : vector<64x64xf32>
    %367 = tpu.matmul %360, %366, %cst_112 {dimension_numbers = #tpu.dot_dimension_numbers<[1], [0], [0], [1], [0, 0, 1, 1], [], []>} : vector<64x64xf32>, vector<64x64xf32>, vector<64x64xf32> -> vector<64x64xf32>
    %368 = arith.addf %365, %367 : vector<64x64xf32>
    %369 = vector.broadcast %346 : vector<1x64xf32> to vector<64x64xf32>
    %370 = arith.addf %368, %369 : vector<64x64xf32>
    %371 = vector.extract_strided_slice %370 {offsets = [0, 0], sizes = [64, 32], strides = [1, 1]} : vector<64x64xf32> to vector<64x32xf32>
    %372 = vector.extract_strided_slice %370 {offsets = [0, 32], sizes = [64, 32], strides = [1, 1]} : vector<64x64xf32> to vector<64x32xf32>
    %c3_113 = arith.constant 3 : index
    %c0_114 = arith.constant 0 : index
    %c0_115 = arith.constant 0 : index
    %373 = vector.load %arg1[%c3_113, %c0_114, %c0_115] : memref<4x2x64xf32, #tpu.memory_space<vmem>>, vector<1x2x64xf32>
    %374 = vector.shape_cast %373 : vector<1x2x64xf32> to vector<2x64xf32>
    %375 = vector.extract_strided_slice %371 {offsets = [0, 0], sizes = [32, 32], strides = [1, 1]} : vector<64x32xf32> to vector<32x32xf32>
    %cst_116 = arith.constant dense<0.000000e+00> : vector<32xf32>
    %376 = vector.multi_reduction <add>, %375, %cst_116 [0] : vector<32x32xf32> to vector<32xf32>
    %377 = vector.shape_cast %376 : vector<32xf32> to vector<1x32xf32>
    %cst_117 = arith.constant 3.200000e+01 : f32
    %378 = vector.broadcast %cst_117 : f32 to vector<1x32xf32>
    %379 = arith.divf %377, %378 : vector<1x32xf32>
    %380 = vector.broadcast %379 : vector<1x32xf32> to vector<32x32xf32>
    %381 = arith.subf %375, %380 : vector<32x32xf32>
    %382 = arith.mulf %381, %381 : vector<32x32xf32>
    %cst_118 = arith.constant dense<0.000000e+00> : vector<32xf32>
    %383 = vector.multi_reduction <add>, %382, %cst_118 [0] : vector<32x32xf32> to vector<32xf32>
    %384 = vector.shape_cast %383 : vector<32xf32> to vector<1x32xf32>
    %cst_119 = arith.constant 3.200000e+01 : f32
    %385 = vector.broadcast %cst_119 : f32 to vector<1x32xf32>
    %386 = arith.divf %384, %385 : vector<1x32xf32>
    %cst_120 = arith.constant 9.99999974E-6 : f32
    %387 = vector.broadcast %cst_120 : f32 to vector<1x32xf32>
    %388 = arith.addf %386, %387 : vector<1x32xf32>
    %389 = math.rsqrt %388 : vector<1x32xf32>
    %390 = vector.broadcast %389 : vector<1x32xf32> to vector<32x32xf32>
    %391 = arith.mulf %381, %390 : vector<32x32xf32>
    %392 = vector.extract_strided_slice %371 {offsets = [32, 0], sizes = [32, 32], strides = [1, 1]} : vector<64x32xf32> to vector<32x32xf32>
    %cst_121 = arith.constant dense<0.000000e+00> : vector<32xf32>
    %393 = vector.multi_reduction <add>, %392, %cst_121 [0] : vector<32x32xf32> to vector<32xf32>
    %394 = vector.shape_cast %393 : vector<32xf32> to vector<1x32xf32>
    %cst_122 = arith.constant 3.200000e+01 : f32
    %395 = vector.broadcast %cst_122 : f32 to vector<1x32xf32>
    %396 = arith.divf %394, %395 : vector<1x32xf32>
    %397 = vector.broadcast %396 : vector<1x32xf32> to vector<32x32xf32>
    %398 = arith.subf %392, %397 : vector<32x32xf32>
    %399 = arith.mulf %398, %398 : vector<32x32xf32>
    %cst_123 = arith.constant dense<0.000000e+00> : vector<32xf32>
    %400 = vector.multi_reduction <add>, %399, %cst_123 [0] : vector<32x32xf32> to vector<32xf32>
    %401 = vector.shape_cast %400 : vector<32xf32> to vector<1x32xf32>
    %cst_124 = arith.constant 3.200000e+01 : f32
    %402 = vector.broadcast %cst_124 : f32 to vector<1x32xf32>
    %403 = arith.divf %401, %402 : vector<1x32xf32>
    %cst_125 = arith.constant 9.99999974E-6 : f32
    %404 = vector.broadcast %cst_125 : f32 to vector<1x32xf32>
    %405 = arith.addf %403, %404 : vector<1x32xf32>
    %406 = math.rsqrt %405 : vector<1x32xf32>
    %407 = vector.broadcast %406 : vector<1x32xf32> to vector<32x32xf32>
    %408 = arith.mulf %398, %407 : vector<32x32xf32>
    %409 = tpu.concatenate %391, %408 in 0 : vector<32x32xf32>, vector<32x32xf32> -> vector<64x32xf32>
    %410 = vector.extract_strided_slice %374 {offsets = [0, 0], sizes = [1, 32], strides = [1, 1]} : vector<2x64xf32> to vector<1x32xf32>
    %411 = vector.extract_strided_slice %374 {offsets = [0, 32], sizes = [1, 32], strides = [1, 1]} : vector<2x64xf32> to vector<1x32xf32>
    %412 = vector.extract_strided_slice %409 {offsets = [0, 0], sizes = [32, 32], strides = [1, 1]} : vector<64x32xf32> to vector<32x32xf32>
    %413 = vector.extract_strided_slice %372 {offsets = [0, 0], sizes = [32, 32], strides = [1, 1]} : vector<64x32xf32> to vector<32x32xf32>
    %414 = arith.addf %412, %413 : vector<32x32xf32>
    %415 = vector.broadcast %411 : vector<1x32xf32> to vector<32x32xf32>
    %416 = arith.mulf %414, %415 : vector<32x32xf32>
    %417 = vector.broadcast %410 : vector<1x32xf32> to vector<32x32xf32>
    %418 = arith.addf %416, %417 : vector<32x32xf32>
    %cst_126 = arith.constant 0.000000e+00 : f32
    %419 = vector.broadcast %cst_126 : f32 to vector<32x32xf32>
    %420 = arith.maximumf %418, %419 : vector<32x32xf32>
    %421 = vector.extract_strided_slice %374 {offsets = [1, 0], sizes = [1, 32], strides = [1, 1]} : vector<2x64xf32> to vector<1x32xf32>
    %422 = vector.extract_strided_slice %374 {offsets = [1, 32], sizes = [1, 32], strides = [1, 1]} : vector<2x64xf32> to vector<1x32xf32>
    %423 = vector.extract_strided_slice %409 {offsets = [32, 0], sizes = [32, 32], strides = [1, 1]} : vector<64x32xf32> to vector<32x32xf32>
    %424 = vector.extract_strided_slice %372 {offsets = [32, 0], sizes = [32, 32], strides = [1, 1]} : vector<64x32xf32> to vector<32x32xf32>
    %425 = arith.addf %423, %424 : vector<32x32xf32>
    %426 = vector.broadcast %422 : vector<1x32xf32> to vector<32x32xf32>
    %427 = arith.mulf %425, %426 : vector<32x32xf32>
    %428 = vector.broadcast %421 : vector<1x32xf32> to vector<32x32xf32>
    %429 = arith.addf %427, %428 : vector<32x32xf32>
    %cst_127 = arith.constant 0.000000e+00 : f32
    %430 = vector.broadcast %cst_127 : f32 to vector<32x32xf32>
    %431 = arith.maximumf %429, %430 : vector<32x32xf32>
    %432 = tpu.concatenate %420, %431 in 0 : vector<32x32xf32>, vector<32x32xf32> -> vector<64x32xf32>
    %433 = vector.extract_strided_slice %257 {offsets = [0, 0], sizes = [64, 32], strides = [1, 1]} : vector<64x64xf32> to vector<64x32xf32>
    %434 = arith.addf %432, %433 : vector<64x32xf32>
    %c0_128 = arith.constant 0 : index
    %c384 = arith.constant 384 : index
    %435 = vector.load %arg2[%c0_128, %c384] : memref<192x512xf32, #tpu.memory_space<vmem>>, vector<32x128xf32>
    %cst_129 = arith.constant dense<0.000000e+00> : vector<64x128xf32>
    %436 = tpu.matmul %434, %435, %cst_129 {dimension_numbers = #tpu.dot_dimension_numbers<[1], [0], [0], [1], [0, 0, 1, 1], [], []>} : vector<64x32xf32>, vector<32x128xf32>, vector<64x128xf32> -> vector<64x128xf32>
    %c5 = arith.constant 5 : index
    %c0_130 = arith.constant 0 : index
    %437 = vector.load %arg3[%c5, %c0_130] : memref<8x128xf32, #tpu.memory_space<vmem>>, vector<1x128xf32>
    %438 = vector.broadcast %437 : vector<1x128xf32> to vector<64x128xf32>
    %439 = arith.addf %436, %438 : vector<64x128xf32>
    %c0_131 = arith.constant 0 : index
    %c0_132 = arith.constant 0 : index
    %440 = vector.load %arg4[%c0_131, %c0_132] : memref<64x128xf32, #tpu.memory_space<vmem>>, vector<64x128xf32>
    tpu.vector_store %arg4[%c0_131, %c0_132], %439 {strides = array<i32>} : memref<64x128xf32, #tpu.memory_space<vmem>>, vector<64x128xf32>,
    return
  }
}

</mosaic_0001>

<llo_original>
// kernel: decoder_forward.1
$region0: #{decoder_forward.1}
  #allocation0 [shape = 'u32[]', space=smem, size = 0x4, offset = 0x4, fixed_abs, tag = 'smem constant byte address 0x4 - core index']
  #allocation1 [shape = 'u32[144,128]{1,0:T(1,128)}', space=vmem, size = 0x12000, scoped, tag = 'internal scratch']
  %s0 = inlined_call_operand.vmem [shape: f32[32,192], index: 0, kind: input, shape index: {}]
  %s1 = inlined_call_operand.vmem [shape: f32[4,2,64], index: 1, kind: input, shape index: {}]
  %s2 = inlined_call_operand.hbm [shape: f32[192,512], index: 2, kind: input, shape index: {}]
  %s3 = inlined_call_operand.vmem [shape: f32[8,128], index: 3, kind: input, shape index: {}]
  %s4 = inlined_call_operand.vmem [shape: f32[64,128], index: 4, kind: output, shape index: {}]
  %s5 = sld [smem:[#allocation0]]
  $region30: #{decoder_forward.1} parent=0
    _
  %s7 = ssub.s32 1, %s5
  %s8 = scalar_select 0, %s7, %s5
  $region1: #{decoder_forward.1} parent=0
    #allocation2 [shape = 'u8[393216]{0}', space=vmem, size = 0x60000, scoped, tag = 'input window, operand 2, single buffered']
    #allocation3 [shape = 's32[1]{0}', space=sflag, size = 0x4, scoped, tag = 'scoped memory for decoder_forward.1']
    %9 = vsyncpa [#allocation3], 0
    // Predicated region
    $region2: #{decoder_forward.1} parent=1 // pred_check
      _
    $region3: #{decoder_forward.1} parent=1 // pred_check_branch
      %11 = sbr.rel (0) target = $region5
    $region4: #{decoder_forward.1} parent=1 // pred_region
      _
    $region5: #{decoder_forward.1} parent=1 // pred_fallthru
      _
    // Predicated region
    $region6: #{decoder_forward.1} parent=1 // pred_check
      _
    $region7: #{decoder_forward.1} parent=1 // pred_check_branch
      %13 = sbr.rel (0) target = $region9
    $region8: #{decoder_forward.1} parent=1 // pred_region
      _
    $region9: #{decoder_forward.1} parent=1 // pred_fallthru
      _
    // Predicated region
    $region10: #{decoder_forward.1} parent=1 // pred_check
      _
    $region11: #{decoder_forward.1} parent=1 // pred_check_branch
      %15 = sbr.rel (0) target = $region13
    $region12: #{decoder_forward.1} parent=1 // pred_region
      %s17 = ssub.s32 12288, 12288
      %18 = vsyncadd [#allocation3], %s17
      %s19 = sshll.u32 [#allocation2], 4
      %s20 = int_to_ptr.vmem [resolvable:$true] %s19
      %25 = dma.hbm_to_vmem [thread:$0]  %s2, 12288, %s20, [#allocation3], 512, 512, 32
    $region13: #{decoder_forward.1} parent=1 // pred_fallthru
      _
    // Predicated region
    $region14: #{decoder_forward.1} parent=1 // pred_check
      _
    $region15: #{decoder_forward.1} parent=1 // pred_check_branch
      %27 = sbr.rel (0) target = $region17
    $region16: #{decoder_forward.1} parent=1 // pred_region
      _
    $region17: #{decoder_forward.1} parent=1 // pred_fallthru
      _
    // Predicated region
    $region18: #{decoder_forward.1} parent=1 // pred_check
      _
    $region19: #{decoder_forward.1} parent=1 // pred_check_branch
      %29 = sbr.rel (0) target = $region21
    $region20: #{decoder_forward.1} parent=1 // pred_region
      %30 = dma.done [#allocation3], 12288
    $region21: #{decoder_forward.1} parent=1 // pred_fallthru
      _
    %v31 = vld [vmem:[%s0] sm:$0xff]
    %v32 = vld [vmem:[%s0 + $0x8] sm:$0xff]
    %v33 = vld [vmem:[%s0 + $0x10] sm:$0xff]
    %v34 = vld [vmem:[%s0 + $0x18] sm:$0xff]
    %v35 = vld [vmem:[%s0 + $0x20] sm:$0xff]
    %v36 = vld [vmem:[%s0 + $0x28] sm:$0xff]
    %v37 = vld [vmem:[%s0 + $0x30] sm:$0xff]
    %v38 = vld [vmem:[%s0 + $0x38] sm:$0xff]
    %v39 = vld [vmem:[#allocation2] sm:$0xff]
    %v40 = vld [vmem:[#allocation2 + $0x20] sm:$0xff]
    %v41 = vld [vmem:[#allocation2 + $0x40] sm:$0xff]
    %v42 = vld [vmem:[#allocation2 + $0x60] sm:$0xff]
    %v43 = vld [vmem:[#allocation2 + $0x80] sm:$0xff]
    %v44 = vld [vmem:[#allocation2 + $0xa0] sm:$0xff]
    %v45 = vld [vmem:[#allocation2 + $0xc0] sm:$0xff]
    %v46 = vld [vmem:[#allocation2 + $0xe0] sm:$0xff]
    %v47 = vld [vmem:[#allocation2 + $0x100] sm:$0xff]
    %v48 = vld [vmem:[#allocation2 + $0x120] sm:$0xff]
    %v49 = vld [vmem:[#allocation2 + $0x140] sm:$0xff]
    %v50 = vld [vmem:[#allocation2 + $0x160] sm:$0xff]
    %v51 = vld [vmem:[#allocation2 + $0x180] sm:$0xff]
    %v52 = vld [vmem:[#allocation2 + $0x1a0] sm:$0xff]
    %v53 = vld [vmem:[#allocation2 + $0x1c0] sm:$0xff]
    %v54 = vld [vmem:[#allocation2 + $0x1e0] sm:$0xff]
    %v55 = vld [vmem:[#allocation2 + $0x200] sm:$0xff]
    %v56 = vld [vmem:[#allocation2 + $0x220] sm:$0xff]
    %v57 = vld [vmem:[#allocation2 + $0x240] sm:$0xff]
    %v58 = vld [vmem:[#allocation2 + $0x260] sm:$0xff]
    %v59 = vld [vmem:[#allocation2 + $0x280] sm:$0xff]
    %v60 = vld [vmem:[#allocation2 + $0x2a0] sm:$0xff]
    %v61 = vld [vmem:[#allocation2 + $0x2c0] sm:$0xff]
    %v62 = vld [vmem:[#allocation2 + $0x2e0] sm:$0xff]
    %v63 = vld [vmem:[%s3] sm:$0x1]
    %v64 = vlaneseq
    %v65 = vshrl.u32 %v64, 7
    %v66 = vsub.s32 0, %v65
    %v67 = vrot.slane %v63, %v66
    %vm68 = vcmask 523264
    %v70 = vsel %vm68, %v32, 0
    %v73 = vsel %vm68, %v34, 0
    %v76 = vsel %vm68, %v36, 0
    %v79 = vsel %vm68, %v38, 0
    %81 = vmatprep.subr.mxu0 0.0
    %82 = vmatpush1.msra.mxu0 %v39
    %83 = vmatprep.subr.mxu0 0.0
    %84 = vmatpush1.msra.mxu0 %v40
    %85 = vmatprep.subr.mxu0 0.0
    %86 = vmatpush1.msra.mxu0 %v41
    %87 = vmatprep.subr.mxu0 0.0
    %88 = vmatpush1.msra.mxu0 %v42
    %89 = vmatprep.subr.mxu0 0.0
    %90 = vmatpush1.msra.mxu0 %v43
    %91 = vmatprep.subr.mxu0 0.0
    %92 = vmatpush1.msra.mxu0 %v44
    %93 = vmatprep.subr.mxu0 0.0
    %94 = vmatpush1.msra.mxu0 %v45
    %95 = vmatprep.subr.mxu0 0.0
    %96 = vmatpush1.msra.mxu0 %v46
    %97 = vmatprep.subr.mxu0 0.0
    %98 = vmatpush1.msra.mxu0 %v47
    %99 = vmatprep.subr.mxu0 0.0
    %100 = vmatpush1.msra.mxu0 %v48
    %101 = vmatprep.subr.mxu0 0.0
    %102 = vmatpush1.msra.mxu0 %v49
    %103 = vmatprep.subr.mxu0 0.0
    %104 = vmatpush1.msra.mxu0 %v50
    %105 = vmatprep.subr.mxu0 0.0
    %106 = vmatpush1.msra.mxu0 %v51
    %107 = vmatprep.subr.mxu0 0.0
    %108 = vmatpush1.msra.mxu0 %v52
    %109 = vmatprep.subr.mxu0 0.0
    %110 = vmatpush1.msra.mxu0 %v53
    %111 = vmatprep.subr.mxu0 0.0
    %112 = vmatpush1.msra.mxu0 %v54
    %113 = vmatprep.subr.mxu0 0.0
    %114 = vmatpush1.msra.mxu0 %v55
    %115 = vmatprep.subr.mxu0 0.0
    %116 = vmatpush1.msra.mxu0 %v56
    %117 = vmatprep.subr.mxu0 0.0
    %118 = vmatpush1.msra.mxu0 %v57
    %119 = vmatprep.subr.mxu0 0.0
    %120 = vmatpush1.msra.mxu0 %v58
    %121 = vmatprep.subr.mxu0 0.0
    %122 = vmatpush1.msra.mxu0 %v59
    %123 = vmatprep.subr.mxu0 0.0
    %124 = vmatpush1.msra.mxu0 %v60
    %125 = vmatprep.subr.mxu0 0.0
    %126 = vmatpush1.msra.mxu0 %v61
    %127 = vmatprep.subr.mxu0 0.0
    %128 = vmatpush1.msra.mxu0 %v62
    %129 = vmatprep.subr.mxu0 0.0
    %130 = vmatpush1.msra.mxu0 0.0
    %131 = vmatprep.subr.mxu0 0.0
    %132 = vmatpush1.msra.mxu0 0.0
    %133 = vmatprep.subr.mxu0 0.0
    %134 = vmatpush1.msra.mxu0 0.0
    %135 = vmatprep.subr.mxu0 0.0
    %136 = vmatpush1.msra.mxu0 0.0
    %137 = vmatprep.subr.mxu0 0.0
    %138 = vmatpush1.msra.mxu0 0.0
    %139 = vmatprep.subr.mxu0 0.0
    %140 = vmatpush1.msra.mxu0 0.0
    %141 = vmatprep.subr.mxu0 0.0
    %142 = vmatpush1.msra.mxu0 0.0
    %143 = vmatprep.subr.mxu0 0.0
    %144 = vmatpush1.msra.mxu0 0.0
    %145 = vmatprep.mubr.f32.mxu0 %v70
    %146 = vmatmul.mubr.f32.gmra.mrb[0].mxu0 %v31
    %v147 = vpop.f32.mrb[0].mxu0
    %v148 = vadd.f32 %v67, %v147
    %v149 = vpop.f32.mrb[0].mxu0
    %150 = vmatprep.mubr.f32.mxu0 %v73
    %151 = vmatmul.mubr.f32.gmra.mrb[0].mxu0 %v33
    %v152 = vpop.f32.mrb[0].mxu0
    %v153 = vadd.f32 %v67, %v152
    %v154 = vpop.f32.mrb[0].mxu0
    %155 = vmatprep.mubr.f32.mxu0 %v76
    %156 = vmatmul.mubr.f32.gmra.mrb[0].mxu0 %v35
    %v157 = vpop.f32.mrb[0].mxu0
    %v158 = vadd.f32 %v67, %v157
    %v159 = vpop.f32.mrb[0].mxu0
    %160 = vmatprep.mubr.f32.mxu0 %v79
    %161 = vmatmul.mubr.f32.gmra.mrb[0].mxu0 %v37
    %v162 = vpop.f32.mrb[0].mxu0
    %v163 = vadd.f32 %v67, %v162
    %v164 = vpop.f32.mrb[0].mxu0
    %165 = vdwg.mxu0
    %vm166 = vcmask 261120
    %v167 = vsel %vm166, %v148, 0.0
    %v168 = vsel %vm166, %v153, 0.0
    %v169 = vadd.f32 %v167, %v168
    %v170 = vrot.slane %v169, 4
    %v171 = vadd.f32 %v169, %v170
    %v172 = vrot.slane %v171, 2
    %v173 = vadd.f32 %v171, %v172
    %v174 = vrot.slane %v173, 1
    %v175 = vadd.f32 %v173, %v174
    %v176 = vrcp.pop 16.0
    %v177 = vmul.f32 %v175, %v176
    %v178 = vsub.f32 %v148, %v177
    %v179 = vsub.f32 %v153, %v177
    %v180 = vmul.f32 %v178, %v178
    %v181 = vmul.f32 %v179, %v179
    %v182 = vsel %vm166, %v180, 0.0
    %v183 = vsel %vm166, %v181, 0.0
    %v184 = vadd.f32 %v182, %v183
    %v185 = vrot.slane %v184, 4
    %v186 = vadd.f32 %v184, %v185
    %v187 = vrot.slane %v186, 2
    %v188 = vadd.f32 %v186, %v187
    %v189 = vrot.slane %v188, 1
    %v190 = vadd.f32 %v188, %v189
    %v191 = vmul.f32 %v190, %v176
    %v192 = vadd.f32 %v191, 1e-05
    %v193 = vrsqrt.pop %v192
    %v194 = vmul.f32 %v178, %v193
    %v195 = vmul.f32 %v179, %v193
    %v196 = vsel %vm166, %v158, 0.0
    %v197 = vsel %vm166, %v163, 0.0
    %v198 = vadd.f32 %v196, %v197
    %v199 = vrot.slane %v198, 4
    %v200 = vadd.f32 %v198, %v199
    %v201 = vrot.slane %v200, 2
    %v202 = vadd.f32 %v200, %v201
    %v203 = vrot.slane %v202, 1
    %v204 = vadd.f32 %v202, %v203
    %v205 = vmul.f32 %v204, %v176
    %v206 = vsub.f32 %v158, %v205
    %v207 = vsub.f32 %v163, %v205
    %v208 = vmul.f32 %v206, %v206
    %v209 = vmul.f32 %v207, %v207
    %v210 = vsel %vm166, %v208, 0.0
    %v211 = vsel %vm166, %v209, 0.0
    %v212 = vadd.f32 %v210, %v211
    %v213 = vrot.slane %v212, 4
    %v214 = vadd.f32 %v212, %v213
    %v215 = vrot.slane %v214, 2
    %v216 = vadd.f32 %v214, %v215
    %v217 = vrot.slane %v216, 1
    %v218 = vadd.f32 %v216, %v217
    %v219 = vmul.f32 %v218, %v176
    %v220 = vadd.f32 %v219, 1e-05
    %v221 = vrsqrt.pop %v220
    %v222 = vmul.f32 %v206, %v221
    %v223 = vmul.f32 %v207, %v221
    %v224 = vmax.f32 %v194, 0.0
    %v225 = vmax.f32 %v195, 0.0
    %v226 = vmax.f32 %v222, 0.0
    %v227 = vmax.f32 %v223, 0.0
    %v228 = vmax.f32 %v148, 0.0
    %v229 = vmax.f32 %v153, 0.0
    %v230 = vmax.f32 %v158, 0.0
    %v231 = vmax.f32 %v163, 0.0
    %v232 = vsel %vm166, %v224, %v228
    %v233 = vsel %vm166, %v225, %v229
    %v234 = vsel %vm166, %v226, %v230
    %v235 = vsel %vm166, %v227, %v231
    %v236 = vld [vmem:[%s3 + $0x1] sm:$0x1]
    %vm241 = vcmask 1040384
    %v242 = vrot.slane %v232, 7
    %v243 = vrot.slane %v233, 7
    %v244 = vsel %vm241, %v242, %v243
    %v245 = vrot.slane %v234, 7
    %v246 = vsel %vm241, %v243, %v245
    %v247 = vrot.slane %v235, 7
    %v248 = vsel %vm241, %v245, %v247
    %v253 = vsel %vm241, %v232, %v242
    %vm254 = vcmask 1046528
    %v255 = vrot.slane %v232, 1
    %v256 = vrot.slane %v233, 1
    %v257 = vsel %vm254, %v255, %v256
    %v258 = vrot.slane %v234, 1
    %v259 = vsel %vm254, %v256, %v258
    %v260 = vrot.slane %v235, 1
    %v261 = vsel %vm254, %v258, %v260
    %v266 = vsel %vm254, %v260, %v235
    %v267 = vlaneseq
    %v268 = vshrl.u32 %v267, 7
    %v269 = vadd.s32 %v268, 8
    %vm270 = vcmp.eq.s32.totalorder %v268, 0
    %vm271 = vcmp.eq.s32.totalorder %v269, 0
    %v272 = vsel %vm270, %v257, %v253
    %v273 = vsel %vm271, %v259, %v244
    %v274 = vsel %vm270, %v261, %v246
    %v275 = vsel %vm271, %v266, %v248
    %vm276 = vcmp.eq.s32.totalorder %v268, 15
    %vm277 = vcmp.eq.s32.totalorder %v269, 15
    %v278 = vsel %vm276, %v253, %v257
    %v279 = vsel %vm277, %v244, %v259
    %v280 = vsel %vm276, %v246, %v261
    %v281 = vsel %vm277, %v248, %v266
    %v282 = vld [vmem:[#allocation2] sm:$0xff]
    %v283 = vld [vmem:[#allocation2 + $0x20] sm:$0xff]
    %v284 = vld [vmem:[#allocation2 + $0x40] sm:$0xff]
    %v285 = vld [vmem:[#allocation2 + $0x60] sm:$0xff]
    %v286 = vld [vmem:[#allocation2 + $0x80] sm:$0xff]
    %v287 = vld [vmem:[#allocation2 + $0xa0] sm:$0xff]
    %v288 = vld [vmem:[#allocation2 + $0xc0] sm:$0xff]
    %v289 = vld [vmem:[#allocation2 + $0xe0] sm:$0xff]
    %v290 = vld [vmem:[#allocation2 + $0x100] sm:$0xff]
    %v291 = vld [vmem:[#allocation2 + $0x120] sm:$0xff]
    %v292 = vld [vmem:[#allocation2 + $0x140] sm:$0xff]
    %v293 = vld [vmem:[#allocation2 + $0x160] sm:$0xff]
    %v294 = vld [vmem:[#allocation2 + $0x180] sm:$0xff]
    %v295 = vld [vmem:[#allocation2 + $0x1a0] sm:$0xff]
    %v296 = vld [vmem:[#allocation2 + $0x1c0] sm:$0xff]
    %v297 = vld [vmem:[#allocation2 + $0x1e0] sm:$0xff]
    %306 = vrot.lane.b32.xlu0 %v290, 64
    %v307 = vpop.permute.xlu0 %306
    %308 = vrot.lane.b32.xlu0 %v291, 64
    %v309 = vpop.permute.xlu0 %308
    %310 = vrot.lane.b32.xlu0 %v292, 64
    %v311 = vpop.permute.xlu0 %310
    %312 = vrot.lane.b32.xlu0 %v293, 64
    %v313 = vpop.permute.xlu0 %312
    %314 = vrot.lane.b32.xlu0 %v294, 64
    %v315 = vpop.permute.xlu0 %314
    %316 = vrot.lane.b32.xlu0 %v295, 64
    %v317 = vpop.permute.xlu0 %316
    %318 = vrot.lane.b32.xlu0 %v296, 64
    %v319 = vpop.permute.xlu0 %318
    %320 = vrot.lane.b32.xlu0 %v297, 64
    %v321 = vpop.permute.xlu0 %320
    %v330 = vsel %vm68, %v232, 0
    %v332 = vsel %vm68, %v233, 0
    %v334 = vsel %vm68, %v234, 0
    %v336 = vsel %vm68, %v235, 0
    %338 = vmatprep.subr.mxu0 0.0
    %339 = vmatpush1.msra.mxu0 %v307
    %340 = vmatprep.subr.mxu0 0.0
    %341 = vmatpush1.msra.mxu0 %v309
    %342 = vmatprep.subr.mxu0 0.0
    %343 = vmatpush1.msra.mxu0 %v311
    %344 = vmatprep.subr.mxu0 0.0
    %345 = vmatpush1.msra.mxu0 %v313
    %346 = vmatprep.subr.mxu0 0.0
    %347 = vmatpush1.msra.mxu0 %v315
    %348 = vmatprep.subr.mxu0 0.0
    %349 = vmatpush1.msra.mxu0 %v317
    %350 = vmatprep.subr.mxu0 0.0
    %351 = vmatpush1.msra.mxu0 %v319
    %352 = vmatprep.subr.mxu0 0.0
    %353 = vmatpush1.msra.mxu0 %v321
    %354 = vmatprep.subr.mxu0 0.0
    %355 = vmatpush1.msra.mxu0 0.0
    %356 = vmatprep.subr.mxu0 0.0
    %357 = vmatpush1.msra.mxu0 0.0
    %358 = vmatprep.subr.mxu0 0.0
    %359 = vmatpush1.msra.mxu0 0.0
    %360 = vmatprep.subr.mxu0 0.0
    %361 = vmatpush1.msra.mxu0 0.0
    %362 = vmatprep.subr.mxu0 0.0
    %363 = vmatpush1.msra.mxu0 0.0
    %364 = vmatprep.subr.mxu0 0.0
    %365 = vmatpush1.msra.mxu0 0.0
    %366 = vmatprep.subr.mxu0 0.0
    %367 = vmatpush1.msra.mxu0 0.0
    %368 = vmatprep.subr.mxu0 0.0
    %369 = vmatpush1.msra.mxu0 0.0
    %370 = vmatprep.subr.mxu0 0.0
    %371 = vmatpush1.msra.mxu0 0.0
    %372 = vmatprep.subr.mxu0 0.0
    %373 = vmatpush1.msra.mxu0 0.0
    %374 = vmatprep.subr.mxu0 0.0
    %375 = vmatpush1.msra.mxu0 0.0
    %376 = vmatprep.subr.mxu0 0.0
    %377 = vmatpush1.msra.mxu0 0.0
    %378 = vmatprep.subr.mxu0 0.0
    %379 = vmatpush1.msra.mxu0 0.0
    %380 = vmatprep.subr.mxu0 0.0
    %381 = vmatpush1.msra.mxu0 0.0
    %382 = vmatprep.subr.mxu0 0.0
    %383 = vmatpush1.msra.mxu0 0.0
    %384 = vmatprep.subr.mxu0 0.0
    %385 = vmatpush1.msra.mxu0 0.0
    %386 = vmatprep.subr.mxu0 0.0
    %387 = vmatpush1.msra.mxu0 0.0
    %388 = vmatprep.subr.mxu0 0.0
    %389 = vmatpush1.msra.mxu0 0.0
    %390 = vmatprep.subr.mxu0 0.0
    %391 = vmatpush1.msra.mxu0 0.0
    %392 = vmatprep.subr.mxu0 0.0
    %393 = vmatpush1.msra.mxu0 0.0
    %394 = vmatprep.subr.mxu0 0.0
    %395 = vmatpush1.msra.mxu0 0.0
    %396 = vmatprep.subr.mxu0 0.0
    %397 = vmatpush1.msra.mxu0 0.0
    %398 = vmatprep.subr.mxu0 0.0
    %399 = vmatpush1.msra.mxu0 0.0
    %400 = vmatprep.subr.mxu0 0.0
    %401 = vmatpush1.msra.mxu0 0.0
    %402 = vmatprep.mubr.f32.mxu0 0.0
    %403 = vmatmul.mubr.f32.gmra.mrb[0].mxu0 %v330
    %v404 = vpop.f32.mrb[0].mxu0
    %v405 = vadd.f32 0.0, %v404
    %v406 = vpop.f32.mrb[0].mxu0
    %407 = vmatprep.mubr.f32.mxu0 0.0
    %408 = vmatmul.mubr.f32.gmra.mrb[0].mxu0 %v332
    %v409 = vpop.f32.mrb[0].mxu0
    %v410 = vadd.f32 0.0, %v409
    %v411 = vpop.f32.mrb[0].mxu0
    %412 = vmatprep.mubr.f32.mxu0 0.0
    %413 = vmatmul.mubr.f32.gmra.mrb[0].mxu0 %v334
    %v414 = vpop.f32.mrb[0].mxu0
    %v415 = vadd.f32 0.0, %v414
    %v416 = vpop.f32.mrb[0].mxu0
    %417 = vmatprep.mubr.f32.mxu0 0.0
    %418 = vmatmul.mubr.f32.gmra.mrb[0].mxu0 %v336
    %v419 = vpop.f32.mrb[0].mxu0
    %v420 = vadd.f32 0.0, %v419
    %v421 = vpop.f32.mrb[0].mxu0
    %422 = vdwg.mxu0
    %431 = vrot.lane.b32.xlu0 %v282, 64
    %v432 = vpop.permute.xlu0 %431
    %433 = vrot.lane.b32.xlu0 %v283, 64
    %v434 = vpop.permute.xlu0 %433
    %435 = vrot.lane.b32.xlu0 %v284, 64
    %v436 = vpop.permute.xlu0 %435
    %437 = vrot.lane.b32.xlu0 %v285, 64
    %v438 = vpop.permute.xlu0 %437
    %439 = vrot.lane.b32.xlu0 %v286, 64
    %v440 = vpop.permute.xlu0 %439
    %441 = vrot.lane.b32.xlu0 %v287, 64
    %v442 = vpop.permute.xlu0 %441
    %443 = vrot.lane.b32.xlu0 %v288, 64
    %v444 = vpop.permute.xlu0 %443
    %445 = vrot.lane.b32.xlu0 %v289, 64
    %v446 = vpop.permute.xlu0 %445
    %v456 = vsel %vm68, %v272, 0
    %v459 = vsel %vm68, %v273, 0
    %v462 = vsel %vm68, %v274, 0
    %v465 = vsel %vm68, %v275, 0
    %467 = vmatprep.subr.mxu0 0.0
    %468 = vmatpush1.msra.mxu0 %v432
    %469 = vmatprep.subr.mxu0 0.0
    %470 = vmatpush1.msra.mxu0 %v434
    %471 = vmatprep.subr.mxu0 0.0
    %472 = vmatpush1.msra.mxu0 %v436
    %473 = vmatprep.subr.mxu0 0.0
    %474 = vmatpush1.msra.mxu0 %v438
    %475 = vmatprep.subr.mxu0 0.0
    %476 = vmatpush1.msra.mxu0 %v440
    %477 = vmatprep.subr.mxu0 0.0
    %478 = vmatpush1.msra.mxu0 %v442
    %479 = vmatprep.subr.mxu0 0.0
    %480 = vmatpush1.msra.mxu0 %v444
    %481 = vmatprep.subr.mxu0 0.0
    %482 = vmatpush1.msra.mxu0 %v446
    %483 = vmatprep.subr.mxu0 0.0
    %484 = vmatpush1.msra.mxu0 0.0
    %485 = vmatprep.subr.mxu0 0.0
    %486 = vmatpush1.msra.mxu0 0.0
    %487 = vmatprep.subr.mxu0 0.0
    %488 = vmatpush1.msra.mxu0 0.0
    %489 = vmatprep.subr.mxu0 0.0
    %490 = vmatpush1.msra.mxu0 0.0
    %491 = vmatprep.subr.mxu0 0.0
    %492 = vmatpush1.msra.mxu0 0.0
    %493 = vmatprep.subr.mxu0 0.0
    %494 = vmatpush1.msra.mxu0 0.0
    %495 = vmatprep.subr.mxu0 0.0
    %496 = vmatpush1.msra.mxu0 0.0
    %497 = vmatprep.subr.mxu0 0.0
    %498 = vmatpush1.msra.mxu0 0.0
    %499 = vmatprep.subr.mxu0 0.0
    %500 = vmatpush1.msra.mxu0 0.0
    %501 = vmatprep.subr.mxu0 0.0
    %502 = vmatpush1.msra.mxu0 0.0
    %503 = vmatprep.subr.mxu0 0.0
    %504 = vmatpush1.msra.mxu0 0.0
    %505 = vmatprep.subr.mxu0 0.0
    %506 = vmatpush1.msra.mxu0 0.0
    %507 = vmatprep.subr.mxu0 0.0
    %508 = vmatpush1.msra.mxu0 0.0
    %509 = vmatprep.subr.mxu0 0.0
    %510 = vmatpush1.msra.mxu0 0.0
    %511 = vmatprep.subr.mxu0 0.0
    %512 = vmatpush1.msra.mxu0 0.0
    %513 = vmatprep.subr.mxu0 0.0
    %514 = vmatpush1.msra.mxu0 0.0
    %515 = vmatprep.subr.mxu0 0.0
    %516 = vmatpush1.msra.mxu0 0.0
    %517 = vmatprep.subr.mxu0 0.0
    %518 = vmatpush1.msra.mxu0 0.0
    %519 = vmatprep.subr.mxu0 0.0
    %520 = vmatpush1.msra.mxu0 0.0
    %521 = vmatprep.subr.mxu0 0.0
    %522 = vmatpush1.msra.mxu0 0.0
    %523 = vmatprep.subr.mxu0 0.0
    %524 = vmatpush1.msra.mxu0 0.0
    %525 = vmatprep.subr.mxu0 0.0
    %526 = vmatpush1.msra.mxu0 0.0
    %527 = vmatprep.subr.mxu0 0.0
    %528 = vmatpush1.msra.mxu0 0.0
    %529 = vmatprep.subr.mxu0 0.0
    %530 = vmatpush1.msra.mxu0 0.0
    %531 = vmatprep.mubr.f32.mxu0 0.0
    %532 = vmatmul.mubr.f32.gmra.mrb[0].mxu0 %v456
    %v533 = vpop.f32.mrb[0].mxu0
    %v534 = vadd.f32 %v405, %v533
    %v535 = vpop.f32.mrb[0].mxu0
    %536 = vmatprep.mubr.f32.mxu0 0.0
    %537 = vmatmul.mubr.f32.gmra.mrb[0].mxu0 %v459
    %v538 = vpop.f32.mrb[0].mxu0
    %v539 = vadd.f32 %v410, %v538
    %v540 = vpop.f32.mrb[0].mxu0
    %541 = vmatprep.mubr.f32.mxu0 0.0
    %542 = vmatmul.mubr.f32.gmra.mrb[0].mxu0 %v462
    %v543 = vpop.f32.mrb[0].mxu0
    %v544 = vadd.f32 %v415, %v543
    %v545 = vpop.f32.mrb[0].mxu0
    %546 = vmatprep.mubr.f32.mxu0 0.0
    %547 = vmatmul.mubr.f32.gmra.mrb[0].mxu0 %v465
    %v548 = vpop.f32.mrb[0].mxu0
    %v549 = vadd.f32 %v420, %v548
    %v550 = vpop.f32.mrb[0].mxu0
    %551 = vdwg.mxu0
    %560 = vrot.lane.b32.xlu0 %v55, 64
    %v561 = vpop.permute.xlu0 %560
    %562 = vrot.lane.b32.xlu0 %v56, 64
    %v563 = vpop.permute.xlu0 %562
    %564 = vrot.lane.b32.xlu0 %v57, 64
    %v565 = vpop.permute.xlu0 %564
    %566 = vrot.lane.b32.xlu0 %v58, 64
    %v567 = vpop.permute.xlu0 %566
    %568 = vrot.lane.b32.xlu0 %v59, 64
    %v569 = vpop.permute.xlu0 %568
    %570 = vrot.lane.b32.xlu0 %v60, 64
    %v571 = vpop.permute.xlu0 %570
    %572 = vrot.lane.b32.xlu0 %v61, 64
    %v573 = vpop.permute.xlu0 %572
    %574 = vrot.lane.b32.xlu0 %v62, 64
    %v575 = vpop.permute.xlu0 %574
    %v585 = vsel %vm68, %v278, 0
    %v588 = vsel %vm68, %v279, 0
    %v591 = vsel %vm68, %v280, 0
    %v594 = vsel %vm68, %v281, 0
    %596 = vmatprep.subr.mxu0 0.0
    %597 = vmatpush1.msra.mxu0 %v561
    %598 = vmatprep.subr.mxu0 0.0
    %599 = vmatpush1.msra.mxu0 %v563
    %600 = vmatprep.subr.mxu0 0.0
    %601 = vmatpush1.msra.mxu0 %v565
    %602 = vmatprep.subr.mxu0 0.0
    %603 = vmatpush1.msra.mxu0 %v567
    %604 = vmatprep.subr.mxu0 0.0
    %605 = vmatpush1.msra.mxu0 %v569
    %606 = vmatprep.subr.mxu0 0.0
    %607 = vmatpush1.msra.mxu0 %v571
    %608 = vmatprep.subr.mxu0 0.0
    %609 = vmatpush1.msra.mxu0 %v573
    %610 = vmatprep.subr.mxu0 0.0
    %611 = vmatpush1.msra.mxu0 %v575
    %612 = vmatprep.subr.mxu0 0.0
    %613 = vmatpush1.msra.mxu0 0.0
    %614 = vmatprep.subr.mxu0 0.0
    %615 = vmatpush1.msra.mxu0 0.0
    %616 = vmatprep.subr.mxu0 0.0
    %617 = vmatpush1.msra.mxu0 0.0
    %618 = vmatprep.subr.mxu0 0.0
    %619 = vmatpush1.msra.mxu0 0.0
    %620 = vmatprep.subr.mxu0 0.0
    %621 = vmatpush1.msra.mxu0 0.0
    %622 = vmatprep.subr.mxu0 0.0
    %623 = vmatpush1.msra.mxu0 0.0
    %624 = vmatprep.subr.mxu0 0.0
    %625 = vmatpush1.msra.mxu0 0.0
    %626 = vmatprep.subr.mxu0 0.0
    %627 = vmatpush1.msra.mxu0 0.0
    %628 = vmatprep.subr.mxu0 0.0
    %629 = vmatpush1.msra.mxu0 0.0
    %630 = vmatprep.subr.mxu0 0.0
    %631 = vmatpush1.msra.mxu0 0.0
    %632 = vmatprep.subr.mxu0 0.0
    %633 = vmatpush1.msra.mxu0 0.0
    %634 = vmatprep.subr.mxu0 0.0
    %635 = vmatpush1.msra.mxu0 0.0
    %636 = vmatprep.subr.mxu0 0.0
    %637 = vmatpush1.msra.mxu0 0.0
    %638 = vmatprep.subr.mxu0 0.0
    %639 = vmatpush1.msra.mxu0 0.0
    %640 = vmatprep.subr.mxu0 0.0
    %641 = vmatpush1.msra.mxu0 0.0
    %642 = vmatprep.subr.mxu0 0.0
    %643 = vmatpush1.msra.mxu0 0.0
    %644 = vmatprep.subr.mxu0 0.0
    %645 = vmatpush1.msra.mxu0 0.0
    %646 = vmatprep.subr.mxu0 0.0
    %647 = vmatpush1.msra.mxu0 0.0
    %648 = vmatprep.subr.mxu0 0.0
    %649 = vmatpush1.msra.mxu0 0.0
    %650 = vmatprep.subr.mxu0 0.0
    %651 = vmatpush1.msra.mxu0 0.0
    %652 = vmatprep.subr.mxu0 0.0
    %653 = vmatpush1.msra.mxu0 0.0
    %654 = vmatprep.subr.mxu0 0.0
    %655 = vmatpush1.msra.mxu0 0.0
    %656 = vmatprep.subr.mxu0 0.0
    %657 = vmatpush1.msra.mxu0 0.0
    %658 = vmatprep.subr.mxu0 0.0
    %659 = vmatpush1.msra.mxu0 0.0
    %660 = vmatprep.mubr.f32.mxu0 0.0
    %661 = vmatmul.mubr.f32.gmra.mrb[0].mxu0 %v585
    %v662 = vpop.f32.mrb[0].mxu0
    %v663 = vadd.f32 0.0, %v662
    %v664 = vpop.f32.mrb[0].mxu0
    %665 = vmatprep.mubr.f32.mxu0 0.0
    %666 = vmatmul.mubr.f32.gmra.mrb[0].mxu0 %v588
    %v667 = vpop.f32.mrb[0].mxu0
    %v668 = vadd.f32 0.0, %v667
    %v669 = vpop.f32.mrb[0].mxu0
    %670 = vmatprep.mubr.f32.mxu0 0.0
    %671 = vmatmul.mubr.f32.gmra.mrb[0].mxu0 %v591
    %v672 = vpop.f32.mrb[0].mxu0
    %v673 = vadd.f32 0.0, %v672
    %v674 = vpop.f32.mrb[0].mxu0
    %675 = vmatprep.mubr.f32.mxu0 0.0
    %676 = vmatmul.mubr.f32.gmra.mrb[0].mxu0 %v594
    %v677 = vpop.f32.mrb[0].mxu0
    %v678 = vadd.f32 0.0, %v677
    %v679 = vpop.f32.mrb[0].mxu0
    %680 = vdwg.mxu0
    %v681 = vadd.f32 %v534, %v663
    %v682 = vadd.f32 %v539, %v668
    %v683 = vadd.f32 %v544, %v673
    %v684 = vadd.f32 %v549, %v678
    %v685 = vlaneseq
    %v686 = vshrl.u32 %v685, 7
    %v687 = vsub.s32 0, %v686
    %v688 = vrot.slane %v236, %v687
    %v689 = vadd.f32 %v681, %v688
    %v690 = vadd.f32 %v682, %v688
    %v691 = vadd.f32 %v683, %v688
    %v692 = vadd.f32 %v684, %v688
    %v693 = vld [vmem:[%s1] sm:$0x3]
    %v694 = vsel %vm166, %v689, 0.0
    %v695 = vsel %vm166, %v690, 0.0
    %v696 = vadd.f32 %v694, %v695
    %v697 = vrot.slane %v696, 4
    %v698 = vadd.f32 %v696, %v697
    %v699 = vrot.slane %v698, 2
    %v700 = vadd.f32 %v698, %v699
    %v701 = vrot.slane %v700, 1
    %v702 = vadd.f32 %v700, %v701
    %v703 = vmul.f32 %v702, %v176
    %v704 = vsub.f32 %v689, %v703
    %v705 = vsub.f32 %v690, %v703
    %v706 = vmul.f32 %v704, %v704
    %v707 = vmul.f32 %v705, %v705
    %v708 = vsel %vm166, %v706, 0.0
    %v709 = vsel %vm166, %v707, 0.0
    %v710 = vadd.f32 %v708, %v709
    %v711 = vrot.slane %v710, 4
    %v712 = vadd.f32 %v710, %v711
    %v713 = vrot.slane %v712, 2
    %v714 = vadd.f32 %v712, %v713
    %v715 = vrot.slane %v714, 1
    %v716 = vadd.f32 %v714, %v715
    %v717 = vmul.f32 %v716, %v176
    %v718 = vadd.f32 %v717, 1e-05
    %v719 = vrsqrt.pop %v718
    %v720 = vmul.f32 %v704, %v719
    %v721 = vmul.f32 %v705, %v719
    %v722 = vsel %vm166, %v691, 0.0
    %v723 = vsel %vm166, %v692, 0.0
    %v724 = vadd.f32 %v722, %v723
    %v725 = vrot.slane %v724, 4
    %v726 = vadd.f32 %v724, %v725
    %v727 = vrot.slane %v726, 2
    %v728 = vadd.f32 %v726, %v727
    %v729 = vrot.slane %v728, 1
    %v730 = vadd.f32 %v728, %v729
    %v731 = vmul.f32 %v730, %v176
    %v732 = vsub.f32 %v691, %v731
    %v733 = vsub.f32 %v692, %v731
    %v734 = vmul.f32 %v732, %v732
    %v735 = vmul.f32 %v733, %v733
    %v736 = vsel %vm166, %v734, 0.0
    %v737 = vsel %vm166, %v735, 0.0
    %v738 = vadd.f32 %v736, %v737
    %v739 = vrot.slane %v738, 4
    %v740 = vadd.f32 %v738, %v739
    %v741 = vrot.slane %v740, 2
    %v742 = vadd.f32 %v740, %v741
    %v743 = vrot.slane %v742, 1
    %v744 = vadd.f32 %v742, %v743
    %v745 = vmul.f32 %v744, %v176
    %v746 = vadd.f32 %v745, 1e-05
    %v747 = vrsqrt.pop %v746
    %v748 = vmul.f32 %v732, %v747
    %v749 = vmul.f32 %v733, %v747
    %752 = vrot.lane.b32.xlu0 %v689, 96
    %v753 = vpop.permute.xlu0 %752
    %754 = vrot.lane.b32.xlu0 %v690, 96
    %v755 = vpop.permute.xlu0 %754
    %v758 = vadd.f32 %v720, %v753
    %v759 = vadd.f32 %v721, %v755
    %v760 = vlaneseq
    %v761 = vshrl.u32 %v760, 7
    %v762 = vsub.s32 0, %v761
    %v763 = vrot.slane %v693, %v762
    %765 = vrot.lane.b32.xlu0 %v763, 96
    %v766 = vpop.permute.xlu0 %765
    %v768 = vmul.f32 %v758, %v766
    %v769 = vmul.f32 %v759, %v766
    %v770 = vadd.f32 %v768, %v763
    %v771 = vadd.f32 %v769, %v763
    %v772 = vmax.f32 %v770, 0.0
    %v773 = vmax.f32 %v771, 0.0
    %776 = vrot.lane.b32.xlu0 %v691, 96
    %v777 = vpop.permute.xlu0 %776
    %778 = vrot.lane.b32.xlu0 %v692, 96
    %v779 = vpop.permute.xlu0 %778
    %v782 = vadd.f32 %v748, %v777
    %v783 = vadd.f32 %v749, %v779
    %v784 = vlaneseq
    %v785 = vshrl.u32 %v784, 7
    %v786 = vsub.s32 1, %v785
    %v787 = vrot.slane %v693, %v786
    %789 = vrot.lane.b32.xlu0 %v787, 96
    %v790 = vpop.permute.xlu0 %789
    %v792 = vmul.f32 %v782, %v790
    %v793 = vmul.f32 %v783, %v790
    %v794 = vadd.f32 %v792, %v787
    %v795 = vadd.f32 %v793, %v787
    %v796 = vmax.f32 %v794, 0.0
    %v797 = vmax.f32 %v795, 0.0
    %v798 = vsel %vm166, %v772, %v689
    %v799 = vsel %vm166, %v773, %v690
    %v800 = vsel %vm166, %v796, %v691
    %v801 = vsel %vm166, %v797, %v692
    %v802 = vld [vmem:[%s3 + $0x2] sm:$0x1]
    %v807 = vrot.slane %v798, 7
    %v808 = vrot.slane %v799, 7
    %v809 = vsel %vm241, %v807, %v808
    %v810 = vrot.slane %v800, 7
    %v811 = vsel %vm241, %v808, %v810
    %v812 = vrot.slane %v801, 7
    %v813 = vsel %vm241, %v810, %v812
    %v818 = vsel %vm241, %v798, %v807
    %v819 = vrot.slane %v798, 1
    %v820 = vrot.slane %v799, 1
    %v821 = vsel %vm254, %v819, %v820
    %v822 = vrot.slane %v800, 1
    %v823 = vsel %vm254, %v820, %v822
    %v824 = vrot.slane %v801, 1
    %v825 = vsel %vm254, %v822, %v824
    %v830 = vsel %vm254, %v824, %v801
    %v831 = vsel %vm270, %v821, %v818
    %v832 = vsel %vm271, %v823, %v809
    %v833 = vsel %vm270, %v825, %v811
    %v834 = vsel %vm271, %v830, %v813
    %v835 = vsel %vm276, %v818, %v821
    %v836 = vsel %vm277, %v809, %v823
    %v837 = vsel %vm276, %v811, %v825
    %v838 = vsel %vm277, %v813, %v830
    %v839 = vld [vmem:[#allocation2 + $0x8] sm:$0xff]
    %v840 = vld [vmem:[#allocation2 + $0x28] sm:$0xff]
    %v841 = vld [vmem:[#allocation2 + $0x48] sm:$0xff]
    %v842 = vld [vmem:[#allocation2 + $0x68] sm:$0xff]
    %v843 = vld [vmem:[#allocation2 + $0x88] sm:$0xff]
    %v844 = vld [vmem:[#allocation2 + $0xa8] sm:$0xff]
    %v845 = vld [vmem:[#allocation2 + $0xc8] sm:$0xff]
    %v846 = vld [vmem:[#allocation2 + $0xe8] sm:$0xff]
    %v847 = vld [vmem:[#allocation2 + $0x108] sm:$0xff]
    %v848 = vld [vmem:[#allocation2 + $0x128] sm:$0xff]
    %v849 = vld [vmem:[#allocation2 + $0x148] sm:$0xff]
    %v850 = vld [vmem:[#allocation2 + $0x168] sm:$0xff]
    %v851 = vld [vmem:[#allocation2 + $0x188] sm:$0xff]
    %v852 = vld [vmem:[#allocation2 + $0x1a8] sm:$0xff]
    %v853 = vld [vmem:[#allocation2 + $0x1c8] sm:$0xff]
    %v854 = vld [vmem:[#allocation2 + $0x1e8] sm:$0xff]
    %v855 = vsel %vm68, %v798, 0
    %v857 = vsel %vm68, %v799, 0
    %v859 = vsel %vm68, %v800, 0
    %v861 = vsel %vm68, %v801, 0
    %863 = vmatprep.subr.mxu0 0.0
    %864 = vmatpush1.msra.mxu0 %v847
    %865 = vmatprep.subr.mxu0 0.0
    %866 = vmatpush1.msra.mxu0 %v848
    %867 = vmatprep.subr.mxu0 0.0
    %868 = vmatpush1.msra.mxu0 %v849
    %869 = vmatprep.subr.mxu0 0.0
    %870 = vmatpush1.msra.mxu0 %v850
    %871 = vmatprep.subr.mxu0 0.0
    %872 = vmatpush1.msra.mxu0 %v851
    %873 = vmatprep.subr.mxu0 0.0
    %874 = vmatpush1.msra.mxu0 %v852
    %875 = vmatprep.subr.mxu0 0.0
    %876 = vmatpush1.msra.mxu0 %v853
    %877 = vmatprep.subr.mxu0 0.0
    %878 = vmatpush1.msra.mxu0 %v854
    %879 = vmatprep.subr.mxu0 0.0
    %880 = vmatpush1.msra.mxu0 0.0
    %881 = vmatprep.subr.mxu0 0.0
    %882 = vmatpush1.msra.mxu0 0.0
    %883 = vmatprep.subr.mxu0 0.0
    %884 = vmatpush1.msra.mxu0 0.0
    %885 = vmatprep.subr.mxu0 0.0
    %886 = vmatpush1.msra.mxu0 0.0
    %887 = vmatprep.subr.mxu0 0.0
    %888 = vmatpush1.msra.mxu0 0.0
    %889 = vmatprep.subr.mxu0 0.0
    %890 = vmatpush1.msra.mxu0 0.0
    %891 = vmatprep.subr.mxu0 0.0
    %892 = vmatpush1.msra.mxu0 0.0
    %893 = vmatprep.subr.mxu0 0.0
    %894 = vmatpush1.msra.mxu0 0.0
    %895 = vmatprep.subr.mxu0 0.0
    %896 = vmatpush1.msra.mxu0 0.0
    %897 = vmatprep.subr.mxu0 0.0
    %898 = vmatpush1.msra.mxu0 0.0
    %899 = vmatprep.subr.mxu0 0.0
    %900 = vmatpush1.msra.mxu0 0.0
    %901 = vmatprep.subr.mxu0 0.0
    %902 = vmatpush1.msra.mxu0 0.0
    %903 = vmatprep.subr.mxu0 0.0
    %904 = vmatpush1.msra.mxu0 0.0
    %905 = vmatprep.subr.mxu0 0.0
    %906 = vmatpush1.msra.mxu0 0.0
    %907 = vmatprep.subr.mxu0 0.0
    %908 = vmatpush1.msra.mxu0 0.0
    %909 = vmatprep.subr.mxu0 0.0
    %910 = vmatpush1.msra.mxu0 0.0
    %911 = vmatprep.subr.mxu0 0.0
    %912 = vmatpush1.msra.mxu0 0.0
    %913 = vmatprep.subr.mxu0 0.0
    %914 = vmatpush1.msra.mxu0 0.0
    %915 = vmatprep.subr.mxu0 0.0
    %916 = vmatpush1.msra.mxu0 0.0
    %917 = vmatprep.subr.mxu0 0.0
    %918 = vmatpush1.msra.mxu0 0.0
    %919 = vmatprep.subr.mxu0 0.0
    %920 = vmatpush1.msra.mxu0 0.0
    %921 = vmatprep.subr.mxu0 0.0
    %922 = vmatpush1.msra.mxu0 0.0
    %923 = vmatprep.subr.mxu0 0.0
    %924 = vmatpush1.msra.mxu0 0.0
    %925 = vmatprep.subr.mxu0 0.0
    %926 = vmatpush1.msra.mxu0 0.0
    %927 = vmatprep.mubr.f32.mxu0 0.0
    %928 = vmatmul.mubr.f32.gmra.mrb[0].mxu0 %v855
    %v929 = vpop.f32.mrb[0].mxu0
    %v930 = vadd.f32 0.0, %v929
    %v931 = vpop.f32.mrb[0].mxu0
    %932 = vmatprep.mubr.f32.mxu0 0.0
    %933 = vmatmul.mubr.f32.gmra.mrb[0].mxu0 %v857
    %v934 = vpop.f32.mrb[0].mxu0
    %v935 = vadd.f32 0.0, %v934
    %v936 = vpop.f32.mrb[0].mxu0
    %937 = vmatprep.mubr.f32.mxu0 0.0
    %938 = vmatmul.mubr.f32.gmra.mrb[0].mxu0 %v859
    %v939 = vpop.f32.mrb[0].mxu0
    %v940 = vadd.f32 0.0, %v939
    %v941 = vpop.f32.mrb[0].mxu0
    %942 = vmatprep.mubr.f32.mxu0 0.0
    %943 = vmatmul.mubr.f32.gmra.mrb[0].mxu0 %v861
    %v944 = vpop.f32.mrb[0].mxu0
    %v945 = vadd.f32 0.0, %v944
    %v946 = vpop.f32.mrb[0].mxu0
    %947 = vdwg.mxu0
    %v949 = vsel %vm68, %v831, 0
    %v952 = vsel %vm68, %v832, 0
    %v955 = vsel %vm68, %v833, 0
    %v958 = vsel %vm68, %v834, 0
    %960 = vmatprep.subr.mxu0 0.0
    %961 = vmatpush1.msra.mxu0 %v839
    %962 = vmatprep.subr.mxu0 0.0
    %963 = vmatpush1.msra.mxu0 %v840
    %964 = vmatprep.subr.mxu0 0.0
    %965 = vmatpush1.msra.mxu0 %v841
    %966 = vmatprep.subr.mxu0 0.0
    %967 = vmatpush1.msra.mxu0 %v842
    %968 = vmatprep.subr.mxu0 0.0
    %969 = vmatpush1.msra.mxu0 %v843
    %970 = vmatprep.subr.mxu0 0.0
    %971 = vmatpush1.msra.mxu0 %v844
    %972 = vmatprep.subr.mxu0 0.0
    %973 = vmatpush1.msra.mxu0 %v845
    %974 = vmatprep.subr.mxu0 0.0
    %975 = vmatpush1.msra.mxu0 %v846
    %976 = vmatprep.subr.mxu0 0.0
    %977 = vmatpush1.msra.mxu0 0.0
    %978 = vmatprep.subr.mxu0 0.0
    %979 = vmatpush1.msra.mxu0 0.0
    %980 = vmatprep.subr.mxu0 0.0
    %981 = vmatpush1.msra.mxu0 0.0
    %982 = vmatprep.subr.mxu0 0.0
    %983 = vmatpush1.msra.mxu0 0.0
    %984 = vmatprep.subr.mxu0 0.0
    %985 = vmatpush1.msra.mxu0 0.0
    %986 = vmatprep.subr.mxu0 0.0
    %987 = vmatpush1.msra.mxu0 0.0
    %988 = vmatprep.subr.mxu0 0.0
    %989 = vmatpush1.msra.mxu0 0.0
    %990 = vmatprep.subr.mxu0 0.0
    %991 = vmatpush1.msra.mxu0 0.0
    %992 = vmatprep.subr.mxu0 0.0
    %993 = vmatpush1.msra.mxu0 0.0
    %994 = vmatprep.subr.mxu0 0.0
    %995 = vmatpush1.msra.mxu0 0.0
    %996 = vmatprep.subr.mxu0 0.0
    %997 = vmatpush1.msra.mxu0 0.0
    %998 = vmatprep.subr.mxu0 0.0
    %999 = vmatpush1.msra.mxu0 0.0
    %1000 = vmatprep.subr.mxu0 0.0
    %1001 = vmatpush1.msra.mxu0 0.0
    %1002 = vmatprep.subr.mxu0 0.0
    %1003 = vmatpush1.msra.mxu0 0.0
    %1004 = vmatprep.subr.mxu0 0.0
    %1005 = vmatpush1.msra.mxu0 0.0
    %1006 = vmatprep.subr.mxu0 0.0
    %1007 = vmatpush1.msra.mxu0 0.0
    %1008 = vmatprep.subr.mxu0 0.0
    %1009 = vmatpush1.msra.mxu0 0.0
    %1010 = vmatprep.subr.mxu0 0.0
    %1011 = vmatpush1.msra.mxu0 0.0
    %1012 = vmatprep.subr.mxu0 0.0
    %1013 = vmatpush1.msra.mxu0 0.0
    %1014 = vmatprep.subr.mxu0 0.0
    %1015 = vmatpush1.msra.mxu0 0.0
    %1016 = vmatprep.subr.mxu0 0.0
    %1017 = vmatpush1.msra.mxu0 0.0
    %1018 = vmatprep.subr.mxu0 0.0
    %1019 = vmatpush1.msra.mxu0 0.0
    %1020 = vmatprep.subr.mxu0 0.0
    %1021 = vmatpush1.msra.mxu0 0.0
    %1022 = vmatprep.subr.mxu0 0.0
    %1023 = vmatpush1.msra.mxu0 0.0
    %1024 = vmatprep.mubr.f32.mxu0 0.0
    %1025 = vmatmul.mubr.f32.gmra.mrb[0].mxu0 %v949
    %v1026 = vpop.f32.mrb[0].mxu0
    %v1027 = vadd.f32 %v930, %v1026
    %v1028 = vpop.f32.mrb[0].mxu0
    %1029 = vmatprep.mubr.f32.mxu0 0.0
    %1030 = vmatmul.mubr.f32.gmra.mrb[0].mxu0 %v952
    %v1031 = vpop.f32.mrb[0].mxu0
    %v1032 = vadd.f32 %v935, %v1031
    %v1033 = vpop.f32.mrb[0].mxu0
    %1034 = vmatprep.mubr.f32.mxu0 0.0
    %1035 = vmatmul.mubr.f32.gmra.mrb[0].mxu0 %v955
    %v1036 = vpop.f32.mrb[0].mxu0
    %v1037 = vadd.f32 %v940, %v1036
    %v1038 = vpop.f32.mrb[0].mxu0
    %1039 = vmatprep.mubr.f32.mxu0 0.0
    %1040 = vmatmul.mubr.f32.gmra.mrb[0].mxu0 %v958
    %v1041 = vpop.f32.mrb[0].mxu0
    %v1042 = vadd.f32 %v945, %v1041
    %v1043 = vpop.f32.mrb[0].mxu0
    %1044 = vdwg.mxu0
    %v1045 = vld [vmem:[#allocation2 + $0x208] sm:$0xff]
    %v1046 = vld [vmem:[#allocation2 + $0x228] sm:$0xff]
    %v1047 = vld [vmem:[#allocation2 + $0x248] sm:$0xff]
    %v1048 = vld [vmem:[#allocation2 + $0x268] sm:$0xff]
    %v1049 = vld [vmem:[#allocation2 + $0x288] sm:$0xff]
    %v1050 = vld [vmem:[#allocation2 + $0x2a8] sm:$0xff]
    %v1051 = vld [vmem:[#allocation2 + $0x2c8] sm:$0xff]
    %v1052 = vld [vmem:[#allocation2 + $0x2e8] sm:$0xff]
    %v1054 = vsel %vm68, %v835, 0
    %v1057 = vsel %vm68, %v836, 0
    %v1060 = vsel %vm68, %v837, 0
    %v1063 = vsel %vm68, %v838, 0
    %1065 = vmatprep.subr.mxu0 0.0
    %1066 = vmatpush1.msra.mxu0 %v1045
    %1067 = vmatprep.subr.mxu0 0.0
    %1068 = vmatpush1.msra.mxu0 %v1046
    %1069 = vmatprep.subr.mxu0 0.0
    %1070 = vmatpush1.msra.mxu0 %v1047
    %1071 = vmatprep.subr.mxu0 0.0
    %1072 = vmatpush1.msra.mxu0 %v1048
    %1073 = vmatprep.subr.mxu0 0.0
    %1074 = vmatpush1.msra.mxu0 %v1049
    %1075 = vmatprep.subr.mxu0 0.0
    %1076 = vmatpush1.msra.mxu0 %v1050
    %1077 = vmatprep.subr.mxu0 0.0
    %1078 = vmatpush1.msra.mxu0 %v1051
    %1079 = vmatprep.subr.mxu0 0.0
    %1080 = vmatpush1.msra.mxu0 %v1052
    %1081 = vmatprep.subr.mxu0 0.0
    %1082 = vmatpush1.msra.mxu0 0.0
    %1083 = vmatprep.subr.mxu0 0.0
    %1084 = vmatpush1.msra.mxu0 0.0
    %1085 = vmatprep.subr.mxu0 0.0
    %1086 = vmatpush1.msra.mxu0 0.0
    %1087 = vmatprep.subr.mxu0 0.0
    %1088 = vmatpush1.msra.mxu0 0.0
    %1089 = vmatprep.subr.mxu0 0.0
    %1090 = vmatpush1.msra.mxu0 0.0
    %1091 = vmatprep.subr.mxu0 0.0
    %1092 = vmatpush1.msra.mxu0 0.0
    %1093 = vmatprep.subr.mxu0 0.0
    %1094 = vmatpush1.msra.mxu0 0.0
    %1095 = vmatprep.subr.mxu0 0.0
    %1096 = vmatpush1.msra.mxu0 0.0
    %1097 = vmatprep.subr.mxu0 0.0
    %1098 = vmatpush1.msra.mxu0 0.0
    %1099 = vmatprep.subr.mxu0 0.0
    %1100 = vmatpush1.msra.mxu0 0.0
    %1101 = vmatprep.subr.mxu0 0.0
    %1102 = vmatpush1.msra.mxu0 0.0
    %1103 = vmatprep.subr.mxu0 0.0
    %1104 = vmatpush1.msra.mxu0 0.0
    %1105 = vmatprep.subr.mxu0 0.0
    %1106 = vmatpush1.msra.mxu0 0.0
    %1107 = vmatprep.subr.mxu0 0.0
    %1108 = vmatpush1.msra.mxu0 0.0
    %1109 = vmatprep.subr.mxu0 0.0
    %1110 = vmatpush1.msra.mxu0 0.0
    %1111 = vmatprep.subr.mxu0 0.0
    %1112 = vmatpush1.msra.mxu0 0.0
    %1113 = vmatprep.subr.mxu0 0.0
    %1114 = vmatpush1.msra.mxu0 0.0
    %1115 = vmatprep.subr.mxu0 0.0
    %1116 = vmatpush1.msra.mxu0 0.0
    %1117 = vmatprep.subr.mxu0 0.0
    %1118 = vmatpush1.msra.mxu0 0.0
    %1119 = vmatprep.subr.mxu0 0.0
    %1120 = vmatpush1.msra.mxu0 0.0
    %1121 = vmatprep.subr.mxu0 0.0
    %1122 = vmatpush1.msra.mxu0 0.0
    %1123 = vmatprep.subr.mxu0 0.0
    %1124 = vmatpush1.msra.mxu0 0.0
    %1125 = vmatprep.subr.mxu0 0.0
    %1126 = vmatpush1.msra.mxu0 0.0
    %1127 = vmatprep.subr.mxu0 0.0
    %1128 = vmatpush1.msra.mxu0 0.0
    %1129 = vmatprep.mubr.f32.mxu0 0.0
    %1130 = vmatmul.mubr.f32.gmra.mrb[0].mxu0 %v1054
    %v1131 = vpop.f32.mrb[0].mxu0
    %v1132 = vadd.f32 0.0, %v1131
    %v1133 = vpop.f32.mrb[0].mxu0
    %1134 = vmatprep.mubr.f32.mxu0 0.0
    %1135 = vmatmul.mubr.f32.gmra.mrb[0].mxu0 %v1057
    %v1136 = vpop.f32.mrb[0].mxu0
    %v1137 = vadd.f32 0.0, %v1136
    %v1138 = vpop.f32.mrb[0].mxu0
    %1139 = vmatprep.mubr.f32.mxu0 0.0
    %1140 = vmatmul.mubr.f32.gmra.mrb[0].mxu0 %v1060
    %v1141 = vpop.f32.mrb[0].mxu0
    %v1142 = vadd.f32 0.0, %v1141
    %v1143 = vpop.f32.mrb[0].mxu0
    %1144 = vmatprep.mubr.f32.mxu0 0.0
    %1145 = vmatmul.mubr.f32.gmra.mrb[0].mxu0 %v1063
    %v1146 = vpop.f32.mrb[0].mxu0
    %v1147 = vadd.f32 0.0, %v1146
    %v1148 = vpop.f32.mrb[0].mxu0
    %1149 = vdwg.mxu0
    %v1150 = vadd.f32 %v1027, %v1132
    %v1151 = vadd.f32 %v1032, %v1137
    %v1152 = vadd.f32 %v1037, %v1142
    %v1153 = vadd.f32 %v1042, %v1147
    %v1154 = vlaneseq
    %v1155 = vshrl.u32 %v1154, 7
    %v1156 = vsub.s32 0, %v1155
    %v1157 = vrot.slane %v802, %v1156
    %v1158 = vadd.f32 %v1150, %v1157
    %v1159 = vadd.f32 %v1151, %v1157
    %v1160 = vadd.f32 %v1152, %v1157
    %v1161 = vadd.f32 %v1153, %v1157
    %v1162 = vadd.s32 %v268, 16
    %v1163 = vadd.s32 %v268, 24
    %v1164 = vlaneseq
    %v1165 = vand.u32 %v1164, 127
    %v1166 = vmul.u32 %v1165, 2
    %vm1167 = vcmp.eq.s32.totalorder %v268, %v1166
    %vm1168 = vcmp.eq.s32.totalorder %v269, %v1166
    %vm1169 = vcmp.eq.s32.totalorder %v1162, %v1166
    %vm1170 = vcmp.eq.s32.totalorder %v1163, %v1166
    %v1171 = vsel %vm1167, 1.0, 0.0
    %v1172 = vsel %vm1168, 1.0, 0.0
    %v1173 = vsel %vm1169, 1.0, 0.0
    %v1174 = vsel %vm1170, 1.0, 0.0
    %v1175 = vadd.s32 %v1166, 1
    %vm1176 = vcmp.eq.s32.totalorder %v268, %v1175
    %vm1177 = vcmp.eq.s32.totalorder %v269, %v1175
    %vm1178 = vcmp.eq.s32.totalorder %v1162, %v1175
    %vm1179 = vcmp.eq.s32.totalorder %v1163, %v1175
    %v1180 = vsel %vm1176, 1.0, 0.0
    %v1181 = vsel %vm1177, 1.0, 0.0
    %v1182 = vsel %vm1178, 1.0, 0.0
    %v1183 = vsel %vm1179, 1.0, 0.0
    %vm1184 = vcmask 130048
    %v1185 = vsel %vm1184, %v1171, 0.0
    %v1186 = vsel %vm1184, %v1172, 0.0
    %v1187 = vsel %vm1184, %v1173, 0.0
    %v1188 = vsel %vm1184, %v1174, 0.0
    %1193 = vrot.lane.b32.xlu0 %v1171, 16
    %v1194 = vpop.permute.xlu0 %1193
    %1195 = vrot.lane.b32.xlu0 %v1172, 16
    %v1196 = vpop.permute.xlu0 %1195
    %1197 = vrot.lane.b32.xlu0 %v1173, 16
    %v1198 = vpop.permute.xlu0 %1197
    %1199 = vrot.lane.b32.xlu0 %v1174, 16
    %v1200 = vpop.permute.xlu0 %1199
    %v1205 = vsel %vm1184, 0.0, %v1194
    %v1206 = vsel %vm1184, 0.0, %v1196
    %v1207 = vsel %vm1184, 0.0, %v1198
    %v1208 = vsel %vm1184, 0.0, %v1200
    %v1209 = vsel %vm1184, %v1180, 0.0
    %v1210 = vsel %vm1184, %v1181, 0.0
    %v1211 = vsel %vm1184, %v1182, 0.0
    %v1212 = vsel %vm1184, %v1183, 0.0
    %1217 = vrot.lane.b32.xlu0 %v1180, 16
    %v1218 = vpop.permute.xlu0 %1217
    %1219 = vrot.lane.b32.xlu0 %v1181, 16
    %v1220 = vpop.permute.xlu0 %1219
    %1221 = vrot.lane.b32.xlu0 %v1182, 16
    %v1222 = vpop.permute.xlu0 %1221
    %1223 = vrot.lane.b32.xlu0 %v1183, 16
    %v1224 = vpop.permute.xlu0 %1223
    %v1229 = vsel %vm1184, 0.0, %v1218
    %v1230 = vsel %vm1184, 0.0, %v1220
    %v1231 = vsel %vm1184, 0.0, %v1222
    %v1232 = vsel %vm1184, 0.0, %v1224
    %v1233 = vadd.f32 %v1185, %v1209
    %v1234 = vadd.f32 %v1186, %v1210
    %v1235 = vadd.f32 %v1187, %v1211
    %v1236 = vadd.f32 %v1188, %v1212
    %v1237 = vadd.f32 %v1205, %v1229
    %v1238 = vadd.f32 %v1206, %v1230
    %v1239 = vadd.f32 %v1207, %v1231
    %v1240 = vadd.f32 %v1208, %v1232
    %1245 = vrot.lane.b32.xlu0 %v1158, 64
    %v1246 = vpop.permute.xlu0 %1245
    %1247 = vrot.lane.b32.xlu0 %v1159, 64
    %v1248 = vpop.permute.xlu0 %1247
    %1249 = vrot.lane.b32.xlu0 %v1160, 64
    %v1250 = vpop.permute.xlu0 %1249
    %1251 = vrot.lane.b32.xlu0 %v1161, 64
    %v1252 = vpop.permute.xlu0 %1251
    %v1258 = vsel %vm166, %v1209, 0
    %v1261 = vsel %vm166, %v1210, 0
    %v1264 = vsel %vm166, %v1211, 0
    %v1267 = vsel %vm166, %v1212, 0
    %v1270 = vsel %vm166, %v1229, 0
    %v1273 = vsel %vm166, %v1230, 0
    %v1276 = vsel %vm166, %v1231, 0
    %v1279 = vsel %vm166, %v1232, 0
    %1281 = vmatprep.subr.mxu0 0.0
    %1282 = vmatpush1.msra.mxu0 %v1246
    %1283 = vmatprep.subr.mxu0 0.0
    %1284 = vmatpush1.msra.mxu0 %v1248
    %1285 = vmatprep.subr.mxu0 0.0
    %1286 = vmatpush1.msra.mxu0 %v1250
    %1287 = vmatprep.subr.mxu0 0.0
    %1288 = vmatpush1.msra.mxu0 %v1252
    %1289 = vmatprep.subr.mxu0 0.0
    %1290 = vmatpush1.msra.mxu0 0.0
    %1291 = vmatprep.subr.mxu0 0.0
    %1292 = vmatpush1.msra.mxu0 0.0
    %1293 = vmatprep.subr.mxu0 0.0
    %1294 = vmatpush1.msra.mxu0 0.0
    %1295 = vmatprep.subr.mxu0 0.0
    %1296 = vmatpush1.msra.mxu0 0.0
    %1297 = vmatprep.subr.mxu0 0.0
    %1298 = vmatpush1.msra.mxu0 0.0
    %1299 = vmatprep.subr.mxu0 0.0
    %1300 = vmatpush1.msra.mxu0 0.0
    %1301 = vmatprep.subr.mxu0 0.0
    %1302 = vmatpush1.msra.mxu0 0.0
    %1303 = vmatprep.subr.mxu0 0.0
    %1304 = vmatpush1.msra.mxu0 0.0
    %1305 = vmatprep.subr.mxu0 0.0
    %1306 = vmatpush1.msra.mxu0 0.0
    %1307 = vmatprep.subr.mxu0 0.0
    %1308 = vmatpush1.msra.mxu0 0.0
    %1309 = vmatprep.subr.mxu0 0.0
    %1310 = vmatpush1.msra.mxu0 0.0
    %1311 = vmatprep.subr.mxu0 0.0
    %1312 = vmatpush1.msra.mxu0 0.0
    %1313 = vmatprep.subr.mxu0 0.0
    %1314 = vmatpush1.msra.mxu0 0.0
    %1315 = vmatprep.subr.mxu0 0.0
    %1316 = vmatpush1.msra.mxu0 0.0
    %1317 = vmatprep.subr.mxu0 0.0
    %1318 = vmatpush1.msra.mxu0 0.0
    %1319 = vmatprep.subr.mxu0 0.0
    %1320 = vmatpush1.msra.mxu0 0.0
    %1321 = vmatprep.subr.mxu0 0.0
    %1322 = vmatpush1.msra.mxu0 0.0
    %1323 = vmatprep.subr.mxu0 0.0
    %1324 = vmatpush1.msra.mxu0 0.0
    %1325 = vmatprep.subr.mxu0 0.0
    %1326 = vmatpush1.msra.mxu0 0.0
    %1327 = vmatprep.subr.mxu0 0.0
    %1328 = vmatpush1.msra.mxu0 0.0
    %1329 = vmatprep.subr.mxu0 0.0
    %1330 = vmatpush1.msra.mxu0 0.0
    %1331 = vmatprep.subr.mxu0 0.0
    %1332 = vmatpush1.msra.mxu0 0.0
    %1333 = vmatprep.subr.mxu0 0.0
    %1334 = vmatpush1.msra.mxu0 0.0
    %1335 = vmatprep.subr.mxu0 0.0
    %1336 = vmatpush1.msra.mxu0 0.0
    %1337 = vmatprep.subr.mxu0 0.0
    %1338 = vmatpush1.msra.mxu0 0.0
    %1339 = vmatprep.subr.mxu0 0.0
    %1340 = vmatpush1.msra.mxu0 0.0
    %1341 = vmatprep.subr.mxu0 0.0
    %1342 = vmatpush1.msra.mxu0 0.0
    %1343 = vmatprep.subr.mxu0 0.0
    %1344 = vmatpush1.msra.mxu0 0.0
    %1345 = vmatprep.mubr.f32.mxu0 0.0
    %1346 = vmatmul.mubr.f32.gmra.mrb[0].mxu0 %v1258
    %v1347 = vpop.f32.mrb[0].mxu0
    %v1348 = vadd.f32 0.0, %v1347
    %v1349 = vpop.f32.mrb[0].mxu0
    %1350 = vmatprep.mubr.f32.mxu0 0.0
    %1351 = vmatmul.mubr.f32.gmra.mrb[0].mxu0 %v1261
    %v1352 = vpop.f32.mrb[0].mxu0
    %v1353 = vadd.f32 0.0, %v1352
    %v1354 = vpop.f32.mrb[0].mxu0
    %1355 = vmatprep.mubr.f32.mxu0 0.0
    %1356 = vmatmul.mubr.f32.gmra.mrb[0].mxu0 %v1264
    %v1357 = vpop.f32.mrb[0].mxu0
    %v1358 = vadd.f32 0.0, %v1357
    %v1359 = vpop.f32.mrb[0].mxu0
    %1360 = vmatprep.mubr.f32.mxu0 0.0
    %1361 = vmatmul.mubr.f32.gmra.mrb[0].mxu0 %v1267
    %v1362 = vpop.f32.mrb[0].mxu0
    %v1363 = vadd.f32 0.0, %v1362
    %v1364 = vpop.f32.mrb[0].mxu0
    %1365 = vmatprep.mubr.f32.mxu0 0.0
    %1366 = vmatmul.mubr.f32.gmra.mrb[0].mxu0 %v1270
    %v1367 = vpop.f32.mrb[0].mxu0
    %v1368 = vadd.f32 0.0, %v1367
    %v1369 = vpop.f32.mrb[0].mxu0
    %1370 = vmatprep.mubr.f32.mxu0 0.0
    %1371 = vmatmul.mubr.f32.gmra.mrb[0].mxu0 %v1273
    %v1372 = vpop.f32.mrb[0].mxu0
    %v1373 = vadd.f32 0.0, %v1372
    %v1374 = vpop.f32.mrb[0].mxu0
    %1375 = vmatprep.mubr.f32.mxu0 0.0
    %1376 = vmatmul.mubr.f32.gmra.mrb[0].mxu0 %v1276
    %v1377 = vpop.f32.mrb[0].mxu0
    %v1378 = vadd.f32 0.0, %v1377
    %v1379 = vpop.f32.mrb[0].mxu0
    %1380 = vmatprep.mubr.f32.mxu0 0.0
    %1381 = vmatmul.mubr.f32.gmra.mrb[0].mxu0 %v1279
    %v1382 = vpop.f32.mrb[0].mxu0
    %v1383 = vadd.f32 0.0, %v1382
    %v1384 = vpop.f32.mrb[0].mxu0
    %1385 = vdwg.mxu0
    %v1387 = vsel %vm166, %v1185, 0
    %v1390 = vsel %vm166, %v1186, 0
    %v1393 = vsel %vm166, %v1187, 0
    %v1396 = vsel %vm166, %v1188, 0
    %v1399 = vsel %vm166, %v1205, 0
    %v1402 = vsel %vm166, %v1206, 0
    %v1405 = vsel %vm166, %v1207, 0
    %v1408 = vsel %vm166, %v1208, 0
    %1410 = vmatprep.subr.mxu0 0.0
    %1411 = vmatpush1.msra.mxu0 %v1158
    %1412 = vmatprep.subr.mxu0 0.0
    %1413 = vmatpush1.msra.mxu0 %v1159
    %1414 = vmatprep.subr.mxu0 0.0
    %1415 = vmatpush1.msra.mxu0 %v1160
    %1416 = vmatprep.subr.mxu0 0.0
    %1417 = vmatpush1.msra.mxu0 %v1161
    %1418 = vmatprep.subr.mxu0 0.0
    %1419 = vmatpush1.msra.mxu0 0.0
    %1420 = vmatprep.subr.mxu0 0.0
    %1421 = vmatpush1.msra.mxu0 0.0
    %1422 = vmatprep.subr.mxu0 0.0
    %1423 = vmatpush1.msra.mxu0 0.0
    %1424 = vmatprep.subr.mxu0 0.0
    %1425 = vmatpush1.msra.mxu0 0.0
    %1426 = vmatprep.subr.mxu0 0.0
    %1427 = vmatpush1.msra.mxu0 0.0
    %1428 = vmatprep.subr.mxu0 0.0
    %1429 = vmatpush1.msra.mxu0 0.0
    %1430 = vmatprep.subr.mxu0 0.0
    %1431 = vmatpush1.msra.mxu0 0.0
    %1432 = vmatprep.subr.mxu0 0.0
    %1433 = vmatpush1.msra.mxu0 0.0
    %1434 = vmatprep.subr.mxu0 0.0
    %1435 = vmatpush1.msra.mxu0 0.0
    %1436 = vmatprep.subr.mxu0 0.0
    %1437 = vmatpush1.msra.mxu0 0.0
    %1438 = vmatprep.subr.mxu0 0.0
    %1439 = vmatpush1.msra.mxu0 0.0
    %1440 = vmatprep.subr.mxu0 0.0
    %1441 = vmatpush1.msra.mxu0 0.0
    %1442 = vmatprep.subr.mxu0 0.0
    %1443 = vmatpush1.msra.mxu0 0.0
    %1444 = vmatprep.subr.mxu0 0.0
    %1445 = vmatpush1.msra.mxu0 0.0
    %1446 = vmatprep.subr.mxu0 0.0
    %1447 = vmatpush1.msra.mxu0 0.0
    %1448 = vmatprep.subr.mxu0 0.0
    %1449 = vmatpush1.msra.mxu0 0.0
    %1450 = vmatprep.subr.mxu0 0.0
    %1451 = vmatpush1.msra.mxu0 0.0
    %1452 = vmatprep.subr.mxu0 0.0
    %1453 = vmatpush1.msra.mxu0 0.0
    %1454 = vmatprep.subr.mxu0 0.0
    %1455 = vmatpush1.msra.mxu0 0.0
    %1456 = vmatprep.subr.mxu0 0.0
    %1457 = vmatpush1.msra.mxu0 0.0
    %1458 = vmatprep.subr.mxu0 0.0
    %1459 = vmatpush1.msra.mxu0 0.0
    %1460 = vmatprep.subr.mxu0 0.0
    %1461 = vmatpush1.msra.mxu0 0.0
    %1462 = vmatprep.subr.mxu0 0.0
    %1463 = vmatpush1.msra.mxu0 0.0
    %1464 = vmatprep.subr.mxu0 0.0
    %1465 = vmatpush1.msra.mxu0 0.0
    %1466 = vmatprep.subr.mxu0 0.0
    %1467 = vmatpush1.msra.mxu0 0.0
    %1468 = vmatprep.subr.mxu0 0.0
    %1469 = vmatpush1.msra.mxu0 0.0
    %1470 = vmatprep.subr.mxu0 0.0
    %1471 = vmatpush1.msra.mxu0 0.0
    %1472 = vmatprep.subr.mxu0 0.0
    %1473 = vmatpush1.msra.mxu0 0.0
    %1474 = vmatprep.mubr.f32.mxu0 0.0
    %1475 = vmatmul.mubr.f32.gmra.mrb[0].mxu0 %v1387
    %v1476 = vpop.f32.mrb[0].mxu0
    %v1477 = vadd.f32 %v1348, %v1476
    %v1478 = vpop.f32.mrb[0].mxu0
    %1479 = vmatprep.mubr.f32.mxu0 0.0
    %1480 = vmatmul.mubr.f32.gmra.mrb[0].mxu0 %v1390
    %v1481 = vpop.f32.mrb[0].mxu0
    %v1482 = vadd.f32 %v1353, %v1481
    %v1483 = vpop.f32.mrb[0].mxu0
    %1484 = vmatprep.mubr.f32.mxu0 0.0
    %1485 = vmatmul.mubr.f32.gmra.mrb[0].mxu0 %v1393
    %v1486 = vpop.f32.mrb[0].mxu0
    %v1487 = vadd.f32 %v1358, %v1486
    %v1488 = vpop.f32.mrb[0].mxu0
    %1489 = vmatprep.mubr.f32.mxu0 0.0
    %1490 = vmatmul.mubr.f32.gmra.mrb[0].mxu0 %v1396
    %v1491 = vpop.f32.mrb[0].mxu0
    %v1492 = vadd.f32 %v1363, %v1491
    %v1493 = vpop.f32.mrb[0].mxu0
    %1494 = vmatprep.mubr.f32.mxu0 0.0
    %1495 = vmatmul.mubr.f32.gmra.mrb[0].mxu0 %v1399
    %v1496 = vpop.f32.mrb[0].mxu0
    %v1497 = vadd.f32 %v1368, %v1496
    %v1498 = vpop.f32.mrb[0].mxu0
    %1499 = vmatprep.mubr.f32.mxu0 0.0
    %1500 = vmatmul.mubr.f32.gmra.mrb[0].mxu0 %v1402
    %v1501 = vpop.f32.mrb[0].mxu0
    %v1502 = vadd.f32 %v1373, %v1501
    %v1503 = vpop.f32.mrb[0].mxu0
    %1504 = vmatprep.mubr.f32.mxu0 0.0
    %1505 = vmatmul.mubr.f32.gmra.mrb[0].mxu0 %v1405
    %v1506 = vpop.f32.mrb[0].mxu0
    %v1507 = vadd.f32 %v1378, %v1506
    %v1508 = vpop.f32.mrb[0].mxu0
    %1509 = vmatprep.mubr.f32.mxu0 0.0
    %1510 = vmatmul.mubr.f32.gmra.mrb[0].mxu0 %v1408
    %v1511 = vpop.f32.mrb[0].mxu0
    %v1512 = vadd.f32 %v1383, %v1511
    %v1513 = vpop.f32.mrb[0].mxu0
    %1514 = vdwg.mxu0
    %v1516 = vsel %vm166, %v1233, 0
    %v1519 = vsel %vm166, %v1234, 0
    %v1522 = vsel %vm166, %v1235, 0
    %v1525 = vsel %vm166, %v1236, 0
    %v1528 = vsel %vm166, %v1237, 0
    %v1531 = vsel %vm166, %v1238, 0
    %v1534 = vsel %vm166, %v1239, 0
    %v1537 = vsel %vm166, %v1240, 0
    %1539 = vmatprep.subr.mxu0 0.0
    %1540 = vmatpush1.msra.mxu0 %v232
    %1541 = vmatprep.subr.mxu0 0.0
    %1542 = vmatpush1.msra.mxu0 %v233
    %1543 = vmatprep.subr.mxu0 0.0
    %1544 = vmatpush1.msra.mxu0 %v234
    %1545 = vmatprep.subr.mxu0 0.0
    %1546 = vmatpush1.msra.mxu0 %v235
    %1547 = vmatprep.subr.mxu0 0.0
    %1548 = vmatpush1.msra.mxu0 0.0
    %1549 = vmatprep.subr.mxu0 0.0
    %1550 = vmatpush1.msra.mxu0 0.0
    %1551 = vmatprep.subr.mxu0 0.0
    %1552 = vmatpush1.msra.mxu0 0.0
    %1553 = vmatprep.subr.mxu0 0.0
    %1554 = vmatpush1.msra.mxu0 0.0
    %1555 = vmatprep.subr.mxu0 0.0
    %1556 = vmatpush1.msra.mxu0 0.0
    %1557 = vmatprep.subr.mxu0 0.0
    %1558 = vmatpush1.msra.mxu0 0.0
    %1559 = vmatprep.subr.mxu0 0.0
    %1560 = vmatpush1.msra.mxu0 0.0
    %1561 = vmatprep.subr.mxu0 0.0
    %1562 = vmatpush1.msra.mxu0 0.0
    %1563 = vmatprep.subr.mxu0 0.0
    %1564 = vmatpush1.msra.mxu0 0.0
    %1565 = vmatprep.subr.mxu0 0.0
    %1566 = vmatpush1.msra.mxu0 0.0
    %1567 = vmatprep.subr.mxu0 0.0
    %1568 = vmatpush1.msra.mxu0 0.0
    %1569 = vmatprep.subr.mxu0 0.0
    %1570 = vmatpush1.msra.mxu0 0.0
    %1571 = vmatprep.subr.mxu0 0.0
    %1572 = vmatpush1.msra.mxu0 0.0
    %1573 = vmatprep.subr.mxu0 0.0
    %1574 = vmatpush1.msra.mxu0 0.0
    %1575 = vmatprep.subr.mxu0 0.0
    %1576 = vmatpush1.msra.mxu0 0.0
    %1577 = vmatprep.subr.mxu0 0.0
    %1578 = vmatpush1.msra.mxu0 0.0
    %1579 = vmatprep.subr.mxu0 0.0
    %1580 = vmatpush1.msra.mxu0 0.0
    %1581 = vmatprep.subr.mxu0 0.0
    %1582 = vmatpush1.msra.mxu0 0.0
    %1583 = vmatprep.subr.mxu0 0.0
    %1584 = vmatpush1.msra.mxu0 0.0
    %1585 = vmatprep.subr.mxu0 0.0
    %1586 = vmatpush1.msra.mxu0 0.0
    %1587 = vmatprep.subr.mxu0 0.0
    %1588 = vmatpush1.msra.mxu0 0.0
    %1589 = vmatprep.subr.mxu0 0.0
    %1590 = vmatpush1.msra.mxu0 0.0
    %1591 = vmatprep.subr.mxu0 0.0
    %1592 = vmatpush1.msra.mxu0 0.0
    %1593 = vmatprep.subr.mxu0 0.0
    %1594 = vmatpush1.msra.mxu0 0.0
    %1595 = vmatprep.subr.mxu0 0.0
    %1596 = vmatpush1.msra.mxu0 0.0
    %1597 = vmatprep.subr.mxu0 0.0
    %1598 = vmatpush1.msra.mxu0 0.0
    %1599 = vmatprep.subr.mxu0 0.0
    %1600 = vmatpush1.msra.mxu0 0.0
    %1601 = vmatprep.subr.mxu0 0.0
    %1602 = vmatpush1.msra.mxu0 0.0
    %1603 = vmatprep.mubr.f32.mxu0 0.0
    %1604 = vmatmul.mubr.f32.gmra.mrb[0].mxu0 %v1516
    %v1605 = vpop.f32.mrb[0].mxu0
    %v1606 = vadd.f32 0.0, %v1605
    %v1607 = vpop.f32.mrb[0].mxu0
    %1608 = vmatprep.mubr.f32.mxu0 0.0
    %1609 = vmatmul.mubr.f32.gmra.mrb[0].mxu0 %v1519
    %v1610 = vpop.f32.mrb[0].mxu0
    %v1611 = vadd.f32 0.0, %v1610
    %v1612 = vpop.f32.mrb[0].mxu0
    %1613 = vmatprep.mubr.f32.mxu0 0.0
    %1614 = vmatmul.mubr.f32.gmra.mrb[0].mxu0 %v1522
    %v1615 = vpop.f32.mrb[0].mxu0
    %v1616 = vadd.f32 0.0, %v1615
    %v1617 = vpop.f32.mrb[0].mxu0
    %1618 = vmatprep.mubr.f32.mxu0 0.0
    %1619 = vmatmul.mubr.f32.gmra.mrb[0].mxu0 %v1525
    %v1620 = vpop.f32.mrb[0].mxu0
    %v1621 = vadd.f32 0.0, %v1620
    %v1622 = vpop.f32.mrb[0].mxu0
    %1623 = vmatprep.mubr.f32.mxu0 0.0
    %1624 = vmatmul.mubr.f32.gmra.mrb[0].mxu0 %v1528
    %v1625 = vpop.f32.mrb[0].mxu0
    %v1626 = vadd.f32 0.0, %v1625
    %v1627 = vpop.f32.mrb[0].mxu0
    %1628 = vmatprep.mubr.f32.mxu0 0.0
    %1629 = vmatmul.mubr.f32.gmra.mrb[0].mxu0 %v1531
    %v1630 = vpop.f32.mrb[0].mxu0
    %v1631 = vadd.f32 0.0, %v1630
    %v1632 = vpop.f32.mrb[0].mxu0
    %1633 = vmatprep.mubr.f32.mxu0 0.0
    %1634 = vmatmul.mubr.f32.gmra.mrb[0].mxu0 %v1534
    %v1635 = vpop.f32.mrb[0].mxu0
    %v1636 = vadd.f32 0.0, %v1635
    %v1637 = vpop.f32.mrb[0].mxu0
    %1638 = vmatprep.mubr.f32.mxu0 0.0
    %1639 = vmatmul.mubr.f32.gmra.mrb[0].mxu0 %v1537
    %v1640 = vpop.f32.mrb[0].mxu0
    %v1641 = vadd.f32 0.0, %v1640
    %v1642 = vpop.f32.mrb[0].mxu0
    %1643 = vdwg.mxu0
    %s1644 = scalar_lea.vmem %s1, 2
    %v1645 = vld [vmem:[%s1644] sm:$0x3]
    %v1646 = vsel %vm166, %v1477, 0.0
    %v1647 = vsel %vm166, %v1482, 0.0
    %v1648 = vadd.f32 %v1646, %v1647
    %v1649 = vsel %vm166, %v1487, 0.0
    %v1650 = vadd.f32 %v1648, %v1649
    %v1651 = vsel %vm166, %v1492, 0.0
    %v1652 = vadd.f32 %v1650, %v1651
    %v1653 = vrot.slane %v1652, 4
    %v1654 = vadd.f32 %v1652, %v1653
    %v1655 = vrot.slane %v1654, 2
    %v1656 = vadd.f32 %v1654, %v1655
    %v1657 = vrot.slane %v1656, 1
    %v1658 = vadd.f32 %v1656, %v1657
    %v1659 = vrcp.pop 32.0
    %v1660 = vmul.f32 %v1658, %v1659
    %v1661 = vsub.f32 %v1477, %v1660
    %v1662 = vsub.f32 %v1482, %v1660
    %v1663 = vsub.f32 %v1487, %v1660
    %v1664 = vsub.f32 %v1492, %v1660
    %v1665 = vmul.f32 %v1661, %v1661
    %v1666 = vmul.f32 %v1662, %v1662
    %v1667 = vmul.f32 %v1663, %v1663
    %v1668 = vmul.f32 %v1664, %v1664
    %v1669 = vsel %vm166, %v1665, 0.0
    %v1670 = vsel %vm166, %v1666, 0.0
    %v1671 = vadd.f32 %v1669, %v1670
    %v1672 = vsel %vm166, %v1667, 0.0
    %v1673 = vadd.f32 %v1671, %v1672
    %v1674 = vsel %vm166, %v1668, 0.0
    %v1675 = vadd.f32 %v1673, %v1674
    %v1676 = vrot.slane %v1675, 4
    %v1677 = vadd.f32 %v1675, %v1676
    %v1678 = vrot.slane %v1677, 2
    %v1679 = vadd.f32 %v1677, %v1678
    %v1680 = vrot.slane %v1679, 1
    %v1681 = vadd.f32 %v1679, %v1680
    %v1682 = vmul.f32 %v1681, %v1659
    %v1683 = vadd.f32 %v1682, 1e-05
    %v1684 = vrsqrt.pop %v1683
    %v1685 = vmul.f32 %v1661, %v1684
    %v1686 = vmul.f32 %v1662, %v1684
    %v1687 = vmul.f32 %v1663, %v1684
    %v1688 = vmul.f32 %v1664, %v1684
    %v1689 = vsel %vm166, %v1497, 0.0
    %v1690 = vsel %vm166, %v1502, 0.0
    %v1691 = vadd.f32 %v1689, %v1690
    %v1692 = vsel %vm166, %v1507, 0.0
    %v1693 = vadd.f32 %v1691, %v1692
    %v1694 = vsel %vm166, %v1512, 0.0
    %v1695 = vadd.f32 %v1693, %v1694
    %v1696 = vrot.slane %v1695, 4
    %v1697 = vadd.f32 %v1695, %v1696
    %v1698 = vrot.slane %v1697, 2
    %v1699 = vadd.f32 %v1697, %v1698
    %v1700 = vrot.slane %v1699, 1
    %v1701 = vadd.f32 %v1699, %v1700
    %v1702 = vmul.f32 %v1701, %v1659
    %v1703 = vsub.f32 %v1497, %v1702
    %v1704 = vsub.f32 %v1502, %v1702
    %v1705 = vsub.f32 %v1507, %v1702
    %v1706 = vsub.f32 %v1512, %v1702
    %v1707 = vmul.f32 %v1703, %v1703
    %v1708 = vmul.f32 %v1704, %v1704
    %v1709 = vmul.f32 %v1705, %v1705
    %v1710 = vmul.f32 %v1706, %v1706
    %v1711 = vsel %vm166, %v1707, 0.0
    %v1712 = vsel %vm166, %v1708, 0.0
    %v1713 = vadd.f32 %v1711, %v1712
    %v1714 = vsel %vm166, %v1709, 0.0
    %v1715 = vadd.f32 %v1713, %v1714
    %v1716 = vsel %vm166, %v1710, 0.0
    %v1717 = vadd.f32 %v1715, %v1716
    %v1718 = vrot.slane %v1717, 4
    %v1719 = vadd.f32 %v1717, %v1718
    %v1720 = vrot.slane %v1719, 2
    %v1721 = vadd.f32 %v1719, %v1720
    %v1722 = vrot.slane %v1721, 1
    %v1723 = vadd.f32 %v1721, %v1722
    %v1724 = vmul.f32 %v1723, %v1659
    %v1725 = vadd.f32 %v1724, 1e-05
    %v1726 = vrsqrt.pop %v1725
    %v1727 = vmul.f32 %v1703, %v1726
    %v1728 = vmul.f32 %v1704, %v1726
    %v1729 = vmul.f32 %v1705, %v1726
    %v1730 = vmul.f32 %v1706, %v1726
    %1735 = vrot.lane.b32.xlu0 %v1477, 96
    %v1736 = vpop.permute.xlu0 %1735
    %1737 = vrot.lane.b32.xlu0 %v1482, 96
    %v1738 = vpop.permute.xlu0 %1737
    %1739 = vrot.lane.b32.xlu0 %v1487, 96
    %v1740 = vpop.permute.xlu0 %1739
    %1741 = vrot.lane.b32.xlu0 %v1492, 96
    %v1742 = vpop.permute.xlu0 %1741
    %v1747 = vadd.f32 %v1685, %v1736
    %v1748 = vadd.f32 %v1686, %v1738
    %v1749 = vadd.f32 %v1687, %v1740
    %v1750 = vadd.f32 %v1688, %v1742
    %v1751 = vlaneseq
    %v1752 = vshrl.u32 %v1751, 7
    %v1753 = vsub.s32 0, %v1752
    %v1754 = vrot.slane %v1645, %v1753
    %1756 = vrot.lane.b32.xlu0 %v1754, 96
    %v1757 = vpop.permute.xlu0 %1756
    %v1759 = vmul.f32 %v1747, %v1757
    %v1760 = vmul.f32 %v1748, %v1757
    %v1761 = vmul.f32 %v1749, %v1757
    %v1762 = vmul.f32 %v1750, %v1757
    %v1763 = vadd.f32 %v1759, %v1754
    %v1764 = vadd.f32 %v1760, %v1754
    %v1765 = vadd.f32 %v1761, %v1754
    %v1766 = vadd.f32 %v1762, %v1754
    %v1767 = vmax.f32 %v1763, 0.0
    %v1768 = vmax.f32 %v1764, 0.0
    %v1769 = vmax.f32 %v1765, 0.0
    %v1770 = vmax.f32 %v1766, 0.0
    %1775 = vrot.lane.b32.xlu0 %v1497, 96
    %v1776 = vpop.permute.xlu0 %1775
    %1777 = vrot.lane.b32.xlu0 %v1502, 96
    %v1778 = vpop.permute.xlu0 %1777
    %1779 = vrot.lane.b32.xlu0 %v1507, 96
    %v1780 = vpop.permute.xlu0 %1779
    %1781 = vrot.lane.b32.xlu0 %v1512, 96
    %v1782 = vpop.permute.xlu0 %1781
    %v1787 = vadd.f32 %v1727, %v1776
    %v1788 = vadd.f32 %v1728, %v1778
    %v1789 = vadd.f32 %v1729, %v1780
    %v1790 = vadd.f32 %v1730, %v1782
    %v1791 = vlaneseq
    %v1792 = vshrl.u32 %v1791, 7
    %v1793 = vsub.s32 1, %v1792
    %v1794 = vrot.slane %v1645, %v1793
    %1796 = vrot.lane.b32.xlu0 %v1794, 96
    %v1797 = vpop.permute.xlu0 %1796
    %v1799 = vmul.f32 %v1787, %v1797
    %v1800 = vmul.f32 %v1788, %v1797
    %v1801 = vmul.f32 %v1789, %v1797
    %v1802 = vmul.f32 %v1790, %v1797
    %v1803 = vadd.f32 %v1799, %v1794
    %v1804 = vadd.f32 %v1800, %v1794
    %v1805 = vadd.f32 %v1801, %v1794
    %v1806 = vadd.f32 %v1802, %v1794
    %v1807 = vmax.f32 %v1803, 0.0
    %v1808 = vmax.f32 %v1804, 0.0
    %v1809 = vmax.f32 %v1805, 0.0
    %v1810 = vmax.f32 %v1806, 0.0
    %v1811 = vadd.f32 %v1767, %v1606
    %v1812 = vadd.f32 %v1768, %v1611
    %v1813 = vadd.f32 %v1769, %v1616
    %v1814 = vadd.f32 %v1770, %v1621
    %v1815 = vadd.f32 %v1807, %v1626
    %v1816 = vadd.f32 %v1808, %v1631
    %v1817 = vadd.f32 %v1809, %v1636
    %v1818 = vadd.f32 %v1810, %v1641
    %v1819 = vsel %vm166, %v1811, %v1606
    %v1820 = vsel %vm166, %v1812, %v1611
    %v1821 = vsel %vm166, %v1813, %v1616
    %v1822 = vsel %vm166, %v1814, %v1621
    %v1823 = vsel %vm166, %v1815, %v1626
    %v1824 = vsel %vm166, %v1816, %v1631
    %v1825 = vsel %vm166, %v1817, %v1636
    %v1826 = vsel %vm166, %v1818, %v1641
    %v1827 = vld [vmem:[%s3 + $0x3] sm:$0x1]
    %v1836 = vrot.slane %v1819, 7
    %v1837 = vrot.slane %v1820, 7
    %v1838 = vsel %vm241, %v1836, %v1837
    %v1839 = vrot.slane %v1821, 7
    %v1840 = vsel %vm241, %v1837, %v1839
    %v1841 = vrot.slane %v1822, 7
    %v1842 = vsel %vm241, %v1839, %v1841
    %v1843 = vrot.slane %v1823, 7
    %v1844 = vsel %vm241, %v1841, %v1843
    %v1845 = vrot.slane %v1824, 7
    %v1846 = vsel %vm241, %v1843, %v1845
    %v1847 = vrot.slane %v1825, 7
    %v1848 = vsel %vm241, %v1845, %v1847
    %v1849 = vrot.slane %v1826, 7
    %v1850 = vsel %vm241, %v1847, %v1849
    %v1859 = vsel %vm241, %v1819, %v1836
    %v1860 = vrot.slane %v1819, 1
    %v1861 = vrot.slane %v1820, 1
    %v1862 = vsel %vm254, %v1860, %v1861
    %v1863 = vrot.slane %v1821, 1
    %v1864 = vsel %vm254, %v1861, %v1863
    %v1865 = vrot.slane %v1822, 1
    %v1866 = vsel %vm254, %v1863, %v1865
    %v1867 = vrot.slane %v1823, 1
    %v1868 = vsel %vm254, %v1865, %v1867
    %v1869 = vrot.slane %v1824, 1
    %v1870 = vsel %vm254, %v1867, %v1869
    %v1871 = vrot.slane %v1825, 1
    %v1872 = vsel %vm254, %v1869, %v1871
    %v1873 = vrot.slane %v1826, 1
    %v1874 = vsel %vm254, %v1871, %v1873
    %v1883 = vsel %vm254, %v1873, %v1826
    %vm1884 = vcmp.eq.s32.totalorder %v1162, 0
    %vm1885 = vcmp.eq.s32.totalorder %v1163, 0
    %v1886 = vsel %vm270, %v1862, %v1859
    %v1887 = vsel %vm271, %v1864, %v1838
    %v1888 = vsel %vm1884, %v1866, %v1840
    %v1889 = vsel %vm1885, %v1868, %v1842
    %v1890 = vsel %vm270, %v1870, %v1844
    %v1891 = vsel %vm271, %v1872, %v1846
    %v1892 = vsel %vm1884, %v1874, %v1848
    %v1893 = vsel %vm1885, %v1883, %v1850
    %vm1894 = vcmp.eq.s32.totalorder %v268, 31
    %vm1895 = vcmp.eq.s32.totalorder %v269, 31
    %vm1896 = vcmp.eq.s32.totalorder %v1162, 31
    %vm1897 = vcmp.eq.s32.totalorder %v1163, 31
    %v1898 = vsel %vm1894, %v1859, %v1862
    %v1899 = vsel %vm1895, %v1838, %v1864
    %v1900 = vsel %vm1896, %v1840, %v1866
    %v1901 = vsel %vm1897, %v1842, %v1868
    %v1902 = vsel %vm1894, %v1844, %v1870
    %v1903 = vsel %vm1895, %v1846, %v1872
    %v1904 = vsel %vm1896, %v1848, %v1874
    %v1905 = vsel %vm1897, %v1850, %v1883
    %v1906 = vld [vmem:[#allocation2 + $0x10] sm:$0xff]
    %v1907 = vld [vmem:[#allocation2 + $0x30] sm:$0xff]
    %v1908 = vld [vmem:[#allocation2 + $0x50] sm:$0xff]
    %v1909 = vld [vmem:[#allocation2 + $0x70] sm:$0xff]
    %v1910 = vld [vmem:[#allocation2 + $0x90] sm:$0xff]
    %v1911 = vld [vmem:[#allocation2 + $0xb0] sm:$0xff]
    %v1912 = vld [vmem:[#allocation2 + $0xd0] sm:$0xff]
    %v1913 = vld [vmem:[#allocation2 + $0xf0] sm:$0xff]
    %v1914 = vld [vmem:[#allocation2 + $0x110] sm:$0xff]
    %v1915 = vld [vmem:[#allocation2 + $0x130] sm:$0xff]
    %v1916 = vld [vmem:[#allocation2 + $0x150] sm:$0xff]
    %v1917 = vld [vmem:[#allocation2 + $0x170] sm:$0xff]
    %v1918 = vld [vmem:[#allocation2 + $0x190] sm:$0xff]
    %v1919 = vld [vmem:[#allocation2 + $0x1b0] sm:$0xff]
    %v1920 = vld [vmem:[#allocation2 + $0x1d0] sm:$0xff]
    %v1921 = vld [vmem:[#allocation2 + $0x1f0] sm:$0xff]
    %v1922 = vsel %vm68, %v1819, 0
    %v1924 = vsel %vm68, %v1820, 0
    %v1926 = vsel %vm68, %v1821, 0
    %v1928 = vsel %vm68, %v1822, 0
    %v1930 = vsel %vm68, %v1823, 0
    %v1932 = vsel %vm68, %v1824, 0
    %v1934 = vsel %vm68, %v1825, 0
    %v1936 = vsel %vm68, %v1826, 0
    %1938 = vmatprep.subr.mxu0 0.0
    %1939 = vmatpush1.msra.mxu0 %v1914
    %1940 = vmatprep.subr.mxu0 0.0
    %1941 = vmatpush1.msra.mxu0 %v1915
    %1942 = vmatprep.subr.mxu0 0.0
    %1943 = vmatpush1.msra.mxu0 %v1916
    %1944 = vmatprep.subr.mxu0 0.0
    %1945 = vmatpush1.msra.mxu0 %v1917
    %1946 = vmatprep.subr.mxu0 0.0
    %1947 = vmatpush1.msra.mxu0 %v1918
    %1948 = vmatprep.subr.mxu0 0.0
    %1949 = vmatpush1.msra.mxu0 %v1919
    %1950 = vmatprep.subr.mxu0 0.0
    %1951 = vmatpush1.msra.mxu0 %v1920
    %1952 = vmatprep.subr.mxu0 0.0
    %1953 = vmatpush1.msra.mxu0 %v1921
    %1954 = vmatprep.subr.mxu0 0.0
    %1955 = vmatpush1.msra.mxu0 0.0
    %1956 = vmatprep.subr.mxu0 0.0
    %1957 = vmatpush1.msra.mxu0 0.0
    %1958 = vmatprep.subr.mxu0 0.0
    %1959 = vmatpush1.msra.mxu0 0.0
    %1960 = vmatprep.subr.mxu0 0.0
    %1961 = vmatpush1.msra.mxu0 0.0
    %1962 = vmatprep.subr.mxu0 0.0
    %1963 = vmatpush1.msra.mxu0 0.0
    %1964 = vmatprep.subr.mxu0 0.0
    %1965 = vmatpush1.msra.mxu0 0.0
    %1966 = vmatprep.subr.mxu0 0.0
    %1967 = vmatpush1.msra.mxu0 0.0
    %1968 = vmatprep.subr.mxu0 0.0
    %1969 = vmatpush1.msra.mxu0 0.0
    %1970 = vmatprep.subr.mxu0 0.0
    %1971 = vmatpush1.msra.mxu0 0.0
    %1972 = vmatprep.subr.mxu0 0.0
    %1973 = vmatpush1.msra.mxu0 0.0
    %1974 = vmatprep.subr.mxu0 0.0
    %1975 = vmatpush1.msra.mxu0 0.0
    %1976 = vmatprep.subr.mxu0 0.0
    %1977 = vmatpush1.msra.mxu0 0.0
    %1978 = vmatprep.subr.mxu0 0.0
    %1979 = vmatpush1.msra.mxu0 0.0
    %1980 = vmatprep.subr.mxu0 0.0
    %1981 = vmatpush1.msra.mxu0 0.0
    %1982 = vmatprep.subr.mxu0 0.0
    %1983 = vmatpush1.msra.mxu0 0.0
    %1984 = vmatprep.subr.mxu0 0.0
    %1985 = vmatpush1.msra.mxu0 0.0
    %1986 = vmatprep.subr.mxu0 0.0
    %1987 = vmatpush1.msra.mxu0 0.0
    %1988 = vmatprep.subr.mxu0 0.0
    %1989 = vmatpush1.msra.mxu0 0.0
    %1990 = vmatprep.subr.mxu0 0.0
    %1991 = vmatpush1.msra.mxu0 0.0
    %1992 = vmatprep.subr.mxu0 0.0
    %1993 = vmatpush1.msra.mxu0 0.0
    %1994 = vmatprep.subr.mxu0 0.0
    %1995 = vmatpush1.msra.mxu0 0.0
    %1996 = vmatprep.subr.mxu0 0.0
    %1997 = vmatpush1.msra.mxu0 0.0
    %1998 = vmatprep.subr.mxu0 0.0
    %1999 = vmatpush1.msra.mxu0 0.0
    %2000 = vmatprep.subr.mxu0 0.0
    %2001 = vmatpush1.msra.mxu0 0.0
    %2002 = vmatprep.mubr.f32.mxu0 0.0
    %2003 = vmatmul.mubr.f32.gmra.mrb[0].mxu0 %v1922
    %v2004 = vpop.f32.mrb[0].mxu0
    %v2005 = vadd.f32 0.0, %v2004
    %v2006 = vpop.f32.mrb[0].mxu0
    %2007 = vmatprep.mubr.f32.mxu0 0.0
    %2008 = vmatmul.mubr.f32.gmra.mrb[0].mxu0 %v1924
    %v2009 = vpop.f32.mrb[0].mxu0
    %v2010 = vadd.f32 0.0, %v2009
    %v2011 = vpop.f32.mrb[0].mxu0
    %2012 = vmatprep.mubr.f32.mxu0 0.0
    %2013 = vmatmul.mubr.f32.gmra.mrb[0].mxu0 %v1926
    %v2014 = vpop.f32.mrb[0].mxu0
    %v2015 = vadd.f32 0.0, %v2014
    %v2016 = vpop.f32.mrb[0].mxu0
    %2017 = vmatprep.mubr.f32.mxu0 0.0
    %2018 = vmatmul.mubr.f32.gmra.mrb[0].mxu0 %v1928
    %v2019 = vpop.f32.mrb[0].mxu0
    %v2020 = vadd.f32 0.0, %v2019
    %v2021 = vpop.f32.mrb[0].mxu0
    %2022 = vmatprep.mubr.f32.mxu0 0.0
    %2023 = vmatmul.mubr.f32.gmra.mrb[0].mxu0 %v1930
    %v2024 = vpop.f32.mrb[0].mxu0
    %v2025 = vadd.f32 0.0, %v2024
    %v2026 = vpop.f32.mrb[0].mxu0
    %2027 = vmatprep.mubr.f32.mxu0 0.0
    %2028 = vmatmul.mubr.f32.gmra.mrb[0].mxu0 %v1932
    %v2029 = vpop.f32.mrb[0].mxu0
    %v2030 = vadd.f32 0.0, %v2029
    %v2031 = vpop.f32.mrb[0].mxu0
    %2032 = vmatprep.mubr.f32.mxu0 0.0
    %2033 = vmatmul.mubr.f32.gmra.mrb[0].mxu0 %v1934
    %v2034 = vpop.f32.mrb[0].mxu0
    %v2035 = vadd.f32 0.0, %v2034
    %v2036 = vpop.f32.mrb[0].mxu0
    %2037 = vmatprep.mubr.f32.mxu0 0.0
    %2038 = vmatmul.mubr.f32.gmra.mrb[0].mxu0 %v1936
    %v2039 = vpop.f32.mrb[0].mxu0
    %v2040 = vadd.f32 0.0, %v2039
    %v2041 = vpop.f32.mrb[0].mxu0
    %2042 = vdwg.mxu0
    %v2044 = vsel %vm68, %v1886, 0
    %v2047 = vsel %vm68, %v1887, 0
    %v2050 = vsel %vm68, %v1888, 0
    %v2053 = vsel %vm68, %v1889, 0
    %v2056 = vsel %vm68, %v1890, 0
    %v2059 = vsel %vm68, %v1891, 0
    %v2062 = vsel %vm68, %v1892, 0
    %v2065 = vsel %vm68, %v1893, 0
    %2067 = vmatprep.subr.mxu0 0.0
    %2068 = vmatpush1.msra.mxu0 %v1906
    %2069 = vmatprep.subr.mxu0 0.0
    %2070 = vmatpush1.msra.mxu0 %v1907
    %2071 = vmatprep.subr.mxu0 0.0
    %2072 = vmatpush1.msra.mxu0 %v1908
    %2073 = vmatprep.subr.mxu0 0.0
    %2074 = vmatpush1.msra.mxu0 %v1909
    %2075 = vmatprep.subr.mxu0 0.0
    %2076 = vmatpush1.msra.mxu0 %v1910
    %2077 = vmatprep.subr.mxu0 0.0
    %2078 = vmatpush1.msra.mxu0 %v1911
    %2079 = vmatprep.subr.mxu0 0.0
    %2080 = vmatpush1.msra.mxu0 %v1912
    %2081 = vmatprep.subr.mxu0 0.0
    %2082 = vmatpush1.msra.mxu0 %v1913
    %2083 = vmatprep.subr.mxu0 0.0
    %2084 = vmatpush1.msra.mxu0 0.0
    %2085 = vmatprep.subr.mxu0 0.0
    %2086 = vmatpush1.msra.mxu0 0.0
    %2087 = vmatprep.subr.mxu0 0.0
    %2088 = vmatpush1.msra.mxu0 0.0
    %2089 = vmatprep.subr.mxu0 0.0
    %2090 = vmatpush1.msra.mxu0 0.0
    %2091 = vmatprep.subr.mxu0 0.0
    %2092 = vmatpush1.msra.mxu0 0.0
    %2093 = vmatprep.subr.mxu0 0.0
    %2094 = vmatpush1.msra.mxu0 0.0
    %2095 = vmatprep.subr.mxu0 0.0
    %2096 = vmatpush1.msra.mxu0 0.0
    %2097 = vmatprep.subr.mxu0 0.0
    %2098 = vmatpush1.msra.mxu0 0.0
    %2099 = vmatprep.subr.mxu0 0.0
    %2100 = vmatpush1.msra.mxu0 0.0
    %2101 = vmatprep.subr.mxu0 0.0
    %2102 = vmatpush1.msra.mxu0 0.0
    %2103 = vmatprep.subr.mxu0 0.0
    %2104 = vmatpush1.msra.mxu0 0.0
    %2105 = vmatprep.subr.mxu0 0.0
    %2106 = vmatpush1.msra.mxu0 0.0
    %2107 = vmatprep.subr.mxu0 0.0
    %2108 = vmatpush1.msra.mxu0 0.0
    %2109 = vmatprep.subr.mxu0 0.0
    %2110 = vmatpush1.msra.mxu0 0.0
    %2111 = vmatprep.subr.mxu0 0.0
    %2112 = vmatpush1.msra.mxu0 0.0
    %2113 = vmatprep.subr.mxu0 0.0
    %2114 = vmatpush1.msra.mxu0 0.0
    %2115 = vmatprep.subr.mxu0 0.0
    %2116 = vmatpush1.msra.mxu0 0.0
    %2117 = vmatprep.subr.mxu0 0.0
    %2118 = vmatpush1.msra.mxu0 0.0
    %2119 = vmatprep.subr.mxu0 0.0
    %2120 = vmatpush1.msra.mxu0 0.0
    %2121 = vmatprep.subr.mxu0 0.0
    %2122 = vmatpush1.msra.mxu0 0.0
    %2123 = vmatprep.subr.mxu0 0.0
    %2124 = vmatpush1.msra.mxu0 0.0
    %2125 = vmatprep.subr.mxu0 0.0
    %2126 = vmatpush1.msra.mxu0 0.0
    %2127 = vmatprep.subr.mxu0 0.0
    %2128 = vmatpush1.msra.mxu0 0.0
    %2129 = vmatprep.subr.mxu0 0.0
    %2130 = vmatpush1.msra.mxu0 0.0
    %2131 = vmatprep.mubr.f32.mxu0 0.0
    %2132 = vmatmul.mubr.f32.gmra.mrb[0].mxu0 %v2044
    %v2133 = vpop.f32.mrb[0].mxu0
    %v2134 = vadd.f32 %v2005, %v2133
    %v2135 = vpop.f32.mrb[0].mxu0
    %2136 = vmatprep.mubr.f32.mxu0 0.0
    %2137 = vmatmul.mubr.f32.gmra.mrb[0].mxu0 %v2047
    %v2138 = vpop.f32.mrb[0].mxu0
    %v2139 = vadd.f32 %v2010, %v2138
    %v2140 = vpop.f32.mrb[0].mxu0
    %2141 = vmatprep.mubr.f32.mxu0 0.0
    %2142 = vmatmul.mubr.f32.gmra.mrb[0].mxu0 %v2050
    %v2143 = vpop.f32.mrb[0].mxu0
    %v2144 = vadd.f32 %v2015, %v2143
    %v2145 = vpop.f32.mrb[0].mxu0
    %2146 = vmatprep.mubr.f32.mxu0 0.0
    %2147 = vmatmul.mubr.f32.gmra.mrb[0].mxu0 %v2053
    %v2148 = vpop.f32.mrb[0].mxu0
    %v2149 = vadd.f32 %v2020, %v2148
    %v2150 = vpop.f32.mrb[0].mxu0
    %2151 = vmatprep.mubr.f32.mxu0 0.0
    %2152 = vmatmul.mubr.f32.gmra.mrb[0].mxu0 %v2056
    %v2153 = vpop.f32.mrb[0].mxu0
    %v2154 = vadd.f32 %v2025, %v2153
    %v2155 = vpop.f32.mrb[0].mxu0
    %2156 = vmatprep.mubr.f32.mxu0 0.0
    %2157 = vmatmul.mubr.f32.gmra.mrb[0].mxu0 %v2059
    %v2158 = vpop.f32.mrb[0].mxu0
    %v2159 = vadd.f32 %v2030, %v2158
    %v2160 = vpop.f32.mrb[0].mxu0
    %2161 = vmatprep.mubr.f32.mxu0 0.0
    %2162 = vmatmul.mubr.f32.gmra.mrb[0].mxu0 %v2062
    %v2163 = vpop.f32.mrb[0].mxu0
    %v2164 = vadd.f32 %v2035, %v2163
    %v2165 = vpop.f32.mrb[0].mxu0
    %2166 = vmatprep.mubr.f32.mxu0 0.0
    %2167 = vmatmul.mubr.f32.gmra.mrb[0].mxu0 %v2065
    %v2168 = vpop.f32.mrb[0].mxu0
    %v2169 = vadd.f32 %v2040, %v2168
    %v2170 = vpop.f32.mrb[0].mxu0
    %2171 = vdwg.mxu0
    %v2172 = vld [vmem:[#allocation2 + $0x210] sm:$0xff]
    %v2173 = vld [vmem:[#allocation2 + $0x230] sm:$0xff]
    %v2174 = vld [vmem:[#allocation2 + $0x250] sm:$0xff]
    %v2175 = vld [vmem:[#allocation2 + $0x270] sm:$0xff]
    %v2176 = vld [vmem:[#allocation2 + $0x290] sm:$0xff]
    %v2177 = vld [vmem:[#allocation2 + $0x2b0] sm:$0xff]
    %v2178 = vld [vmem:[#allocation2 + $0x2d0] sm:$0xff]
    %v2179 = vld [vmem:[#allocation2 + $0x2f0] sm:$0xff]
    %v2181 = vsel %vm68, %v1898, 0
    %v2184 = vsel %vm68, %v1899, 0
    %v2187 = vsel %vm68, %v1900, 0
    %v2190 = vsel %vm68, %v1901, 0
    %v2193 = vsel %vm68, %v1902, 0
    %v2196 = vsel %vm68, %v1903, 0
    %v2199 = vsel %vm68, %v1904, 0
    %v2202 = vsel %vm68, %v1905, 0
    %2204 = vmatprep.subr.mxu0 0.0
    %2205 = vmatpush1.msra.mxu0 %v2172
    %2206 = vmatprep.subr.mxu0 0.0
    %2207 = vmatpush1.msra.mxu0 %v2173
    %2208 = vmatprep.subr.mxu0 0.0
    %2209 = vmatpush1.msra.mxu0 %v2174
    %2210 = vmatprep.subr.mxu0 0.0
    %2211 = vmatpush1.msra.mxu0 %v2175
    %2212 = vmatprep.subr.mxu0 0.0
    %2213 = vmatpush1.msra.mxu0 %v2176
    %2214 = vmatprep.subr.mxu0 0.0
    %2215 = vmatpush1.msra.mxu0 %v2177
    %2216 = vmatprep.subr.mxu0 0.0
    %2217 = vmatpush1.msra.mxu0 %v2178
    %2218 = vmatprep.subr.mxu0 0.0
    %2219 = vmatpush1.msra.mxu0 %v2179
    %2220 = vmatprep.subr.mxu0 0.0
    %2221 = vmatpush1.msra.mxu0 0.0
    %2222 = vmatprep.subr.mxu0 0.0
    %2223 = vmatpush1.msra.mxu0 0.0
    %2224 = vmatprep.subr.mxu0 0.0
    %2225 = vmatpush1.msra.mxu0 0.0
    %2226 = vmatprep.subr.mxu0 0.0
    %2227 = vmatpush1.msra.mxu0 0.0
    %2228 = vmatprep.subr.mxu0 0.0
    %2229 = vmatpush1.msra.mxu0 0.0
    %2230 = vmatprep.subr.mxu0 0.0
    %2231 = vmatpush1.msra.mxu0 0.0
    %2232 = vmatprep.subr.mxu0 0.0
    %2233 = vmatpush1.msra.mxu0 0.0
    %2234 = vmatprep.subr.mxu0 0.0
    %2235 = vmatpush1.msra.mxu0 0.0
    %2236 = vmatprep.subr.mxu0 0.0
    %2237 = vmatpush1.msra.mxu0 0.0
    %2238 = vmatprep.subr.mxu0 0.0
    %2239 = vmatpush1.msra.mxu0 0.0
    %2240 = vmatprep.subr.mxu0 0.0
    %2241 = vmatpush1.msra.mxu0 0.0
    %2242 = vmatprep.subr.mxu0 0.0
    %2243 = vmatpush1.msra.mxu0 0.0
    %2244 = vmatprep.subr.mxu0 0.0
    %2245 = vmatpush1.msra.mxu0 0.0
    %2246 = vmatprep.subr.mxu0 0.0
    %2247 = vmatpush1.msra.mxu0 0.0
    %2248 = vmatprep.subr.mxu0 0.0
    %2249 = vmatpush1.msra.mxu0 0.0
    %2250 = vmatprep.subr.mxu0 0.0
    %2251 = vmatpush1.msra.mxu0 0.0
    %2252 = vmatprep.subr.mxu0 0.0
    %2253 = vmatpush1.msra.mxu0 0.0
    %2254 = vmatprep.subr.mxu0 0.0
    %2255 = vmatpush1.msra.mxu0 0.0
    %2256 = vmatprep.subr.mxu0 0.0
    %2257 = vmatpush1.msra.mxu0 0.0
    %2258 = vmatprep.subr.mxu0 0.0
    %2259 = vmatpush1.msra.mxu0 0.0
    %2260 = vmatprep.subr.mxu0 0.0
    %2261 = vmatpush1.msra.mxu0 0.0
    %2262 = vmatprep.subr.mxu0 0.0
    %2263 = vmatpush1.msra.mxu0 0.0
    %2264 = vmatprep.subr.mxu0 0.0
    %2265 = vmatpush1.msra.mxu0 0.0
    %2266 = vmatprep.subr.mxu0 0.0
    %2267 = vmatpush1.msra.mxu0 0.0
    %2268 = vmatprep.mubr.f32.mxu0 0.0
    %2269 = vmatmul.mubr.f32.gmra.mrb[0].mxu0 %v2181
    %v2270 = vpop.f32.mrb[0].mxu0
    %v2271 = vadd.f32 0.0, %v2270
    %v2272 = vpop.f32.mrb[0].mxu0
    %2273 = vmatprep.mubr.f32.mxu0 0.0
    %2274 = vmatmul.mubr.f32.gmra.mrb[0].mxu0 %v2184
    %v2275 = vpop.f32.mrb[0].mxu0
    %v2276 = vadd.f32 0.0, %v2275
    %v2277 = vpop.f32.mrb[0].mxu0
    %2278 = vmatprep.mubr.f32.mxu0 0.0
    %2279 = vmatmul.mubr.f32.gmra.mrb[0].mxu0 %v2187
    %v2280 = vpop.f32.mrb[0].mxu0
    %v2281 = vadd.f32 0.0, %v2280
    %v2282 = vpop.f32.mrb[0].mxu0
    %2283 = vmatprep.mubr.f32.mxu0 0.0
    %2284 = vmatmul.mubr.f32.gmra.mrb[0].mxu0 %v2190
    %v2285 = vpop.f32.mrb[0].mxu0
    %v2286 = vadd.f32 0.0, %v2285
    %v2287 = vpop.f32.mrb[0].mxu0
    %2288 = vmatprep.mubr.f32.mxu0 0.0
    %2289 = vmatmul.mubr.f32.gmra.mrb[0].mxu0 %v2193
    %v2290 = vpop.f32.mrb[0].mxu0
    %v2291 = vadd.f32 0.0, %v2290
    %v2292 = vpop.f32.mrb[0].mxu0
    %2293 = vmatprep.mubr.f32.mxu0 0.0
    %2294 = vmatmul.mubr.f32.gmra.mrb[0].mxu0 %v2196
    %v2295 = vpop.f32.mrb[0].mxu0
    %v2296 = vadd.f32 0.0, %v2295
    %v2297 = vpop.f32.mrb[0].mxu0
    %2298 = vmatprep.mubr.f32.mxu0 0.0
    %2299 = vmatmul.mubr.f32.gmra.mrb[0].mxu0 %v2199
    %v2300 = vpop.f32.mrb[0].mxu0
    %v2301 = vadd.f32 0.0, %v2300
    %v2302 = vpop.f32.mrb[0].mxu0
    %2303 = vmatprep.mubr.f32.mxu0 0.0
    %2304 = vmatmul.mubr.f32.gmra.mrb[0].mxu0 %v2202
    %v2305 = vpop.f32.mrb[0].mxu0
    %v2306 = vadd.f32 0.0, %v2305
    %v2307 = vpop.f32.mrb[0].mxu0
    %2308 = vdwg.mxu0
    %v2309 = vadd.f32 %v2134, %v2271
    %v2310 = vadd.f32 %v2139, %v2276
    %v2311 = vadd.f32 %v2144, %v2281
    %v2312 = vadd.f32 %v2149, %v2286
    %v2313 = vadd.f32 %v2154, %v2291
    %v2314 = vadd.f32 %v2159, %v2296
    %v2315 = vadd.f32 %v2164, %v2301
    %v2316 = vadd.f32 %v2169, %v2306
    %v2317 = vlaneseq
    %v2318 = vshrl.u32 %v2317, 7
    %v2319 = vsub.s32 0, %v2318
    %v2320 = vrot.slane %v1827, %v2319
    %v2321 = vadd.f32 %v2309, %v2320
    %v2322 = vadd.f32 %v2310, %v2320
    %v2323 = vadd.f32 %v2311, %v2320
    %v2324 = vadd.f32 %v2312, %v2320
    %v2325 = vadd.f32 %v2313, %v2320
    %v2326 = vadd.f32 %v2314, %v2320
    %v2327 = vadd.f32 %v2315, %v2320
    %v2328 = vadd.f32 %v2316, %v2320
    %s2329 = scalar_lea.vmem %s1, 4
    %v2330 = vld [vmem:[%s2329] sm:$0x3]
    %v2331 = vsel %vm166, %v2321, 0.0
    %v2332 = vsel %vm166, %v2322, 0.0
    %v2333 = vadd.f32 %v2331, %v2332
    %v2334 = vsel %vm166, %v2323, 0.0
    %v2335 = vadd.f32 %v2333, %v2334
    %v2336 = vsel %vm166, %v2324, 0.0
    %v2337 = vadd.f32 %v2335, %v2336
    %v2338 = vrot.slane %v2337, 4
    %v2339 = vadd.f32 %v2337, %v2338
    %v2340 = vrot.slane %v2339, 2
    %v2341 = vadd.f32 %v2339, %v2340
    %v2342 = vrot.slane %v2341, 1
    %v2343 = vadd.f32 %v2341, %v2342
    %v2344 = vmul.f32 %v2343, %v1659
    %v2345 = vsub.f32 %v2321, %v2344
    %v2346 = vsub.f32 %v2322, %v2344
    %v2347 = vsub.f32 %v2323, %v2344
    %v2348 = vsub.f32 %v2324, %v2344
    %v2349 = vmul.f32 %v2345, %v2345
    %v2350 = vmul.f32 %v2346, %v2346
    %v2351 = vmul.f32 %v2347, %v2347
    %v2352 = vmul.f32 %v2348, %v2348
    %v2353 = vsel %vm166, %v2349, 0.0
    %v2354 = vsel %vm166, %v2350, 0.0
    %v2355 = vadd.f32 %v2353, %v2354
    %v2356 = vsel %vm166, %v2351, 0.0
    %v2357 = vadd.f32 %v2355, %v2356
    %v2358 = vsel %vm166, %v2352, 0.0
    %v2359 = vadd.f32 %v2357, %v2358
    %v2360 = vrot.slane %v2359, 4
    %v2361 = vadd.f32 %v2359, %v2360
    %v2362 = vrot.slane %v2361, 2
    %v2363 = vadd.f32 %v2361, %v2362
    %v2364 = vrot.slane %v2363, 1
    %v2365 = vadd.f32 %v2363, %v2364
    %v2366 = vmul.f32 %v2365, %v1659
    %v2367 = vadd.f32 %v2366, 1e-05
    %v2368 = vrsqrt.pop %v2367
    %v2369 = vmul.f32 %v2345, %v2368
    %v2370 = vmul.f32 %v2346, %v2368
    %v2371 = vmul.f32 %v2347, %v2368
    %v2372 = vmul.f32 %v2348, %v2368
    %v2373 = vsel %vm166, %v2325, 0.0
    %v2374 = vsel %vm166, %v2326, 0.0
    %v2375 = vadd.f32 %v2373, %v2374
    %v2376 = vsel %vm166, %v2327, 0.0
    %v2377 = vadd.f32 %v2375, %v2376
    %v2378 = vsel %vm166, %v2328, 0.0
    %v2379 = vadd.f32 %v2377, %v2378
    %v2380 = vrot.slane %v2379, 4
    %v2381 = vadd.f32 %v2379, %v2380
    %v2382 = vrot.slane %v2381, 2
    %v2383 = vadd.f32 %v2381, %v2382
    %v2384 = vrot.slane %v2383, 1
    %v2385 = vadd.f32 %v2383, %v2384
    %v2386 = vmul.f32 %v2385, %v1659
    %v2387 = vsub.f32 %v2325, %v2386
    %v2388 = vsub.f32 %v2326, %v2386
    %v2389 = vsub.f32 %v2327, %v2386
    %v2390 = vsub.f32 %v2328, %v2386
    %v2391 = vmul.f32 %v2387, %v2387
    %v2392 = vmul.f32 %v2388, %v2388
    %v2393 = vmul.f32 %v2389, %v2389
    %v2394 = vmul.f32 %v2390, %v2390
    %v2395 = vsel %vm166, %v2391, 0.0
    %v2396 = vsel %vm166, %v2392, 0.0
    %v2397 = vadd.f32 %v2395, %v2396
    %v2398 = vsel %vm166, %v2393, 0.0
    %v2399 = vadd.f32 %v2397, %v2398
    %v2400 = vsel %vm166, %v2394, 0.0
    %v2401 = vadd.f32 %v2399, %v2400
    %v2402 = vrot.slane %v2401, 4
    %v2403 = vadd.f32 %v2401, %v2402
    %v2404 = vrot.slane %v2403, 2
    %v2405 = vadd.f32 %v2403, %v2404
    %v2406 = vrot.slane %v2405, 1
    %v2407 = vadd.f32 %v2405, %v2406
    %v2408 = vmul.f32 %v2407, %v1659
    %v2409 = vadd.f32 %v2408, 1e-05
    %v2410 = vrsqrt.pop %v2409
    %v2411 = vmul.f32 %v2387, %v2410
    %v2412 = vmul.f32 %v2388, %v2410
    %v2413 = vmul.f32 %v2389, %v2410
    %v2414 = vmul.f32 %v2390, %v2410
    %2419 = vrot.lane.b32.xlu0 %v2321, 96
    %v2420 = vpop.permute.xlu0 %2419
    %2421 = vrot.lane.b32.xlu0 %v2322, 96
    %v2422 = vpop.permute.xlu0 %2421
    %2423 = vrot.lane.b32.xlu0 %v2323, 96
    %v2424 = vpop.permute.xlu0 %2423
    %2425 = vrot.lane.b32.xlu0 %v2324, 96
    %v2426 = vpop.permute.xlu0 %2425
    %v2431 = vadd.f32 %v2369, %v2420
    %v2432 = vadd.f32 %v2370, %v2422
    %v2433 = vadd.f32 %v2371, %v2424
    %v2434 = vadd.f32 %v2372, %v2426
    %v2435 = vlaneseq
    %v2436 = vshrl.u32 %v2435, 7
    %v2437 = vsub.s32 0, %v2436
    %v2438 = vrot.slane %v2330, %v2437
    %2440 = vrot.lane.b32.xlu0 %v2438, 96
    %v2441 = vpop.permute.xlu0 %2440
    %v2443 = vmul.f32 %v2431, %v2441
    %v2444 = vmul.f32 %v2432, %v2441
    %v2445 = vmul.f32 %v2433, %v2441
    %v2446 = vmul.f32 %v2434, %v2441
    %v2447 = vadd.f32 %v2443, %v2438
    %v2448 = vadd.f32 %v2444, %v2438
    %v2449 = vadd.f32 %v2445, %v2438
    %v2450 = vadd.f32 %v2446, %v2438
    %v2451 = vmax.f32 %v2447, 0.0
    %v2452 = vmax.f32 %v2448, 0.0
    %v2453 = vmax.f32 %v2449, 0.0
    %v2454 = vmax.f32 %v2450, 0.0
    %2459 = vrot.lane.b32.xlu0 %v2325, 96
    %v2460 = vpop.permute.xlu0 %2459
    %2461 = vrot.lane.b32.xlu0 %v2326, 96
    %v2462 = vpop.permute.xlu0 %2461
    %2463 = vrot.lane.b32.xlu0 %v2327, 96
    %v2464 = vpop.permute.xlu0 %2463
    %2465 = vrot.lane.b32.xlu0 %v2328, 96
    %v2466 = vpop.permute.xlu0 %2465
    %v2471 = vadd.f32 %v2411, %v2460
    %v2472 = vadd.f32 %v2412, %v2462
    %v2473 = vadd.f32 %v2413, %v2464
    %v2474 = vadd.f32 %v2414, %v2466
    %v2475 = vlaneseq
    %v2476 = vshrl.u32 %v2475, 7
    %v2477 = vsub.s32 1, %v2476
    %v2478 = vrot.slane %v2330, %v2477
    %2480 = vrot.lane.b32.xlu0 %v2478, 96
    %v2481 = vpop.permute.xlu0 %2480
    %v2483 = vmul.f32 %v2471, %v2481
    %v2484 = vmul.f32 %v2472, %v2481
    %v2485 = vmul.f32 %v2473, %v2481
    %v2486 = vmul.f32 %v2474, %v2481
    %v2487 = vadd.f32 %v2483, %v2478
    %v2488 = vadd.f32 %v2484, %v2478
    %v2489 = vadd.f32 %v2485, %v2478
    %v2490 = vadd.f32 %v2486, %v2478
    %v2491 = vmax.f32 %v2487, 0.0
    %v2492 = vmax.f32 %v2488, 0.0
    %v2493 = vmax.f32 %v2489, 0.0
    %v2494 = vmax.f32 %v2490, 0.0
    %v2495 = vsel %vm166, %v2451, %v2321
    %v2496 = vsel %vm166, %v2452, %v2322
    %v2497 = vsel %vm166, %v2453, %v2323
    %v2498 = vsel %vm166, %v2454, %v2324
    %v2499 = vsel %vm166, %v2491, %v2325
    %v2500 = vsel %vm166, %v2492, %v2326
    %v2501 = vsel %vm166, %v2493, %v2327
    %v2502 = vsel %vm166, %v2494, %v2328
    %v2503 = vld [vmem:[%s3 + $0x4] sm:$0x1]
    %v2512 = vrot.slane %v2495, 7
    %v2513 = vrot.slane %v2496, 7
    %v2514 = vsel %vm241, %v2512, %v2513
    %v2515 = vrot.slane %v2497, 7
    %v2516 = vsel %vm241, %v2513, %v2515
    %v2517 = vrot.slane %v2498, 7
    %v2518 = vsel %vm241, %v2515, %v2517
    %v2519 = vrot.slane %v2499, 7
    %v2520 = vsel %vm241, %v2517, %v2519
    %v2521 = vrot.slane %v2500, 7
    %v2522 = vsel %vm241, %v2519, %v2521
    %v2523 = vrot.slane %v2501, 7
    %v2524 = vsel %vm241, %v2521, %v2523
    %v2525 = vrot.slane %v2502, 7
    %v2526 = vsel %vm241, %v2523, %v2525
    %v2535 = vsel %vm241, %v2495, %v2512
    %v2536 = vrot.slane %v2495, 1
    %v2537 = vrot.slane %v2496, 1
    %v2538 = vsel %vm254, %v2536, %v2537
    %v2539 = vrot.slane %v2497, 1
    %v2540 = vsel %vm254, %v2537, %v2539
    %v2541 = vrot.slane %v2498, 1
    %v2542 = vsel %vm254, %v2539, %v2541
    %v2543 = vrot.slane %v2499, 1
    %v2544 = vsel %vm254, %v2541, %v2543
    %v2545 = vrot.slane %v2500, 1
    %v2546 = vsel %vm254, %v2543, %v2545
    %v2547 = vrot.slane %v2501, 1
    %v2548 = vsel %vm254, %v2545, %v2547
    %v2549 = vrot.slane %v2502, 1
    %v2550 = vsel %vm254, %v2547, %v2549
    %v2559 = vsel %vm254, %v2549, %v2502
    %v2560 = vsel %vm270, %v2538, %v2535
    %v2561 = vsel %vm271, %v2540, %v2514
    %v2562 = vsel %vm1884, %v2542, %v2516
    %v2563 = vsel %vm1885, %v2544, %v2518
    %v2564 = vsel %vm270, %v2546, %v2520
    %v2565 = vsel %vm271, %v2548, %v2522
    %v2566 = vsel %vm1884, %v2550, %v2524
    %v2567 = vsel %vm1885, %v2559, %v2526
    %v2568 = vsel %vm1894, %v2535, %v2538
    %v2569 = vsel %vm1895, %v2514, %v2540
    %v2570 = vsel %vm1896, %v2516, %v2542
    %v2571 = vsel %vm1897, %v2518, %v2544
    %v2572 = vsel %vm1894, %v2520, %v2546
    %v2573 = vsel %vm1895, %v2522, %v2548
    %v2574 = vsel %vm1896, %v2524, %v2550
    %v2575 = vsel %vm1897, %v2526, %v2559
    %2584 = vrot.lane.b32.xlu0 %v1914, 64
    %v2585 = vpop.permute.xlu0 %2584
    %2586 = vrot.lane.b32.xlu0 %v1915, 64
    %v2587 = vpop.permute.xlu0 %2586
    %2588 = vrot.lane.b32.xlu0 %v1916, 64
    %v2589 = vpop.permute.xlu0 %2588
    %2590 = vrot.lane.b32.xlu0 %v1917, 64
    %v2591 = vpop.permute.xlu0 %2590
    %2592 = vrot.lane.b32.xlu0 %v1918, 64
    %v2593 = vpop.permute.xlu0 %2592
    %2594 = vrot.lane.b32.xlu0 %v1919, 64
    %v2595 = vpop.permute.xlu0 %2594
    %2596 = vrot.lane.b32.xlu0 %v1920, 64
    %v2597 = vpop.permute.xlu0 %2596
    %2598 = vrot.lane.b32.xlu0 %v1921, 64
    %v2599 = vpop.permute.xlu0 %2598
    %v2608 = vsel %vm68, %v2495, 0
    %v2610 = vsel %vm68, %v2496, 0
    %v2612 = vsel %vm68, %v2497, 0
    %v2614 = vsel %vm68, %v2498, 0
    %v2616 = vsel %vm68, %v2499, 0
    %v2618 = vsel %vm68, %v2500, 0
    %v2620 = vsel %vm68, %v2501, 0
    %v2622 = vsel %vm68, %v2502, 0
    %2624 = vmatprep.subr.mxu0 0.0
    %2625 = vmatpush1.msra.mxu0 %v2585
    %2626 = vmatprep.subr.mxu0 0.0
    %2627 = vmatpush1.msra.mxu0 %v2587
    %2628 = vmatprep.subr.mxu0 0.0
    %2629 = vmatpush1.msra.mxu0 %v2589
    %2630 = vmatprep.subr.mxu0 0.0
    %2631 = vmatpush1.msra.mxu0 %v2591
    %2632 = vmatprep.subr.mxu0 0.0
    %2633 = vmatpush1.msra.mxu0 %v2593
    %2634 = vmatprep.subr.mxu0 0.0
    %2635 = vmatpush1.msra.mxu0 %v2595
    %2636 = vmatprep.subr.mxu0 0.0
    %2637 = vmatpush1.msra.mxu0 %v2597
    %2638 = vmatprep.subr.mxu0 0.0
    %2639 = vmatpush1.msra.mxu0 %v2599
    %2640 = vmatprep.subr.mxu0 0.0
    %2641 = vmatpush1.msra.mxu0 0.0
    %2642 = vmatprep.subr.mxu0 0.0
    %2643 = vmatpush1.msra.mxu0 0.0
    %2644 = vmatprep.subr.mxu0 0.0
    %2645 = vmatpush1.msra.mxu0 0.0
    %2646 = vmatprep.subr.mxu0 0.0
    %2647 = vmatpush1.msra.mxu0 0.0
    %2648 = vmatprep.subr.mxu0 0.0
    %2649 = vmatpush1.msra.mxu0 0.0
    %2650 = vmatprep.subr.mxu0 0.0
    %2651 = vmatpush1.msra.mxu0 0.0
    %2652 = vmatprep.subr.mxu0 0.0
    %2653 = vmatpush1.msra.mxu0 0.0
    %2654 = vmatprep.subr.mxu0 0.0
    %2655 = vmatpush1.msra.mxu0 0.0
    %2656 = vmatprep.subr.mxu0 0.0
    %2657 = vmatpush1.msra.mxu0 0.0
    %2658 = vmatprep.subr.mxu0 0.0
    %2659 = vmatpush1.msra.mxu0 0.0
    %2660 = vmatprep.subr.mxu0 0.0
    %2661 = vmatpush1.msra.mxu0 0.0
    %2662 = vmatprep.subr.mxu0 0.0
    %2663 = vmatpush1.msra.mxu0 0.0
    %2664 = vmatprep.subr.mxu0 0.0
    %2665 = vmatpush1.msra.mxu0 0.0
    %2666 = vmatprep.subr.mxu0 0.0
    %2667 = vmatpush1.msra.mxu0 0.0
    %2668 = vmatprep.subr.mxu0 0.0
    %2669 = vmatpush1.msra.mxu0 0.0
    %2670 = vmatprep.subr.mxu0 0.0
    %2671 = vmatpush1.msra.mxu0 0.0
    %2672 = vmatprep.subr.mxu0 0.0
    %2673 = vmatpush1.msra.mxu0 0.0
    %2674 = vmatprep.subr.mxu0 0.0
    %2675 = vmatpush1.msra.mxu0 0.0
    %2676 = vmatprep.subr.mxu0 0.0
    %2677 = vmatpush1.msra.mxu0 0.0
    %2678 = vmatprep.subr.mxu0 0.0
    %2679 = vmatpush1.msra.mxu0 0.0
    %2680 = vmatprep.subr.mxu0 0.0
    %2681 = vmatpush1.msra.mxu0 0.0
    %2682 = vmatprep.subr.mxu0 0.0
    %2683 = vmatpush1.msra.mxu0 0.0
    %2684 = vmatprep.subr.mxu0 0.0
    %2685 = vmatpush1.msra.mxu0 0.0
    %2686 = vmatprep.subr.mxu0 0.0
    %2687 = vmatpush1.msra.mxu0 0.0
    %2688 = vmatprep.mubr.f32.mxu0 0.0
    %2689 = vmatmul.mubr.f32.gmra.mrb[0].mxu0 %v2608
    %v2690 = vpop.f32.mrb[0].mxu0
    %v2691 = vadd.f32 0.0, %v2690
    %v2692 = vpop.f32.mrb[0].mxu0
    %2693 = vmatprep.mubr.f32.mxu0 0.0
    %2694 = vmatmul.mubr.f32.gmra.mrb[0].mxu0 %v2610
    %v2695 = vpop.f32.mrb[0].mxu0
    %v2696 = vadd.f32 0.0, %v2695
    %v2697 = vpop.f32.mrb[0].mxu0
    %2698 = vmatprep.mubr.f32.mxu0 0.0
    %2699 = vmatmul.mubr.f32.gmra.mrb[0].mxu0 %v2612
    %v2700 = vpop.f32.mrb[0].mxu0
    %v2701 = vadd.f32 0.0, %v2700
    %v2702 = vpop.f32.mrb[0].mxu0
    %2703 = vmatprep.mubr.f32.mxu0 0.0
    %2704 = vmatmul.mubr.f32.gmra.mrb[0].mxu0 %v2614
    %v2705 = vpop.f32.mrb[0].mxu0
    %v2706 = vadd.f32 0.0, %v2705
    %v2707 = vpop.f32.mrb[0].mxu0
    %2708 = vmatprep.mubr.f32.mxu0 0.0
    %2709 = vmatmul.mubr.f32.gmra.mrb[0].mxu0 %v2616
    %v2710 = vpop.f32.mrb[0].mxu0
    %v2711 = vadd.f32 0.0, %v2710
    %v2712 = vpop.f32.mrb[0].mxu0
    %2713 = vmatprep.mubr.f32.mxu0 0.0
    %2714 = vmatmul.mubr.f32.gmra.mrb[0].mxu0 %v2618
    %v2715 = vpop.f32.mrb[0].mxu0
    %v2716 = vadd.f32 0.0, %v2715
    %v2717 = vpop.f32.mrb[0].mxu0
    %2718 = vmatprep.mubr.f32.mxu0 0.0
    %2719 = vmatmul.mubr.f32.gmra.mrb[0].mxu0 %v2620
    %v2720 = vpop.f32.mrb[0].mxu0
    %v2721 = vadd.f32 0.0, %v2720
    %v2722 = vpop.f32.mrb[0].mxu0
    %2723 = vmatprep.mubr.f32.mxu0 0.0
    %2724 = vmatmul.mubr.f32.gmra.mrb[0].mxu0 %v2622
    %v2725 = vpop.f32.mrb[0].mxu0
    %v2726 = vadd.f32 0.0, %v2725
    %v2727 = vpop.f32.mrb[0].mxu0
    %2728 = vdwg.mxu0
    %2737 = vrot.lane.b32.xlu0 %v1906, 64
    %v2738 = vpop.permute.xlu0 %2737
    %2739 = vrot.lane.b32.xlu0 %v1907, 64
    %v2740 = vpop.permute.xlu0 %2739
    %2741 = vrot.lane.b32.xlu0 %v1908, 64
    %v2742 = vpop.permute.xlu0 %2741
    %2743 = vrot.lane.b32.xlu0 %v1909, 64
    %v2744 = vpop.permute.xlu0 %2743
    %2745 = vrot.lane.b32.xlu0 %v1910, 64
    %v2746 = vpop.permute.xlu0 %2745
    %2747 = vrot.lane.b32.xlu0 %v1911, 64
    %v2748 = vpop.permute.xlu0 %2747
    %2749 = vrot.lane.b32.xlu0 %v1912, 64
    %v2750 = vpop.permute.xlu0 %2749
    %2751 = vrot.lane.b32.xlu0 %v1913, 64
    %v2752 = vpop.permute.xlu0 %2751
    %v2762 = vsel %vm68, %v2560, 0
    %v2765 = vsel %vm68, %v2561, 0
    %v2768 = vsel %vm68, %v2562, 0
    %v2771 = vsel %vm68, %v2563, 0
    %v2774 = vsel %vm68, %v2564, 0
    %v2777 = vsel %vm68, %v2565, 0
    %v2780 = vsel %vm68, %v2566, 0
    %v2783 = vsel %vm68, %v2567, 0
    %2785 = vmatprep.subr.mxu0 0.0
    %2786 = vmatpush1.msra.mxu0 %v2738
    %2787 = vmatprep.subr.mxu0 0.0
    %2788 = vmatpush1.msra.mxu0 %v2740
    %2789 = vmatprep.subr.mxu0 0.0
    %2790 = vmatpush1.msra.mxu0 %v2742
    %2791 = vmatprep.subr.mxu0 0.0
    %2792 = vmatpush1.msra.mxu0 %v2744
    %2793 = vmatprep.subr.mxu0 0.0
    %2794 = vmatpush1.msra.mxu0 %v2746
    %2795 = vmatprep.subr.mxu0 0.0
    %2796 = vmatpush1.msra.mxu0 %v2748
    %2797 = vmatprep.subr.mxu0 0.0
    %2798 = vmatpush1.msra.mxu0 %v2750
    %2799 = vmatprep.subr.mxu0 0.0
    %2800 = vmatpush1.msra.mxu0 %v2752
    %2801 = vmatprep.subr.mxu0 0.0
    %2802 = vmatpush1.msra.mxu0 0.0
    %2803 = vmatprep.subr.mxu0 0.0
    %2804 = vmatpush1.msra.mxu0 0.0
    %2805 = vmatprep.subr.mxu0 0.0
    %2806 = vmatpush1.msra.mxu0 0.0
    %2807 = vmatprep.subr.mxu0 0.0
    %2808 = vmatpush1.msra.mxu0 0.0
    %2809 = vmatprep.subr.mxu0 0.0
    %2810 = vmatpush1.msra.mxu0 0.0
    %2811 = vmatprep.subr.mxu0 0.0
    %2812 = vmatpush1.msra.mxu0 0.0
    %2813 = vmatprep.subr.mxu0 0.0
    %2814 = vmatpush1.msra.mxu0 0.0
    %2815 = vmatprep.subr.mxu0 0.0
    %2816 = vmatpush1.msra.mxu0 0.0
    %2817 = vmatprep.subr.mxu0 0.0
    %2818 = vmatpush1.msra.mxu0 0.0
    %2819 = vmatprep.subr.mxu0 0.0
    %2820 = vmatpush1.msra.mxu0 0.0
    %2821 = vmatprep.subr.mxu0 0.0
    %2822 = vmatpush1.msra.mxu0 0.0
    %2823 = vmatprep.subr.mxu0 0.0
    %2824 = vmatpush1.msra.mxu0 0.0
    %2825 = vmatprep.subr.mxu0 0.0
    %2826 = vmatpush1.msra.mxu0 0.0
    %2827 = vmatprep.subr.mxu0 0.0
    %2828 = vmatpush1.msra.mxu0 0.0
    %2829 = vmatprep.subr.mxu0 0.0
    %2830 = vmatpush1.msra.mxu0 0.0
    %2831 = vmatprep.subr.mxu0 0.0
    %2832 = vmatpush1.msra.mxu0 0.0
    %2833 = vmatprep.subr.mxu0 0.0
    %2834 = vmatpush1.msra.mxu0 0.0
    %2835 = vmatprep.subr.mxu0 0.0
    %2836 = vmatpush1.msra.mxu0 0.0
    %2837 = vmatprep.subr.mxu0 0.0
    %2838 = vmatpush1.msra.mxu0 0.0
    %2839 = vmatprep.subr.mxu0 0.0
    %2840 = vmatpush1.msra.mxu0 0.0
    %2841 = vmatprep.subr.mxu0 0.0
    %2842 = vmatpush1.msra.mxu0 0.0
    %2843 = vmatprep.subr.mxu0 0.0
    %2844 = vmatpush1.msra.mxu0 0.0
    %2845 = vmatprep.subr.mxu0 0.0
    %2846 = vmatpush1.msra.mxu0 0.0
    %2847 = vmatprep.subr.mxu0 0.0
    %2848 = vmatpush1.msra.mxu0 0.0
    %2849 = vmatprep.mubr.f32.mxu0 0.0
    %2850 = vmatmul.mubr.f32.gmra.mrb[0].mxu0 %v2762
    %v2851 = vpop.f32.mrb[0].mxu0
    %v2852 = vadd.f32 %v2691, %v2851
    %v2853 = vpop.f32.mrb[0].mxu0
    %2854 = vmatprep.mubr.f32.mxu0 0.0
    %2855 = vmatmul.mubr.f32.gmra.mrb[0].mxu0 %v2765
    %v2856 = vpop.f32.mrb[0].mxu0
    %v2857 = vadd.f32 %v2696, %v2856
    %v2858 = vpop.f32.mrb[0].mxu0
    %2859 = vmatprep.mubr.f32.mxu0 0.0
    %2860 = vmatmul.mubr.f32.gmra.mrb[0].mxu0 %v2768
    %v2861 = vpop.f32.mrb[0].mxu0
    %v2862 = vadd.f32 %v2701, %v2861
    %v2863 = vpop.f32.mrb[0].mxu0
    %2864 = vmatprep.mubr.f32.mxu0 0.0
    %2865 = vmatmul.mubr.f32.gmra.mrb[0].mxu0 %v2771
    %v2866 = vpop.f32.mrb[0].mxu0
    %v2867 = vadd.f32 %v2706, %v2866
    %v2868 = vpop.f32.mrb[0].mxu0
    %2869 = vmatprep.mubr.f32.mxu0 0.0
    %2870 = vmatmul.mubr.f32.gmra.mrb[0].mxu0 %v2774
    %v2871 = vpop.f32.mrb[0].mxu0
    %v2872 = vadd.f32 %v2711, %v2871
    %v2873 = vpop.f32.mrb[0].mxu0
    %2874 = vmatprep.mubr.f32.mxu0 0.0
    %2875 = vmatmul.mubr.f32.gmra.mrb[0].mxu0 %v2777
    %v2876 = vpop.f32.mrb[0].mxu0
    %v2877 = vadd.f32 %v2716, %v2876
    %v2878 = vpop.f32.mrb[0].mxu0
    %2879 = vmatprep.mubr.f32.mxu0 0.0
    %2880 = vmatmul.mubr.f32.gmra.mrb[0].mxu0 %v2780
    %v2881 = vpop.f32.mrb[0].mxu0
    %v2882 = vadd.f32 %v2721, %v2881
    %v2883 = vpop.f32.mrb[0].mxu0
    %2884 = vmatprep.mubr.f32.mxu0 0.0
    %2885 = vmatmul.mubr.f32.gmra.mrb[0].mxu0 %v2783
    %v2886 = vpop.f32.mrb[0].mxu0
    %v2887 = vadd.f32 %v2726, %v2886
    %v2888 = vpop.f32.mrb[0].mxu0
    %2889 = vdwg.mxu0
    %2898 = vrot.lane.b32.xlu0 %v2172, 64
    %v2899 = vpop.permute.xlu0 %2898
    %2900 = vrot.lane.b32.xlu0 %v2173, 64
    %v2901 = vpop.permute.xlu0 %2900
    %2902 = vrot.lane.b32.xlu0 %v2174, 64
    %v2903 = vpop.permute.xlu0 %2902
    %2904 = vrot.lane.b32.xlu0 %v2175, 64
    %v2905 = vpop.permute.xlu0 %2904
    %2906 = vrot.lane.b32.xlu0 %v2176, 64
    %v2907 = vpop.permute.xlu0 %2906
    %2908 = vrot.lane.b32.xlu0 %v2177, 64
    %v2909 = vpop.permute.xlu0 %2908
    %2910 = vrot.lane.b32.xlu0 %v2178, 64
    %v2911 = vpop.permute.xlu0 %2910
    %2912 = vrot.lane.b32.xlu0 %v2179, 64
    %v2913 = vpop.permute.xlu0 %2912
    %v2923 = vsel %vm68, %v2568, 0
    %v2926 = vsel %vm68, %v2569, 0
    %v2929 = vsel %vm68, %v2570, 0
    %v2932 = vsel %vm68, %v2571, 0
    %v2935 = vsel %vm68, %v2572, 0
    %v2938 = vsel %vm68, %v2573, 0
    %v2941 = vsel %vm68, %v2574, 0
    %v2944 = vsel %vm68, %v2575, 0
    %2946 = vmatprep.subr.mxu0 0.0
    %2947 = vmatpush1.msra.mxu0 %v2899
    %2948 = vmatprep.subr.mxu0 0.0
    %2949 = vmatpush1.msra.mxu0 %v2901
    %2950 = vmatprep.subr.mxu0 0.0
    %2951 = vmatpush1.msra.mxu0 %v2903
    %2952 = vmatprep.subr.mxu0 0.0
    %2953 = vmatpush1.msra.mxu0 %v2905
    %2954 = vmatprep.subr.mxu0 0.0
    %2955 = vmatpush1.msra.mxu0 %v2907
    %2956 = vmatprep.subr.mxu0 0.0
    %2957 = vmatpush1.msra.mxu0 %v2909
    %2958 = vmatprep.subr.mxu0 0.0
    %2959 = vmatpush1.msra.mxu0 %v2911
    %2960 = vmatprep.subr.mxu0 0.0
    %2961 = vmatpush1.msra.mxu0 %v2913
    %2962 = vmatprep.subr.mxu0 0.0
    %2963 = vmatpush1.msra.mxu0 0.0
    %2964 = vmatprep.subr.mxu0 0.0
    %2965 = vmatpush1.msra.mxu0 0.0
    %2966 = vmatprep.subr.mxu0 0.0
    %2967 = vmatpush1.msra.mxu0 0.0
    %2968 = vmatprep.subr.mxu0 0.0
    %2969 = vmatpush1.msra.mxu0 0.0
    %2970 = vmatprep.subr.mxu0 0.0
    %2971 = vmatpush1.msra.mxu0 0.0
    %2972 = vmatprep.subr.mxu0 0.0
    %2973 = vmatpush1.msra.mxu0 0.0
    %2974 = vmatprep.subr.mxu0 0.0
    %2975 = vmatpush1.msra.mxu0 0.0
    %2976 = vmatprep.subr.mxu0 0.0
    %2977 = vmatpush1.msra.mxu0 0.0
    %2978 = vmatprep.subr.mxu0 0.0
    %2979 = vmatpush1.msra.mxu0 0.0
    %2980 = vmatprep.subr.mxu0 0.0
    %2981 = vmatpush1.msra.mxu0 0.0
    %2982 = vmatprep.subr.mxu0 0.0
    %2983 = vmatpush1.msra.mxu0 0.0
    %2984 = vmatprep.subr.mxu0 0.0
    %2985 = vmatpush1.msra.mxu0 0.0
    %2986 = vmatprep.subr.mxu0 0.0
    %2987 = vmatpush1.msra.mxu0 0.0
    %2988 = vmatprep.subr.mxu0 0.0
    %2989 = vmatpush1.msra.mxu0 0.0
    %2990 = vmatprep.subr.mxu0 0.0
    %2991 = vmatpush1.msra.mxu0 0.0
    %2992 = vmatprep.subr.mxu0 0.0
    %2993 = vmatpush1.msra.mxu0 0.0
    %2994 = vmatprep.subr.mxu0 0.0
    %2995 = vmatpush1.msra.mxu0 0.0
    %2996 = vmatprep.subr.mxu0 0.0
    %2997 = vmatpush1.msra.mxu0 0.0
    %2998 = vmatprep.subr.mxu0 0.0
    %2999 = vmatpush1.msra.mxu0 0.0
    %3000 = vmatprep.subr.mxu0 0.0
    %3001 = vmatpush1.msra.mxu0 0.0
    %3002 = vmatprep.subr.mxu0 0.0
    %3003 = vmatpush1.msra.mxu0 0.0
    %3004 = vmatprep.subr.mxu0 0.0
    %3005 = vmatpush1.msra.mxu0 0.0
    %3006 = vmatprep.subr.mxu0 0.0
    %3007 = vmatpush1.msra.mxu0 0.0
    %3008 = vmatprep.subr.mxu0 0.0
    %3009 = vmatpush1.msra.mxu0 0.0
    %3010 = vmatprep.mubr.f32.mxu0 0.0
    %3011 = vmatmul.mubr.f32.gmra.mrb[0].mxu0 %v2923
    %v3012 = vpop.f32.mrb[0].mxu0
    %v3013 = vadd.f32 0.0, %v3012
    %v3014 = vpop.f32.mrb[0].mxu0
    %3015 = vmatprep.mubr.f32.mxu0 0.0
    %3016 = vmatmul.mubr.f32.gmra.mrb[0].mxu0 %v2926
    %v3017 = vpop.f32.mrb[0].mxu0
    %v3018 = vadd.f32 0.0, %v3017
    %v3019 = vpop.f32.mrb[0].mxu0
    %3020 = vmatprep.mubr.f32.mxu0 0.0
    %3021 = vmatmul.mubr.f32.gmra.mrb[0].mxu0 %v2929
    %v3022 = vpop.f32.mrb[0].mxu0
    %v3023 = vadd.f32 0.0, %v3022
    %v3024 = vpop.f32.mrb[0].mxu0
    %3025 = vmatprep.mubr.f32.mxu0 0.0
    %3026 = vmatmul.mubr.f32.gmra.mrb[0].mxu0 %v2932
    %v3027 = vpop.f32.mrb[0].mxu0
    %v3028 = vadd.f32 0.0, %v3027
    %v3029 = vpop.f32.mrb[0].mxu0
    %3030 = vmatprep.mubr.f32.mxu0 0.0
    %3031 = vmatmul.mubr.f32.gmra.mrb[0].mxu0 %v2935
    %v3032 = vpop.f32.mrb[0].mxu0
    %v3033 = vadd.f32 0.0, %v3032
    %v3034 = vpop.f32.mrb[0].mxu0
    %3035 = vmatprep.mubr.f32.mxu0 0.0
    %3036 = vmatmul.mubr.f32.gmra.mrb[0].mxu0 %v2938
    %v3037 = vpop.f32.mrb[0].mxu0
    %v3038 = vadd.f32 0.0, %v3037
    %v3039 = vpop.f32.mrb[0].mxu0
    %3040 = vmatprep.mubr.f32.mxu0 0.0
    %3041 = vmatmul.mubr.f32.gmra.mrb[0].mxu0 %v2941
    %v3042 = vpop.f32.mrb[0].mxu0
    %v3043 = vadd.f32 0.0, %v3042
    %v3044 = vpop.f32.mrb[0].mxu0
    %3045 = vmatprep.mubr.f32.mxu0 0.0
    %3046 = vmatmul.mubr.f32.gmra.mrb[0].mxu0 %v2944
    %v3047 = vpop.f32.mrb[0].mxu0
    %v3048 = vadd.f32 0.0, %v3047
    %v3049 = vpop.f32.mrb[0].mxu0
    %3050 = vdwg.mxu0
    %v3051 = vadd.f32 %v2852, %v3013
    %v3052 = vadd.f32 %v2857, %v3018
    %v3053 = vadd.f32 %v2862, %v3023
    %v3054 = vadd.f32 %v2867, %v3028
    %v3055 = vadd.f32 %v2872, %v3033
    %v3056 = vadd.f32 %v2877, %v3038
    %v3057 = vadd.f32 %v2882, %v3043
    %v3058 = vadd.f32 %v2887, %v3048
    %v3059 = vlaneseq
    %v3060 = vshrl.u32 %v3059, 7
    %v3061 = vsub.s32 0, %v3060
    %v3062 = vrot.slane %v2503, %v3061
    %v3063 = vadd.f32 %v3051, %v3062
    %v3064 = vadd.f32 %v3052, %v3062
    %v3065 = vadd.f32 %v3053, %v3062
    %v3066 = vadd.f32 %v3054, %v3062
    %v3067 = vadd.f32 %v3055, %v3062
    %v3068 = vadd.f32 %v3056, %v3062
    %v3069 = vadd.f32 %v3057, %v3062
    %v3070 = vadd.f32 %v3058, %v3062
    %s3071 = scalar_lea.vmem %s1, 6
    %v3072 = vld [vmem:[%s3071] sm:$0x3]
    %v3073 = vsel %vm166, %v3063, 0.0
    %v3074 = vsel %vm166, %v3064, 0.0
    %v3075 = vadd.f32 %v3073, %v3074
    %v3076 = vsel %vm166, %v3065, 0.0
    %v3077 = vadd.f32 %v3075, %v3076
    %v3078 = vsel %vm166, %v3066, 0.0
    %v3079 = vadd.f32 %v3077, %v3078
    %v3080 = vrot.slane %v3079, 4
    %v3081 = vadd.f32 %v3079, %v3080
    %v3082 = vrot.slane %v3081, 2
    %v3083 = vadd.f32 %v3081, %v3082
    %v3084 = vrot.slane %v3083, 1
    %v3085 = vadd.f32 %v3083, %v3084
    %v3086 = vmul.f32 %v3085, %v1659
    %v3087 = vsub.f32 %v3063, %v3086
    %v3088 = vsub.f32 %v3064, %v3086
    %v3089 = vsub.f32 %v3065, %v3086
    %v3090 = vsub.f32 %v3066, %v3086
    %v3091 = vmul.f32 %v3087, %v3087
    %v3092 = vmul.f32 %v3088, %v3088
    %v3093 = vmul.f32 %v3089, %v3089
    %v3094 = vmul.f32 %v3090, %v3090
    %v3095 = vsel %vm166, %v3091, 0.0
    %v3096 = vsel %vm166, %v3092, 0.0
    %v3097 = vadd.f32 %v3095, %v3096
    %v3098 = vsel %vm166, %v3093, 0.0
    %v3099 = vadd.f32 %v3097, %v3098
    %v3100 = vsel %vm166, %v3094, 0.0
    %v3101 = vadd.f32 %v3099, %v3100
    %v3102 = vrot.slane %v3101, 4
    %v3103 = vadd.f32 %v3101, %v3102
    %v3104 = vrot.slane %v3103, 2
    %v3105 = vadd.f32 %v3103, %v3104
    %v3106 = vrot.slane %v3105, 1
    %v3107 = vadd.f32 %v3105, %v3106
    %v3108 = vmul.f32 %v3107, %v1659
    %v3109 = vadd.f32 %v3108, 1e-05
    %v3110 = vrsqrt.pop %v3109
    %v3111 = vmul.f32 %v3087, %v3110
    %v3112 = vmul.f32 %v3088, %v3110
    %v3113 = vmul.f32 %v3089, %v3110
    %v3114 = vmul.f32 %v3090, %v3110
    %v3115 = vsel %vm166, %v3067, 0.0
    %v3116 = vsel %vm166, %v3068, 0.0
    %v3117 = vadd.f32 %v3115, %v3116
    %v3118 = vsel %vm166, %v3069, 0.0
    %v3119 = vadd.f32 %v3117, %v3118
    %v3120 = vsel %vm166, %v3070, 0.0
    %v3121 = vadd.f32 %v3119, %v3120
    %v3122 = vrot.slane %v3121, 4
    %v3123 = vadd.f32 %v3121, %v3122
    %v3124 = vrot.slane %v3123, 2
    %v3125 = vadd.f32 %v3123, %v3124
    %v3126 = vrot.slane %v3125, 1
    %v3127 = vadd.f32 %v3125, %v3126
    %v3128 = vmul.f32 %v3127, %v1659
    %v3129 = vsub.f32 %v3067, %v3128
    %v3130 = vsub.f32 %v3068, %v3128
    %v3131 = vsub.f32 %v3069, %v3128
    %v3132 = vsub.f32 %v3070, %v3128
    %v3133 = vmul.f32 %v3129, %v3129
    %v3134 = vmul.f32 %v3130, %v3130
    %v3135 = vmul.f32 %v3131, %v3131
    %v3136 = vmul.f32 %v3132, %v3132
    %v3137 = vsel %vm166, %v3133, 0.0
    %v3138 = vsel %vm166, %v3134, 0.0
    %v3139 = vadd.f32 %v3137, %v3138
    %v3140 = vsel %vm166, %v3135, 0.0
    %v3141 = vadd.f32 %v3139, %v3140
    %v3142 = vsel %vm166, %v3136, 0.0
    %v3143 = vadd.f32 %v3141, %v3142
    %v3144 = vrot.slane %v3143, 4
    %v3145 = vadd.f32 %v3143, %v3144
    %v3146 = vrot.slane %v3145, 2
    %v3147 = vadd.f32 %v3145, %v3146
    %v3148 = vrot.slane %v3147, 1
    %v3149 = vadd.f32 %v3147, %v3148
    %v3150 = vmul.f32 %v3149, %v1659
    %v3151 = vadd.f32 %v3150, 1e-05
    %v3152 = vrsqrt.pop %v3151
    %v3153 = vmul.f32 %v3129, %v3152
    %v3154 = vmul.f32 %v3130, %v3152
    %v3155 = vmul.f32 %v3131, %v3152
    %v3156 = vmul.f32 %v3132, %v3152
    %3161 = vrot.lane.b32.xlu0 %v3063, 96
    %v3162 = vpop.permute.xlu0 %3161
    %3163 = vrot.lane.b32.xlu0 %v3064, 96
    %v3164 = vpop.permute.xlu0 %3163
    %3165 = vrot.lane.b32.xlu0 %v3065, 96
    %v3166 = vpop.permute.xlu0 %3165
    %3167 = vrot.lane.b32.xlu0 %v3066, 96
    %v3168 = vpop.permute.xlu0 %3167
    %v3173 = vadd.f32 %v3111, %v3162
    %v3174 = vadd.f32 %v3112, %v3164
    %v3175 = vadd.f32 %v3113, %v3166
    %v3176 = vadd.f32 %v3114, %v3168
    %v3177 = vlaneseq
    %v3178 = vshrl.u32 %v3177, 7
    %v3179 = vsub.s32 0, %v3178
    %v3180 = vrot.slane %v3072, %v3179
    %3182 = vrot.lane.b32.xlu0 %v3180, 96
    %v3183 = vpop.permute.xlu0 %3182
    %v3185 = vmul.f32 %v3173, %v3183
    %v3186 = vmul.f32 %v3174, %v3183
    %v3187 = vmul.f32 %v3175, %v3183
    %v3188 = vmul.f32 %v3176, %v3183
    %v3189 = vadd.f32 %v3185, %v3180
    %v3190 = vadd.f32 %v3186, %v3180
    %v3191 = vadd.f32 %v3187, %v3180
    %v3192 = vadd.f32 %v3188, %v3180
    %v3193 = vmax.f32 %v3189, 0.0
    %v3194 = vmax.f32 %v3190, 0.0
    %v3195 = vmax.f32 %v3191, 0.0
    %v3196 = vmax.f32 %v3192, 0.0
    %3201 = vrot.lane.b32.xlu0 %v3067, 96
    %v3202 = vpop.permute.xlu0 %3201
    %3203 = vrot.lane.b32.xlu0 %v3068, 96
    %v3204 = vpop.permute.xlu0 %3203
    %3205 = vrot.lane.b32.xlu0 %v3069, 96
    %v3206 = vpop.permute.xlu0 %3205
    %3207 = vrot.lane.b32.xlu0 %v3070, 96
    %v3208 = vpop.permute.xlu0 %3207
    %v3213 = vadd.f32 %v3153, %v3202
    %v3214 = vadd.f32 %v3154, %v3204
    %v3215 = vadd.f32 %v3155, %v3206
    %v3216 = vadd.f32 %v3156, %v3208
    %v3217 = vlaneseq
    %v3218 = vshrl.u32 %v3217, 7
    %v3219 = vsub.s32 1, %v3218
    %v3220 = vrot.slane %v3072, %v3219
    %3222 = vrot.lane.b32.xlu0 %v3220, 96
    %v3223 = vpop.permute.xlu0 %3222
    %v3225 = vmul.f32 %v3213, %v3223
    %v3226 = vmul.f32 %v3214, %v3223
    %v3227 = vmul.f32 %v3215, %v3223
    %v3228 = vmul.f32 %v3216, %v3223
    %v3229 = vadd.f32 %v3225, %v3220
    %v3230 = vadd.f32 %v3226, %v3220
    %v3231 = vadd.f32 %v3227, %v3220
    %v3232 = vadd.f32 %v3228, %v3220
    %v3233 = vmax.f32 %v3229, 0.0
    %v3234 = vmax.f32 %v3230, 0.0
    %v3235 = vmax.f32 %v3231, 0.0
    %v3236 = vmax.f32 %v3232, 0.0
    %v3237 = vadd.f32 %v3193, %v1819
    %v3238 = vadd.f32 %v3194, %v1820
    %v3239 = vadd.f32 %v3195, %v1821
    %v3240 = vadd.f32 %v3196, %v1822
    %v3241 = vadd.f32 %v3233, %v1823
    %v3242 = vadd.f32 %v3234, %v1824
    %v3243 = vadd.f32 %v3235, %v1825
    %v3244 = vadd.f32 %v3236, %v1826
    %v3245 = vld [vmem:[#allocation2 + $0x18] sm:$0xff]
    %v3246 = vld [vmem:[#allocation2 + $0x38] sm:$0xff]
    %v3247 = vld [vmem:[#allocation2 + $0x58] sm:$0xff]
    %v3248 = vld [vmem:[#allocation2 + $0x78] sm:$0xff]
    %v3249 = vld [vmem:[%s3 + $0x5] sm:$0x1]
    %v3250 = vlaneseq
    %v3251 = vshrl.u32 %v3250, 7
    %v3252 = vsub.s32 0, %v3251
    %v3253 = vrot.slane %v3249, %v3252
    %v3255 = vsel %vm166, %v3237, 0
    %v3258 = vsel %vm166, %v3238, 0
    %v3261 = vsel %vm166, %v3239, 0
    %v3264 = vsel %vm166, %v3240, 0
    %v3267 = vsel %vm166, %v3241, 0
    %v3270 = vsel %vm166, %v3242, 0
    %v3273 = vsel %vm166, %v3243, 0
    %v3276 = vsel %vm166, %v3244, 0
    %3278 = vmatprep.subr.mxu0 0.0
    %3279 = vmatpush1.msra.mxu0 %v3245
    %3280 = vmatprep.subr.mxu0 0.0
    %3281 = vmatpush1.msra.mxu0 %v3246
    %3282 = vmatprep.subr.mxu0 0.0
    %3283 = vmatpush1.msra.mxu0 %v3247
    %3284 = vmatprep.subr.mxu0 0.0
    %3285 = vmatpush1.msra.mxu0 %v3248
    %3286 = vmatprep.subr.mxu0 0.0
    %3287 = vmatpush1.msra.mxu0 0.0
    %3288 = vmatprep.subr.mxu0 0.0
    %3289 = vmatpush1.msra.mxu0 0.0
    %3290 = vmatprep.subr.mxu0 0.0
    %3291 = vmatpush1.msra.mxu0 0.0
    %3292 = vmatprep.subr.mxu0 0.0
    %3293 = vmatpush1.msra.mxu0 0.0
    %3294 = vmatprep.subr.mxu0 0.0
    %3295 = vmatpush1.msra.mxu0 0.0
    %3296 = vmatprep.subr.mxu0 0.0
    %3297 = vmatpush1.msra.mxu0 0.0
    %3298 = vmatprep.subr.mxu0 0.0
    %3299 = vmatpush1.msra.mxu0 0.0
    %3300 = vmatprep.subr.mxu0 0.0
    %3301 = vmatpush1.msra.mxu0 0.0
    %3302 = vmatprep.subr.mxu0 0.0
    %3303 = vmatpush1.msra.mxu0 0.0
    %3304 = vmatprep.subr.mxu0 0.0
    %3305 = vmatpush1.msra.mxu0 0.0
    %3306 = vmatprep.subr.mxu0 0.0
    %3307 = vmatpush1.msra.mxu0 0.0
    %3308 = vmatprep.subr.mxu0 0.0
    %3309 = vmatpush1.msra.mxu0 0.0
    %3310 = vmatprep.subr.mxu0 0.0
    %3311 = vmatpush1.msra.mxu0 0.0
    %3312 = vmatprep.subr.mxu0 0.0
    %3313 = vmatpush1.msra.mxu0 0.0
    %3314 = vmatprep.subr.mxu0 0.0
    %3315 = vmatpush1.msra.mxu0 0.0
    %3316 = vmatprep.subr.mxu0 0.0
    %3317 = vmatpush1.msra.mxu0 0.0
    %3318 = vmatprep.subr.mxu0 0.0
    %3319 = vmatpush1.msra.mxu0 0.0
    %3320 = vmatprep.subr.mxu0 0.0
    %3321 = vmatpush1.msra.mxu0 0.0
    %3322 = vmatprep.subr.mxu0 0.0
    %3323 = vmatpush1.msra.mxu0 0.0
    %3324 = vmatprep.subr.mxu0 0.0
    %3325 = vmatpush1.msra.mxu0 0.0
    %3326 = vmatprep.subr.mxu0 0.0
    %3327 = vmatpush1.msra.mxu0 0.0
    %3328 = vmatprep.subr.mxu0 0.0
    %3329 = vmatpush1.msra.mxu0 0.0
    %3330 = vmatprep.subr.mxu0 0.0
    %3331 = vmatpush1.msra.mxu0 0.0
    %3332 = vmatprep.subr.mxu0 0.0
    %3333 = vmatpush1.msra.mxu0 0.0
    %3334 = vmatprep.subr.mxu0 0.0
    %3335 = vmatpush1.msra.mxu0 0.0
    %3336 = vmatprep.subr.mxu0 0.0
    %3337 = vmatpush1.msra.mxu0 0.0
    %3338 = vmatprep.subr.mxu0 0.0
    %3339 = vmatpush1.msra.mxu0 0.0
    %3340 = vmatprep.subr.mxu0 0.0
    %3341 = vmatpush1.msra.mxu0 0.0
    %3342 = vmatprep.mubr.f32.mxu0 0.0
    %3343 = vmatmul.mubr.f32.gmra.mrb[0].mxu0 %v3255
    %v3344 = vpop.f32.mrb[0].mxu0
    %v3345 = vadd.f32 %v3253, %v3344
    %v3346 = vpop.f32.mrb[0].mxu0
    %3347 = vmatprep.mubr.f32.mxu0 0.0
    %3348 = vmatmul.mubr.f32.gmra.mrb[0].mxu0 %v3258
    %v3349 = vpop.f32.mrb[0].mxu0
    %v3350 = vadd.f32 %v3253, %v3349
    %v3351 = vpop.f32.mrb[0].mxu0
    %3352 = vmatprep.mubr.f32.mxu0 0.0
    %3353 = vmatmul.mubr.f32.gmra.mrb[0].mxu0 %v3261
    %v3354 = vpop.f32.mrb[0].mxu0
    %v3355 = vadd.f32 %v3253, %v3354
    %v3356 = vpop.f32.mrb[0].mxu0
    %3357 = vmatprep.mubr.f32.mxu0 0.0
    %3358 = vmatmul.mubr.f32.gmra.mrb[0].mxu0 %v3264
    %v3359 = vpop.f32.mrb[0].mxu0
    %v3360 = vadd.f32 %v3253, %v3359
    %v3361 = vpop.f32.mrb[0].mxu0
    %3362 = vmatprep.mubr.f32.mxu0 0.0
    %3363 = vmatmul.mubr.f32.gmra.mrb[0].mxu0 %v3267
    %v3364 = vpop.f32.mrb[0].mxu0
    %v3365 = vadd.f32 %v3253, %v3364
    %v3366 = vpop.f32.mrb[0].mxu0
    %3367 = vmatprep.mubr.f32.mxu0 0.0
    %3368 = vmatmul.mubr.f32.gmra.mrb[0].mxu0 %v3270
    %v3369 = vpop.f32.mrb[0].mxu0
    %v3370 = vadd.f32 %v3253, %v3369
    %v3371 = vpop.f32.mrb[0].mxu0
    %3372 = vmatprep.mubr.f32.mxu0 0.0
    %3373 = vmatmul.mubr.f32.gmra.mrb[0].mxu0 %v3273
    %v3374 = vpop.f32.mrb[0].mxu0
    %v3375 = vadd.f32 %v3253, %v3374
    %v3376 = vpop.f32.mrb[0].mxu0
    %3377 = vmatprep.mubr.f32.mxu0 0.0
    %3378 = vmatmul.mubr.f32.gmra.mrb[0].mxu0 %v3276
    %v3379 = vpop.f32.mrb[0].mxu0
    %v3380 = vadd.f32 %v3253, %v3379
    %v3381 = vpop.f32.mrb[0].mxu0
    %3382 = vdwg.mxu0
    %3383 = vst [vmem:[%s4] sm:$0xff] %v3345
    %3384 = vst [vmem:[%s4 + $0x8] sm:$0xff] %v3350
    %3385 = vst [vmem:[%s4 + $0x10] sm:$0xff] %v3355
    %3386 = vst [vmem:[%s4 + $0x18] sm:$0xff] %v3360
    %3387 = vst [vmem:[%s4 + $0x20] sm:$0xff] %v3365
    %3388 = vst [vmem:[%s4 + $0x28] sm:$0xff] %v3370
    %3389 = vst [vmem:[%s4 + $0x30] sm:$0xff] %v3375
    %3390 = vst [vmem:[%s4 + $0x38] sm:$0xff] %v3380
    // Predicated region
    $region22: #{decoder_forward.1} parent=1 // pred_check
      _
    $region23: #{decoder_forward.1} parent=1 // pred_check_branch
      %3392 = sbr.rel (0) target = $region25
    $region24: #{decoder_forward.1} parent=1 // pred_region
      _
    $region25: #{decoder_forward.1} parent=1 // pred_fallthru
      _
    // Predicated region
    $region26: #{decoder_forward.1} parent=1 // pred_check
      _
    $region27: #{decoder_forward.1} parent=1 // pred_check_branch
      %3394 = sbr.rel (0) target = $region29
    $region28: #{decoder_forward.1} parent=1 // pred_region
      _
    $region29: #{decoder_forward.1} parent=1 // pred_fallthru
      _
    %3395 = vsyncpa [#allocation3], 1

</llo_original>
